<compile_context>
chip_gen: v7x
topology: tpu7x:2x2x1
jax: 0.10.0
libtpu: 0.0.40
codegen_flags: <defaults>
</compile_context>

<pallas_src>
import numpy as np
import jax
import jax.numpy as jnp
from jax import lax
from jax.experimental import pallas as pl
from jax.experimental.pallas import tpu as pltpu


def _round_up(x, m):
    return (x + m - 1) // m * m


def lstm_fc_kernel(x_ref, w_ih_ref, w_hh_ref, b_ref, w_fc_ref, b_fc_ref,
                   out_ref, gates_sc, h_all_sc, h_sc, c_sc):
    """One grid step = (one batch tile) x (one time chunk).

    x_ref    : (Bt, Tc, D_in)  compute dtype, batch-major HBM block
    w_ih_ref : (D_in, 4H)      pre-transposed
    w_hh_ref : (H, 4H)         pre-transposed
    b_ref    : (1, 4H) f32     b_ih + b_hh
    w_fc_ref : (H, D_out)      pre-transposed
    b_fc_ref : (1, D_out) f32
    out_ref  : (Bt, Tc, D_out) f32, batch-major HBM block
    gates_sc : (Tc, Bt, 4H) compute-dtype scratch (per-chunk input projection)
    h_all_sc : (Tc, Bt, H)  compute-dtype scratch (per-chunk hidden states)
    h_sc/c_sc: (Bt, H) f32  LSTM state carried across time chunks
    """
    Bt, Tc, D_in = x_ref.shape
    H, H4 = w_hh_ref.shape
    D_out = w_fc_ref.shape[1]
    cdt = x_ref.dtype

    t_chunk = pl.program_id(1)

    # Reset carried LSTM state at the first time chunk of each batch tile
    # (matches torch.zeros h0/c0 in InterventionModule.forward).
    @pl.when(t_chunk == 0)
    def _():
        h_sc[...] = jnp.zeros_like(h_sc)
        c_sc[...] = jnp.zeros_like(c_sc)

    # ---- Phase 1: MXU-dense input projection for every (b, t) row of the chunk.
    # Bias is folded in here (f32 accumulate) so the recurrence only adds h @ w_hh.
    x_flat = x_ref[...].reshape(Bt * Tc, D_in)
    proj = jnp.dot(x_flat, w_ih_ref[...], preferred_element_type=jnp.float32)
    proj = proj + b_ref[...]
    # One in-VMEM leading-dim transpose -> time-major, so every per-timestep read in
    # the recurrence is a dense (Bt, 4H) slab; stored in the compute dtype.
    gates_sc[...] = jnp.transpose(proj.reshape(Bt, Tc, H4), (1, 0, 2)).astype(cdt)

    # ---- Phase 2: serial recurrence over the chunk's timesteps.
    def sigmoid(z):
        # 0.5*(tanh(z/2)+1) == logistic sigmoid: a single EUP push per slab.
        return 0.5 * (jnp.tanh(0.5 * z) + 1.0)

    def step(t, carry):
        h, c = carry                                    # (Bt, H) f32
        hq = h.astype(cdt)
        g_row = gates_sc[t]                             # (Bt, 4H) compute dtype

        def pre(g):
            # Per-gate (H, H) slice of w_hh, consumed immediately: only a (Bt, H)
            # f32 slab is live at a time (no full (Bt, 4H) f32 gate tensor, no
            # w_hh hoisted across the unrolled loop).
            r = jnp.dot(hq, w_hh_ref[:, g * H:(g + 1) * H],
                        preferred_element_type=jnp.float32)
            return r + g_row[:, g * H:(g + 1) * H].astype(jnp.float32)

        # PyTorch LSTM gate order along the 4H axis: i, f, g, o.
        g_g = jnp.tanh(pre(2))
        ig = sigmoid(pre(0)) * g_g
        c_new = sigmoid(pre(1)) * c + ig
        h_new = sigmoid(pre(3)) * jnp.tanh(c_new)
        h_all_sc[t] = h_new.astype(cdt)                 # dense (Bt, H) slab store
        return h_new, c_new

    if Tc <= 8:
        unroll = True
    else:
        unroll = next(u for u in (8, 4, 2, 1) if Tc % u == 0)
    h, c = lax.fori_loop(0, Tc, step, (h_sc[...], c_sc[...]), unroll=unroll)
    h_sc[...] = h
    c_sc[...] = c

    # ---- Phase 3: MXU-dense final Linear over the whole chunk, back to batch-major.
    h_flat = h_all_sc[...].reshape(Tc * Bt, H)
    out = jnp.dot(h_flat, w_fc_ref[...], preferred_element_type=jnp.float32)
    out = out + b_fc_ref[...]
    out_ref[...] = jnp.transpose(out.reshape(Tc, Bt, D_out),
                                 (1, 0, 2)).astype(out_ref.dtype)


def intervention_forward(x, w_ih, w_hh, b_ih, b_hh, w_fc, b_fc,
                         *, matmul_dtype=jnp.bfloat16, batch_tile=64,
                         vmem_block_budget_mb=24, time_chunk=None):
    """InterventionModule.forward (type='lstm', depth=1) via a Pallas TPU kernel."""
    x = x.astype(jnp.float32)
    B, T, D_in = x.shape
    H4 = w_ih.shape[0]
    H = H4 // 4
    D_out = w_fc.shape[0]

    cdt = np.dtype(matmul_dtype)
    itemsize = cdt.itemsize

    # ---- Batch tiling.  The batch axis is a *leading* block dim (no (8,128)
    # constraint), so Bt can match B exactly: no padded batch rows / wasted work for
    # small B.  Cap Bt so even the minimum 16-step time chunk fits the VMEM budget,
    # and use >= 2 batch tiles when B >= 2 so v7x's second TensorCore gets work.
    budget = vmem_block_budget_mb << 20
    row_t = 2 * D_in * itemsize + 2 * D_out * 4 + 5 * H * itemsize
    bt_cap = max(1, min(batch_tile, budget // (16 * row_t)))
    n_bt = max(1, -(-B // bt_cap))
    if B >= 2:
        n_bt = max(n_bt, 2)
    Bt = -(-B // n_bt)
    B_pad = n_bt * Bt

    # ---- Time chunking: bound per-chunk VMEM (critical for v7x's 64 MiB at the
    # module-default input_size=4096) and let BlockSpec pipelining overlap the next
    # chunk's HBM->VMEM DMA with the current chunk's recurrence.
    sub = 8 if itemsize == 4 else 16
    per_t = (Bt * (2 * D_in * itemsize + 2 * D_out * 4)      # x + f32 out, dbl-buffered
             + _round_up(Bt, sub) * 5 * H * itemsize)        # gates_sc + h_all_sc
    if time_chunk is not None:
        t_cap = max(16, int(time_chunk) // 16 * 16)
    else:
        t_cap = max(16, (budget // max(per_t, 1)) // 16 * 16)
    if T <= t_cap:
        Tc, T_pad = T, T
    else:
        n_tc = -(-T // t_cap)
        Tc = min(t_cap, _round_up(-(-T // n_tc), 16))
        T_pad = _round_up(T, Tc)

    if (B_pad, T_pad) != (B, T):
        x = jnp.pad(x, ((0, B_pad - B), (0, T_pad - T), (0, 0)))

    # Batch-major input stays batch-major all the way (no wrapper transposes).
    # Weights are pre-transposed and cast once; gate math / state / output stay f32.
    x_c = x.astype(cdt)                              # (B_pad, T_pad, D_in)
    w_ih_t = w_ih.T.astype(cdt)                      # (D_in, 4H)
    w_hh_t = w_hh.T.astype(cdt)                      # (H, 4H)
    w_fc_t = w_fc.T.astype(cdt)                      # (H, D_out)
    b_gates = (b_ih + b_hh).reshape(1, H4).astype(jnp.float32)
    b_out = b_fc.reshape(1, D_out).astype(jnp.float32)

    # TODO(synk): mark the constant weight/bias BlockSpecs single-buffered
    # (pipeline_mode=pl.Buffered(1)) to drop their redundant second VMEM buffer.
    out = pl.pallas_call(
        lstm_fc_kernel,
        out_shape=jax.ShapeDtypeStruct((B_pad, T_pad, D_out), jnp.float32),
        grid_spec=pltpu.PrefetchScalarGridSpec(
            num_scalar_prefetch=0,
            grid=(B_pad // Bt, T_pad // Tc),
            in_specs=[
                pl.BlockSpec((Bt, Tc, D_in), lambda b, t: (b, t, 0)),
                pl.BlockSpec((D_in, H4), lambda b, t: (0, 0)),
                pl.BlockSpec((H, H4), lambda b, t: (0, 0)),
                pl.BlockSpec((1, H4), lambda b, t: (0, 0)),
                pl.BlockSpec((H, D_out), lambda b, t: (0, 0)),
                pl.BlockSpec((1, D_out), lambda b, t: (0, 0)),
            ],
            out_specs=pl.BlockSpec((Bt, Tc, D_out), lambda b, t: (b, t, 0)),
            scratch_shapes=[
                pltpu.VMEM((Tc, Bt, H4), cdt),        # per-chunk input-projection gates
                pltpu.VMEM((Tc, Bt, H), cdt),         # per-chunk hidden states
                pltpu.VMEM((Bt, H), jnp.float32),     # h carried across time chunks
                pltpu.VMEM((Bt, H), jnp.float32),     # c carried across time chunks
            ],
        ),
        compiler_params=pltpu.CompilerParams(
            # batch tiles are independent (megacore); time chunks carry h/c state.
            dimension_semantics=("parallel", "arbitrary"),
            vmem_limit_bytes=48 * 1024 * 1024,
        ),
    )(x_c, w_ih_t, w_hh_t, b_gates, w_fc_t, b_out)

    return out[:B, :T]


def reference_forward(x, w_ih, w_hh, b_ih, b_hh, w_fc, b_fc):
    """Pure-JAX f32 reference matching PyTorch nn.LSTM + nn.Linear semantics."""
    with jax.default_matmul_precision("float32"):
        x = x.astype(jnp.float32)
        B, T, D_in = x.shape
        H = w_hh.shape[1]

        def cell(carry, x_t):
            h, c = carry
            g = x_t @ w_ih.T + b_ih + h @ w_hh.T + b_hh   # (B, 4H)
            i = jax.nn.sigmoid(g[:, 0 * H:1 * H])
            f = jax.nn.sigmoid(g[:, 1 * H:2 * H])
            gg = jnp.tanh(g[:, 2 * H:3 * H])
            o = jax.nn.sigmoid(g[:, 3 * H:4 * H])
            c_new = f * c + i * gg
            h_new = o * jnp.tanh(c_new)
            return (h_new, c_new), h_new

        h0 = jnp.zeros((B, H), jnp.float32)
        c0 = jnp.zeros((B, H), jnp.float32)
        _, hs = lax.scan(cell, (h0, c0), jnp.swapaxes(x, 0, 1))  # (T, B, H)
        hs = jnp.swapaxes(hs, 0, 1)                              # (B, T, H)
        return hs @ w_fc.T + b_fc


def _make_params(key, D_in, H, D_out):
    ks = jax.random.split(key, 7)
    k_init = 1.0 / np.sqrt(H)   # PyTorch default uniform(-1/sqrt(H), 1/sqrt(H))
    w_ih = jax.random.uniform(ks[1], (4 * H, D_in), minval=-k_init, maxval=k_init)
    w_hh = jax.random.uniform(ks[2], (4 * H, H), minval=-k_init, maxval=k_init)
    b_ih = jax.random.uniform(ks[3], (4 * H,), minval=-k_init, maxval=k_init)
    b_hh = jax.random.uniform(ks[4], (4 * H,), minval=-k_init, maxval=k_init)
    w_fc = jax.random.uniform(ks[5], (D_out, H), minval=-k_init, maxval=k_init)
    b_fc = jax.random.uniform(ks[6], (D_out,), minval=-k_init, maxval=k_init)
    return ks[0], (w_ih, w_hh, b_ih, b_hh, w_fc, b_fc)


if __name__ == "__main__":
    # Small, module-consistent shapes: batch=2, seq=8, input=256, hidden=128, output=256.
    B, T, D_in, H, D_out = 2, 8, 256, 128, 256

    key = jax.random.PRNGKey(0)
    kx, params = _make_params(key, D_in, H, D_out)
    x = jax.random.normal(kx, (B, T, D_in), dtype=jnp.float32)

    ref = jax.block_until_ready(reference_forward(x, *params))

    # f32 matmul path: tight structural check against the reference.
    out_f32 = jax.block_until_ready(
        intervention_forward(x, *params, matmul_dtype=jnp.float32))
    assert out_f32.shape == (B, T, D_out), out_f32.shape
    np.testing.assert_allclose(np.asarray(out_f32), np.asarray(ref),
                               rtol=1e-3, atol=1e-3)

    # bf16 matmul path (default / fast): looser tolerance vs the f32 reference.
    out_bf16 = jax.block_until_ready(
        intervention_forward(x, *params, matmul_dtype=jnp.bfloat16))
    assert out_bf16.shape == (B, T, D_out), out_bf16.shape
    np.testing.assert_allclose(np.asarray(out_bf16), np.asarray(ref),
                               rtol=2e-2, atol=2e-2)

    # Exercise the chunked/carried path: B=4 -> two batch tiles of 2 rows,
    # T=40 forced into 16-step time chunks (state carried across chunks, time pad).
    B2, T2 = 4, 40
    key2 = jax.random.PRNGKey(1)
    kx2, params2 = _make_params(key2, D_in, H, D_out)
    x2 = jax.random.normal(kx2, (B2, T2, D_in), dtype=jnp.float32)
    ref2 = jax.block_until_ready(reference_forward(x2, *params2))
    out2 = jax.block_until_ready(
        intervention_forward(x2, *params2, matmul_dtype=jnp.float32, time_chunk=16))
    assert out2.shape == (B2, T2, D_out), out2.shape
    np.testing.assert_allclose(np.asarray(out2), np.asarray(ref2),
                               rtol=2e-3, atol=2e-3)

    print("KERNEL_OK")
</pallas_src>

<mosaic_0001>
module attributes {stable_mosaic.version = 11 : i64} {
  func.func @lstm_fc_kernel(%arg0: i32, %arg1: i32, %arg2: memref<1x8x256xf32, #tpu.memory_space<vmem>>, %arg3: memref<256x512xf32, #tpu.memory_space<vmem>>, %arg4: memref<128x512xf32, #tpu.memory_space<vmem>>, %arg5: memref<1x512xf32, #tpu.memory_space<vmem>>, %arg6: memref<128x256xf32, #tpu.memory_space<vmem>>, %arg7: memref<1x256xf32, #tpu.memory_space<vmem>>, %arg8: memref<1x8x256xf32, #tpu.memory_space<vmem>>, %arg9: memref<8x1x512xf32, #tpu.memory_space<vmem>>, %arg10: memref<8x1x128xf32, #tpu.memory_space<vmem>>, %arg11: memref<1x128xf32, #tpu.memory_space<vmem>>, %arg12: memref<1x128xf32, #tpu.memory_space<vmem>>) attributes {dimension_semantics = [#tpu.dimension_semantics<parallel>, #tpu.dimension_semantics<arbitrary>], iteration_bounds = array<i64: 2, 1>, scalar_prefetch = 0 : i64, scratch_operands = 4 : i64, tpu.core_type = #tpu.core_type<tc>, window_params = [{transform_indices = @transform_0, window_bounds = array<i64: 1, 8, 256>}, {pipeline_mode = #tpu.pipeline_mode<synchronous>, transform_indices = @transform_1, window_bounds = array<i64: 256, 512>}, {pipeline_mode = #tpu.pipeline_mode<synchronous>, transform_indices = @transform_2, window_bounds = array<i64: 128, 512>}, {pipeline_mode = #tpu.pipeline_mode<synchronous>, transform_indices = @transform_3, window_bounds = array<i64: 1, 512>}, {pipeline_mode = #tpu.pipeline_mode<synchronous>, transform_indices = @transform_4, window_bounds = array<i64: 128, 256>}, {pipeline_mode = #tpu.pipeline_mode<synchronous>, transform_indices = @transform_5, window_bounds = array<i64: 1, 256>}, {transform_indices = @transform_6, window_bounds = array<i64: 1, 8, 256>}]} {
    %c0_i32 = arith.constant 0 : i32
    %0 = arith.cmpi eq, %arg1, %c0_i32 : i32
    %1 = arith.extui %0 : i1 to i32
    %c0_i32_0 = arith.constant 0 : i32
    %2 = arith.cmpi ne, %1, %c0_i32_0 : i32
    scf.if %2 {
      %cst_227 = arith.constant 0.000000e+00 : f32
      %427 = vector.broadcast %cst_227 : f32 to vector<1x128xf32>
      %c0_228 = arith.constant 0 : index
      %c0_229 = arith.constant 0 : index
      %428 = vector.load %arg11[%c0_228, %c0_229] : memref<1x128xf32, #tpu.memory_space<vmem>>, vector<1x128xf32>
      tpu.vector_store %arg11[%c0_228, %c0_229], %427 {strides = array<i32>} : memref<1x128xf32, #tpu.memory_space<vmem>>, vector<1x128xf32>,
      %cst_230 = arith.constant 0.000000e+00 : f32
      %429 = vector.broadcast %cst_230 : f32 to vector<1x128xf32>
      %c0_231 = arith.constant 0 : index
      %c0_232 = arith.constant 0 : index
      %430 = vector.load %arg12[%c0_231, %c0_232] : memref<1x128xf32, #tpu.memory_space<vmem>>, vector<1x128xf32>
      tpu.vector_store %arg12[%c0_231, %c0_232], %429 {strides = array<i32>} : memref<1x128xf32, #tpu.memory_space<vmem>>, vector<1x128xf32>,
    } else {
    }
    %c0 = arith.constant 0 : index
    %c0_1 = arith.constant 0 : index
    %c0_2 = arith.constant 0 : index
    %3 = vector.load %arg2[%c0, %c0_1, %c0_2] : memref<1x8x256xf32, #tpu.memory_space<vmem>>, vector<1x8x256xf32>
    %4 = vector.shape_cast %3 : vector<1x8x256xf32> to vector<8x256xf32>
    %c0_3 = arith.constant 0 : index
    %c0_4 = arith.constant 0 : index
    %5 = vector.load %arg3[%c0_3, %c0_4] : memref<256x512xf32, #tpu.memory_space<vmem>>, vector<256x512xf32>
    %cst = arith.constant dense<0.000000e+00> : vector<8x512xf32>
    %6 = tpu.matmul %4, %5, %cst {dimension_numbers = #tpu.dot_dimension_numbers<[1], [0], [0], [1], [0, 0, 1, 1], [], []>} : vector<8x256xf32>, vector<256x512xf32>, vector<8x512xf32> -> vector<8x512xf32>
    %c0_5 = arith.constant 0 : index
    %c0_6 = arith.constant 0 : index
    %7 = vector.load %arg5[%c0_5, %c0_6] : memref<1x512xf32, #tpu.memory_space<vmem>>, vector<1x512xf32>
    %8 = vector.broadcast %7 : vector<1x512xf32> to vector<8x512xf32>
    %9 = arith.addf %6, %8 : vector<8x512xf32>
    %10 = vector.shape_cast %9 : vector<8x512xf32> to vector<1x8x512xf32>
    %11 = tpu.transpose %10, [1, 0, 2] : vector<1x8x512xf32> -> vector<8x1x512xf32>
    %c0_7 = arith.constant 0 : index
    %c0_8 = arith.constant 0 : index
    %c0_9 = arith.constant 0 : index
    %12 = vector.load %arg9[%c0_7, %c0_8, %c0_9] : memref<8x1x512xf32, #tpu.memory_space<vmem>>, vector<8x1x512xf32>
    tpu.vector_store %arg9[%c0_7, %c0_8, %c0_9], %11 {strides = array<i32>} : memref<8x1x512xf32, #tpu.memory_space<vmem>>, vector<8x1x512xf32>,
    %c0_10 = arith.constant 0 : index
    %c0_11 = arith.constant 0 : index
    %13 = vector.load %arg11[%c0_10, %c0_11] : memref<1x128xf32, #tpu.memory_space<vmem>>, vector<1x128xf32>
    %c0_12 = arith.constant 0 : index
    %c0_13 = arith.constant 0 : index
    %14 = vector.load %arg12[%c0_12, %c0_13] : memref<1x128xf32, #tpu.memory_space<vmem>>, vector<1x128xf32>
    %c0_i32_14 = arith.constant 0 : i32
    %15 = arith.index_cast %c0_i32_14 : i32 to index
    %c0_15 = arith.constant 0 : index
    %c0_16 = arith.constant 0 : index
    %16 = vector.load %arg9[%15, %c0_15, %c0_16] : memref<8x1x512xf32, #tpu.memory_space<vmem>>, vector<1x1x512xf32>
    %17 = vector.shape_cast %16 : vector<1x1x512xf32> to vector<1x512xf32>
    %c0_17 = arith.constant 0 : index
    %c256 = arith.constant 256 : index
    %18 = vector.load %arg4[%c0_17, %c256] : memref<128x512xf32, #tpu.memory_space<vmem>>, vector<128x128xf32>
    %cst_18 = arith.constant dense<0.000000e+00> : vector<1x128xf32>
    %19 = tpu.matmul %13, %18, %cst_18 {dimension_numbers = #tpu.dot_dimension_numbers<[1], [0], [0], [1], [0, 0, 1, 1], [], []>} : vector<1x128xf32>, vector<128x128xf32>, vector<1x128xf32> -> vector<1x128xf32>
    %20 = vector.extract_strided_slice %17 {offsets = [0, 256], sizes = [1, 128], strides = [1, 1]} : vector<1x512xf32> to vector<1x128xf32>
    %21 = arith.addf %19, %20 : vector<1x128xf32>
    %22 = math.tanh %21 : vector<1x128xf32>
    %c0_19 = arith.constant 0 : index
    %c0_20 = arith.constant 0 : index
    %23 = vector.load %arg4[%c0_19, %c0_20] : memref<128x512xf32, #tpu.memory_space<vmem>>, vector<128x128xf32>
    %cst_21 = arith.constant dense<0.000000e+00> : vector<1x128xf32>
    %24 = tpu.matmul %13, %23, %cst_21 {dimension_numbers = #tpu.dot_dimension_numbers<[1], [0], [0], [1], [0, 0, 1, 1], [], []>} : vector<1x128xf32>, vector<128x128xf32>, vector<1x128xf32> -> vector<1x128xf32>
    %25 = vector.extract_strided_slice %17 {offsets = [0, 0], sizes = [1, 128], strides = [1, 1]} : vector<1x512xf32> to vector<1x128xf32>
    %26 = arith.addf %24, %25 : vector<1x128xf32>
    %cst_22 = arith.constant 5.000000e-01 : f32
    %27 = vector.broadcast %cst_22 : f32 to vector<1x128xf32>
    %28 = arith.mulf %27, %26 : vector<1x128xf32>
    %29 = math.tanh %28 : vector<1x128xf32>
    %cst_23 = arith.constant 1.000000e+00 : f32
    %30 = vector.broadcast %cst_23 : f32 to vector<1x128xf32>
    %31 = arith.addf %29, %30 : vector<1x128xf32>
    %cst_24 = arith.constant 5.000000e-01 : f32
    %32 = vector.broadcast %cst_24 : f32 to vector<1x128xf32>
    %33 = arith.mulf %32, %31 : vector<1x128xf32>
    %34 = arith.mulf %33, %22 : vector<1x128xf32>
    %c0_25 = arith.constant 0 : index
    %c128 = arith.constant 128 : index
    %35 = vector.load %arg4[%c0_25, %c128] : memref<128x512xf32, #tpu.memory_space<vmem>>, vector<128x128xf32>
    %cst_26 = arith.constant dense<0.000000e+00> : vector<1x128xf32>
    %36 = tpu.matmul %13, %35, %cst_26 {dimension_numbers = #tpu.dot_dimension_numbers<[1], [0], [0], [1], [0, 0, 1, 1], [], []>} : vector<1x128xf32>, vector<128x128xf32>, vector<1x128xf32> -> vector<1x128xf32>
    %37 = vector.extract_strided_slice %17 {offsets = [0, 128], sizes = [1, 128], strides = [1, 1]} : vector<1x512xf32> to vector<1x128xf32>
    %38 = arith.addf %36, %37 : vector<1x128xf32>
    %cst_27 = arith.constant 5.000000e-01 : f32
    %39 = vector.broadcast %cst_27 : f32 to vector<1x128xf32>
    %40 = arith.mulf %39, %38 : vector<1x128xf32>
    %41 = math.tanh %40 : vector<1x128xf32>
    %cst_28 = arith.constant 1.000000e+00 : f32
    %42 = vector.broadcast %cst_28 : f32 to vector<1x128xf32>
    %43 = arith.addf %41, %42 : vector<1x128xf32>
    %cst_29 = arith.constant 5.000000e-01 : f32
    %44 = vector.broadcast %cst_29 : f32 to vector<1x128xf32>
    %45 = arith.mulf %44, %43 : vector<1x128xf32>
    %46 = arith.mulf %45, %14 : vector<1x128xf32>
    %47 = arith.addf %46, %34 : vector<1x128xf32>
    %c0_30 = arith.constant 0 : index
    %c384 = arith.constant 384 : index
    %48 = vector.load %arg4[%c0_30, %c384] : memref<128x512xf32, #tpu.memory_space<vmem>>, vector<128x128xf32>
    %cst_31 = arith.constant dense<0.000000e+00> : vector<1x128xf32>
    %49 = tpu.matmul %13, %48, %cst_31 {dimension_numbers = #tpu.dot_dimension_numbers<[1], [0], [0], [1], [0, 0, 1, 1], [], []>} : vector<1x128xf32>, vector<128x128xf32>, vector<1x128xf32> -> vector<1x128xf32>
    %50 = vector.extract_strided_slice %17 {offsets = [0, 384], sizes = [1, 128], strides = [1, 1]} : vector<1x512xf32> to vector<1x128xf32>
    %51 = arith.addf %49, %50 : vector<1x128xf32>
    %cst_32 = arith.constant 5.000000e-01 : f32
    %52 = vector.broadcast %cst_32 : f32 to vector<1x128xf32>
    %53 = arith.mulf %52, %51 : vector<1x128xf32>
    %54 = math.tanh %53 : vector<1x128xf32>
    %cst_33 = arith.constant 1.000000e+00 : f32
    %55 = vector.broadcast %cst_33 : f32 to vector<1x128xf32>
    %56 = arith.addf %54, %55 : vector<1x128xf32>
    %cst_34 = arith.constant 5.000000e-01 : f32
    %57 = vector.broadcast %cst_34 : f32 to vector<1x128xf32>
    %58 = arith.mulf %57, %56 : vector<1x128xf32>
    %59 = math.tanh %47 : vector<1x128xf32>
    %60 = arith.mulf %58, %59 : vector<1x128xf32>
    %61 = arith.index_cast %c0_i32_14 : i32 to index
    %c0_35 = arith.constant 0 : index
    %c0_36 = arith.constant 0 : index
    %62 = vector.load %arg10[%61, %c0_35, %c0_36] : memref<8x1x128xf32, #tpu.memory_space<vmem>>, vector<1x1x128xf32>
    %63 = vector.shape_cast %62 : vector<1x1x128xf32> to vector<1x128xf32>
    %64 = vector.shape_cast %60 : vector<1x128xf32> to vector<1x1x128xf32>
    tpu.vector_store %arg10[%61, %c0_35, %c0_36], %64 {strides = array<i32>} : memref<8x1x128xf32, #tpu.memory_space<vmem>>, vector<1x1x128xf32>,
    %c1_i32 = arith.constant 1 : i32
    %65 = arith.index_cast %c1_i32 : i32 to index
    %c0_37 = arith.constant 0 : index
    %c0_38 = arith.constant 0 : index
    %66 = vector.load %arg9[%65, %c0_37, %c0_38] : memref<8x1x512xf32, #tpu.memory_space<vmem>>, vector<1x1x512xf32>
    %67 = vector.shape_cast %66 : vector<1x1x512xf32> to vector<1x512xf32>
    %c0_39 = arith.constant 0 : index
    %c256_40 = arith.constant 256 : index
    %68 = vector.load %arg4[%c0_39, %c256_40] : memref<128x512xf32, #tpu.memory_space<vmem>>, vector<128x128xf32>
    %cst_41 = arith.constant dense<0.000000e+00> : vector<1x128xf32>
    %69 = tpu.matmul %60, %68, %cst_41 {dimension_numbers = #tpu.dot_dimension_numbers<[1], [0], [0], [1], [0, 0, 1, 1], [], []>} : vector<1x128xf32>, vector<128x128xf32>, vector<1x128xf32> -> vector<1x128xf32>
    %70 = vector.extract_strided_slice %67 {offsets = [0, 256], sizes = [1, 128], strides = [1, 1]} : vector<1x512xf32> to vector<1x128xf32>
    %71 = arith.addf %69, %70 : vector<1x128xf32>
    %72 = math.tanh %71 : vector<1x128xf32>
    %c0_42 = arith.constant 0 : index
    %c0_43 = arith.constant 0 : index
    %73 = vector.load %arg4[%c0_42, %c0_43] : memref<128x512xf32, #tpu.memory_space<vmem>>, vector<128x128xf32>
    %cst_44 = arith.constant dense<0.000000e+00> : vector<1x128xf32>
    %74 = tpu.matmul %60, %73, %cst_44 {dimension_numbers = #tpu.dot_dimension_numbers<[1], [0], [0], [1], [0, 0, 1, 1], [], []>} : vector<1x128xf32>, vector<128x128xf32>, vector<1x128xf32> -> vector<1x128xf32>
    %75 = vector.extract_strided_slice %67 {offsets = [0, 0], sizes = [1, 128], strides = [1, 1]} : vector<1x512xf32> to vector<1x128xf32>
    %76 = arith.addf %74, %75 : vector<1x128xf32>
    %cst_45 = arith.constant 5.000000e-01 : f32
    %77 = vector.broadcast %cst_45 : f32 to vector<1x128xf32>
    %78 = arith.mulf %77, %76 : vector<1x128xf32>
    %79 = math.tanh %78 : vector<1x128xf32>
    %cst_46 = arith.constant 1.000000e+00 : f32
    %80 = vector.broadcast %cst_46 : f32 to vector<1x128xf32>
    %81 = arith.addf %79, %80 : vector<1x128xf32>
    %cst_47 = arith.constant 5.000000e-01 : f32
    %82 = vector.broadcast %cst_47 : f32 to vector<1x128xf32>
    %83 = arith.mulf %82, %81 : vector<1x128xf32>
    %84 = arith.mulf %83, %72 : vector<1x128xf32>
    %c0_48 = arith.constant 0 : index
    %c128_49 = arith.constant 128 : index
    %85 = vector.load %arg4[%c0_48, %c128_49] : memref<128x512xf32, #tpu.memory_space<vmem>>, vector<128x128xf32>
    %cst_50 = arith.constant dense<0.000000e+00> : vector<1x128xf32>
    %86 = tpu.matmul %60, %85, %cst_50 {dimension_numbers = #tpu.dot_dimension_numbers<[1], [0], [0], [1], [0, 0, 1, 1], [], []>} : vector<1x128xf32>, vector<128x128xf32>, vector<1x128xf32> -> vector<1x128xf32>
    %87 = vector.extract_strided_slice %67 {offsets = [0, 128], sizes = [1, 128], strides = [1, 1]} : vector<1x512xf32> to vector<1x128xf32>
    %88 = arith.addf %86, %87 : vector<1x128xf32>
    %cst_51 = arith.constant 5.000000e-01 : f32
    %89 = vector.broadcast %cst_51 : f32 to vector<1x128xf32>
    %90 = arith.mulf %89, %88 : vector<1x128xf32>
    %91 = math.tanh %90 : vector<1x128xf32>
    %cst_52 = arith.constant 1.000000e+00 : f32
    %92 = vector.broadcast %cst_52 : f32 to vector<1x128xf32>
    %93 = arith.addf %91, %92 : vector<1x128xf32>
    %cst_53 = arith.constant 5.000000e-01 : f32
    %94 = vector.broadcast %cst_53 : f32 to vector<1x128xf32>
    %95 = arith.mulf %94, %93 : vector<1x128xf32>
    %96 = arith.mulf %95, %47 : vector<1x128xf32>
    %97 = arith.addf %96, %84 : vector<1x128xf32>
    %c0_54 = arith.constant 0 : index
    %c384_55 = arith.constant 384 : index
    %98 = vector.load %arg4[%c0_54, %c384_55] : memref<128x512xf32, #tpu.memory_space<vmem>>, vector<128x128xf32>
    %cst_56 = arith.constant dense<0.000000e+00> : vector<1x128xf32>
    %99 = tpu.matmul %60, %98, %cst_56 {dimension_numbers = #tpu.dot_dimension_numbers<[1], [0], [0], [1], [0, 0, 1, 1], [], []>} : vector<1x128xf32>, vector<128x128xf32>, vector<1x128xf32> -> vector<1x128xf32>
    %100 = vector.extract_strided_slice %67 {offsets = [0, 384], sizes = [1, 128], strides = [1, 1]} : vector<1x512xf32> to vector<1x128xf32>
    %101 = arith.addf %99, %100 : vector<1x128xf32>
    %cst_57 = arith.constant 5.000000e-01 : f32
    %102 = vector.broadcast %cst_57 : f32 to vector<1x128xf32>
    %103 = arith.mulf %102, %101 : vector<1x128xf32>
    %104 = math.tanh %103 : vector<1x128xf32>
    %cst_58 = arith.constant 1.000000e+00 : f32
    %105 = vector.broadcast %cst_58 : f32 to vector<1x128xf32>
    %106 = arith.addf %104, %105 : vector<1x128xf32>
    %cst_59 = arith.constant 5.000000e-01 : f32
    %107 = vector.broadcast %cst_59 : f32 to vector<1x128xf32>
    %108 = arith.mulf %107, %106 : vector<1x128xf32>
    %109 = math.tanh %97 : vector<1x128xf32>
    %110 = arith.mulf %108, %109 : vector<1x128xf32>
    %111 = arith.index_cast %c1_i32 : i32 to index
    %c0_60 = arith.constant 0 : index
    %c0_61 = arith.constant 0 : index
    %112 = vector.load %arg10[%111, %c0_60, %c0_61] : memref<8x1x128xf32, #tpu.memory_space<vmem>>, vector<1x1x128xf32>
    %113 = vector.shape_cast %112 : vector<1x1x128xf32> to vector<1x128xf32>
    %114 = vector.shape_cast %110 : vector<1x128xf32> to vector<1x1x128xf32>
    tpu.vector_store %arg10[%111, %c0_60, %c0_61], %114 {strides = array<i32>} : memref<8x1x128xf32, #tpu.memory_space<vmem>>, vector<1x1x128xf32>,
    %c2_i32 = arith.constant 2 : i32
    %115 = arith.index_cast %c2_i32 : i32 to index
    %c0_62 = arith.constant 0 : index
    %c0_63 = arith.constant 0 : index
    %116 = vector.load %arg9[%115, %c0_62, %c0_63] : memref<8x1x512xf32, #tpu.memory_space<vmem>>, vector<1x1x512xf32>
    %117 = vector.shape_cast %116 : vector<1x1x512xf32> to vector<1x512xf32>
    %c0_64 = arith.constant 0 : index
    %c256_65 = arith.constant 256 : index
    %118 = vector.load %arg4[%c0_64, %c256_65] : memref<128x512xf32, #tpu.memory_space<vmem>>, vector<128x128xf32>
    %cst_66 = arith.constant dense<0.000000e+00> : vector<1x128xf32>
    %119 = tpu.matmul %110, %118, %cst_66 {dimension_numbers = #tpu.dot_dimension_numbers<[1], [0], [0], [1], [0, 0, 1, 1], [], []>} : vector<1x128xf32>, vector<128x128xf32>, vector<1x128xf32> -> vector<1x128xf32>
    %120 = vector.extract_strided_slice %117 {offsets = [0, 256], sizes = [1, 128], strides = [1, 1]} : vector<1x512xf32> to vector<1x128xf32>
    %121 = arith.addf %119, %120 : vector<1x128xf32>
    %122 = math.tanh %121 : vector<1x128xf32>
    %c0_67 = arith.constant 0 : index
    %c0_68 = arith.constant 0 : index
    %123 = vector.load %arg4[%c0_67, %c0_68] : memref<128x512xf32, #tpu.memory_space<vmem>>, vector<128x128xf32>
    %cst_69 = arith.constant dense<0.000000e+00> : vector<1x128xf32>
    %124 = tpu.matmul %110, %123, %cst_69 {dimension_numbers = #tpu.dot_dimension_numbers<[1], [0], [0], [1], [0, 0, 1, 1], [], []>} : vector<1x128xf32>, vector<128x128xf32>, vector<1x128xf32> -> vector<1x128xf32>
    %125 = vector.extract_strided_slice %117 {offsets = [0, 0], sizes = [1, 128], strides = [1, 1]} : vector<1x512xf32> to vector<1x128xf32>
    %126 = arith.addf %124, %125 : vector<1x128xf32>
    %cst_70 = arith.constant 5.000000e-01 : f32
    %127 = vector.broadcast %cst_70 : f32 to vector<1x128xf32>
    %128 = arith.mulf %127, %126 : vector<1x128xf32>
    %129 = math.tanh %128 : vector<1x128xf32>
    %cst_71 = arith.constant 1.000000e+00 : f32
    %130 = vector.broadcast %cst_71 : f32 to vector<1x128xf32>
    %131 = arith.addf %129, %130 : vector<1x128xf32>
    %cst_72 = arith.constant 5.000000e-01 : f32
    %132 = vector.broadcast %cst_72 : f32 to vector<1x128xf32>
    %133 = arith.mulf %132, %131 : vector<1x128xf32>
    %134 = arith.mulf %133, %122 : vector<1x128xf32>
    %c0_73 = arith.constant 0 : index
    %c128_74 = arith.constant 128 : index
    %135 = vector.load %arg4[%c0_73, %c128_74] : memref<128x512xf32, #tpu.memory_space<vmem>>, vector<128x128xf32>
    %cst_75 = arith.constant dense<0.000000e+00> : vector<1x128xf32>
    %136 = tpu.matmul %110, %135, %cst_75 {dimension_numbers = #tpu.dot_dimension_numbers<[1], [0], [0], [1], [0, 0, 1, 1], [], []>} : vector<1x128xf32>, vector<128x128xf32>, vector<1x128xf32> -> vector<1x128xf32>
    %137 = vector.extract_strided_slice %117 {offsets = [0, 128], sizes = [1, 128], strides = [1, 1]} : vector<1x512xf32> to vector<1x128xf32>
    %138 = arith.addf %136, %137 : vector<1x128xf32>
    %cst_76 = arith.constant 5.000000e-01 : f32
    %139 = vector.broadcast %cst_76 : f32 to vector<1x128xf32>
    %140 = arith.mulf %139, %138 : vector<1x128xf32>
    %141 = math.tanh %140 : vector<1x128xf32>
    %cst_77 = arith.constant 1.000000e+00 : f32
    %142 = vector.broadcast %cst_77 : f32 to vector<1x128xf32>
    %143 = arith.addf %141, %142 : vector<1x128xf32>
    %cst_78 = arith.constant 5.000000e-01 : f32
    %144 = vector.broadcast %cst_78 : f32 to vector<1x128xf32>
    %145 = arith.mulf %144, %143 : vector<1x128xf32>
    %146 = arith.mulf %145, %97 : vector<1x128xf32>
    %147 = arith.addf %146, %134 : vector<1x128xf32>
    %c0_79 = arith.constant 0 : index
    %c384_80 = arith.constant 384 : index
    %148 = vector.load %arg4[%c0_79, %c384_80] : memref<128x512xf32, #tpu.memory_space<vmem>>, vector<128x128xf32>
    %cst_81 = arith.constant dense<0.000000e+00> : vector<1x128xf32>
    %149 = tpu.matmul %110, %148, %cst_81 {dimension_numbers = #tpu.dot_dimension_numbers<[1], [0], [0], [1], [0, 0, 1, 1], [], []>} : vector<1x128xf32>, vector<128x128xf32>, vector<1x128xf32> -> vector<1x128xf32>
    %150 = vector.extract_strided_slice %117 {offsets = [0, 384], sizes = [1, 128], strides = [1, 1]} : vector<1x512xf32> to vector<1x128xf32>
    %151 = arith.addf %149, %150 : vector<1x128xf32>
    %cst_82 = arith.constant 5.000000e-01 : f32
    %152 = vector.broadcast %cst_82 : f32 to vector<1x128xf32>
    %153 = arith.mulf %152, %151 : vector<1x128xf32>
    %154 = math.tanh %153 : vector<1x128xf32>
    %cst_83 = arith.constant 1.000000e+00 : f32
    %155 = vector.broadcast %cst_83 : f32 to vector<1x128xf32>
    %156 = arith.addf %154, %155 : vector<1x128xf32>
    %cst_84 = arith.constant 5.000000e-01 : f32
    %157 = vector.broadcast %cst_84 : f32 to vector<1x128xf32>
    %158 = arith.mulf %157, %156 : vector<1x128xf32>
    %159 = math.tanh %147 : vector<1x128xf32>
    %160 = arith.mulf %158, %159 : vector<1x128xf32>
    %161 = arith.index_cast %c2_i32 : i32 to index
    %c0_85 = arith.constant 0 : index
    %c0_86 = arith.constant 0 : index
    %162 = vector.load %arg10[%161, %c0_85, %c0_86] : memref<8x1x128xf32, #tpu.memory_space<vmem>>, vector<1x1x128xf32>
    %163 = vector.shape_cast %162 : vector<1x1x128xf32> to vector<1x128xf32>
    %164 = vector.shape_cast %160 : vector<1x128xf32> to vector<1x1x128xf32>
    tpu.vector_store %arg10[%161, %c0_85, %c0_86], %164 {strides = array<i32>} : memref<8x1x128xf32, #tpu.memory_space<vmem>>, vector<1x1x128xf32>,
    %c3_i32 = arith.constant 3 : i32
    %165 = arith.index_cast %c3_i32 : i32 to index
    %c0_87 = arith.constant 0 : index
    %c0_88 = arith.constant 0 : index
    %166 = vector.load %arg9[%165, %c0_87, %c0_88] : memref<8x1x512xf32, #tpu.memory_space<vmem>>, vector<1x1x512xf32>
    %167 = vector.shape_cast %166 : vector<1x1x512xf32> to vector<1x512xf32>
    %c0_89 = arith.constant 0 : index
    %c256_90 = arith.constant 256 : index
    %168 = vector.load %arg4[%c0_89, %c256_90] : memref<128x512xf32, #tpu.memory_space<vmem>>, vector<128x128xf32>
    %cst_91 = arith.constant dense<0.000000e+00> : vector<1x128xf32>
    %169 = tpu.matmul %160, %168, %cst_91 {dimension_numbers = #tpu.dot_dimension_numbers<[1], [0], [0], [1], [0, 0, 1, 1], [], []>} : vector<1x128xf32>, vector<128x128xf32>, vector<1x128xf32> -> vector<1x128xf32>
    %170 = vector.extract_strided_slice %167 {offsets = [0, 256], sizes = [1, 128], strides = [1, 1]} : vector<1x512xf32> to vector<1x128xf32>
    %171 = arith.addf %169, %170 : vector<1x128xf32>
    %172 = math.tanh %171 : vector<1x128xf32>
    %c0_92 = arith.constant 0 : index
    %c0_93 = arith.constant 0 : index
    %173 = vector.load %arg4[%c0_92, %c0_93] : memref<128x512xf32, #tpu.memory_space<vmem>>, vector<128x128xf32>
    %cst_94 = arith.constant dense<0.000000e+00> : vector<1x128xf32>
    %174 = tpu.matmul %160, %173, %cst_94 {dimension_numbers = #tpu.dot_dimension_numbers<[1], [0], [0], [1], [0, 0, 1, 1], [], []>} : vector<1x128xf32>, vector<128x128xf32>, vector<1x128xf32> -> vector<1x128xf32>
    %175 = vector.extract_strided_slice %167 {offsets = [0, 0], sizes = [1, 128], strides = [1, 1]} : vector<1x512xf32> to vector<1x128xf32>
    %176 = arith.addf %174, %175 : vector<1x128xf32>
    %cst_95 = arith.constant 5.000000e-01 : f32
    %177 = vector.broadcast %cst_95 : f32 to vector<1x128xf32>
    %178 = arith.mulf %177, %176 : vector<1x128xf32>
    %179 = math.tanh %178 : vector<1x128xf32>
    %cst_96 = arith.constant 1.000000e+00 : f32
    %180 = vector.broadcast %cst_96 : f32 to vector<1x128xf32>
    %181 = arith.addf %179, %180 : vector<1x128xf32>
    %cst_97 = arith.constant 5.000000e-01 : f32
    %182 = vector.broadcast %cst_97 : f32 to vector<1x128xf32>
    %183 = arith.mulf %182, %181 : vector<1x128xf32>
    %184 = arith.mulf %183, %172 : vector<1x128xf32>
    %c0_98 = arith.constant 0 : index
    %c128_99 = arith.constant 128 : index
    %185 = vector.load %arg4[%c0_98, %c128_99] : memref<128x512xf32, #tpu.memory_space<vmem>>, vector<128x128xf32>
    %cst_100 = arith.constant dense<0.000000e+00> : vector<1x128xf32>
    %186 = tpu.matmul %160, %185, %cst_100 {dimension_numbers = #tpu.dot_dimension_numbers<[1], [0], [0], [1], [0, 0, 1, 1], [], []>} : vector<1x128xf32>, vector<128x128xf32>, vector<1x128xf32> -> vector<1x128xf32>
    %187 = vector.extract_strided_slice %167 {offsets = [0, 128], sizes = [1, 128], strides = [1, 1]} : vector<1x512xf32> to vector<1x128xf32>
    %188 = arith.addf %186, %187 : vector<1x128xf32>
    %cst_101 = arith.constant 5.000000e-01 : f32
    %189 = vector.broadcast %cst_101 : f32 to vector<1x128xf32>
    %190 = arith.mulf %189, %188 : vector<1x128xf32>
    %191 = math.tanh %190 : vector<1x128xf32>
    %cst_102 = arith.constant 1.000000e+00 : f32
    %192 = vector.broadcast %cst_102 : f32 to vector<1x128xf32>
    %193 = arith.addf %191, %192 : vector<1x128xf32>
    %cst_103 = arith.constant 5.000000e-01 : f32
    %194 = vector.broadcast %cst_103 : f32 to vector<1x128xf32>
    %195 = arith.mulf %194, %193 : vector<1x128xf32>
    %196 = arith.mulf %195, %147 : vector<1x128xf32>
    %197 = arith.addf %196, %184 : vector<1x128xf32>
    %c0_104 = arith.constant 0 : index
    %c384_105 = arith.constant 384 : index
    %198 = vector.load %arg4[%c0_104, %c384_105] : memref<128x512xf32, #tpu.memory_space<vmem>>, vector<128x128xf32>
    %cst_106 = arith.constant dense<0.000000e+00> : vector<1x128xf32>
    %199 = tpu.matmul %160, %198, %cst_106 {dimension_numbers = #tpu.dot_dimension_numbers<[1], [0], [0], [1], [0, 0, 1, 1], [], []>} : vector<1x128xf32>, vector<128x128xf32>, vector<1x128xf32> -> vector<1x128xf32>
    %200 = vector.extract_strided_slice %167 {offsets = [0, 384], sizes = [1, 128], strides = [1, 1]} : vector<1x512xf32> to vector<1x128xf32>
    %201 = arith.addf %199, %200 : vector<1x128xf32>
    %cst_107 = arith.constant 5.000000e-01 : f32
    %202 = vector.broadcast %cst_107 : f32 to vector<1x128xf32>
    %203 = arith.mulf %202, %201 : vector<1x128xf32>
    %204 = math.tanh %203 : vector<1x128xf32>
    %cst_108 = arith.constant 1.000000e+00 : f32
    %205 = vector.broadcast %cst_108 : f32 to vector<1x128xf32>
    %206 = arith.addf %204, %205 : vector<1x128xf32>
    %cst_109 = arith.constant 5.000000e-01 : f32
    %207 = vector.broadcast %cst_109 : f32 to vector<1x128xf32>
    %208 = arith.mulf %207, %206 : vector<1x128xf32>
    %209 = math.tanh %197 : vector<1x128xf32>
    %210 = arith.mulf %208, %209 : vector<1x128xf32>
    %211 = arith.index_cast %c3_i32 : i32 to index
    %c0_110 = arith.constant 0 : index
    %c0_111 = arith.constant 0 : index
    %212 = vector.load %arg10[%211, %c0_110, %c0_111] : memref<8x1x128xf32, #tpu.memory_space<vmem>>, vector<1x1x128xf32>
    %213 = vector.shape_cast %212 : vector<1x1x128xf32> to vector<1x128xf32>
    %214 = vector.shape_cast %210 : vector<1x128xf32> to vector<1x1x128xf32>
    tpu.vector_store %arg10[%211, %c0_110, %c0_111], %214 {strides = array<i32>} : memref<8x1x128xf32, #tpu.memory_space<vmem>>, vector<1x1x128xf32>,
    %c4_i32 = arith.constant 4 : i32
    %215 = arith.index_cast %c4_i32 : i32 to index
    %c0_112 = arith.constant 0 : index
    %c0_113 = arith.constant 0 : index
    %216 = vector.load %arg9[%215, %c0_112, %c0_113] : memref<8x1x512xf32, #tpu.memory_space<vmem>>, vector<1x1x512xf32>
    %217 = vector.shape_cast %216 : vector<1x1x512xf32> to vector<1x512xf32>
    %c0_114 = arith.constant 0 : index
    %c256_115 = arith.constant 256 : index
    %218 = vector.load %arg4[%c0_114, %c256_115] : memref<128x512xf32, #tpu.memory_space<vmem>>, vector<128x128xf32>
    %cst_116 = arith.constant dense<0.000000e+00> : vector<1x128xf32>
    %219 = tpu.matmul %210, %218, %cst_116 {dimension_numbers = #tpu.dot_dimension_numbers<[1], [0], [0], [1], [0, 0, 1, 1], [], []>} : vector<1x128xf32>, vector<128x128xf32>, vector<1x128xf32> -> vector<1x128xf32>
    %220 = vector.extract_strided_slice %217 {offsets = [0, 256], sizes = [1, 128], strides = [1, 1]} : vector<1x512xf32> to vector<1x128xf32>
    %221 = arith.addf %219, %220 : vector<1x128xf32>
    %222 = math.tanh %221 : vector<1x128xf32>
    %c0_117 = arith.constant 0 : index
    %c0_118 = arith.constant 0 : index
    %223 = vector.load %arg4[%c0_117, %c0_118] : memref<128x512xf32, #tpu.memory_space<vmem>>, vector<128x128xf32>
    %cst_119 = arith.constant dense<0.000000e+00> : vector<1x128xf32>
    %224 = tpu.matmul %210, %223, %cst_119 {dimension_numbers = #tpu.dot_dimension_numbers<[1], [0], [0], [1], [0, 0, 1, 1], [], []>} : vector<1x128xf32>, vector<128x128xf32>, vector<1x128xf32> -> vector<1x128xf32>
    %225 = vector.extract_strided_slice %217 {offsets = [0, 0], sizes = [1, 128], strides = [1, 1]} : vector<1x512xf32> to vector<1x128xf32>
    %226 = arith.addf %224, %225 : vector<1x128xf32>
    %cst_120 = arith.constant 5.000000e-01 : f32
    %227 = vector.broadcast %cst_120 : f32 to vector<1x128xf32>
    %228 = arith.mulf %227, %226 : vector<1x128xf32>
    %229 = math.tanh %228 : vector<1x128xf32>
    %cst_121 = arith.constant 1.000000e+00 : f32
    %230 = vector.broadcast %cst_121 : f32 to vector<1x128xf32>
    %231 = arith.addf %229, %230 : vector<1x128xf32>
    %cst_122 = arith.constant 5.000000e-01 : f32
    %232 = vector.broadcast %cst_122 : f32 to vector<1x128xf32>
    %233 = arith.mulf %232, %231 : vector<1x128xf32>
    %234 = arith.mulf %233, %222 : vector<1x128xf32>
    %c0_123 = arith.constant 0 : index
    %c128_124 = arith.constant 128 : index
    %235 = vector.load %arg4[%c0_123, %c128_124] : memref<128x512xf32, #tpu.memory_space<vmem>>, vector<128x128xf32>
    %cst_125 = arith.constant dense<0.000000e+00> : vector<1x128xf32>
    %236 = tpu.matmul %210, %235, %cst_125 {dimension_numbers = #tpu.dot_dimension_numbers<[1], [0], [0], [1], [0, 0, 1, 1], [], []>} : vector<1x128xf32>, vector<128x128xf32>, vector<1x128xf32> -> vector<1x128xf32>
    %237 = vector.extract_strided_slice %217 {offsets = [0, 128], sizes = [1, 128], strides = [1, 1]} : vector<1x512xf32> to vector<1x128xf32>
    %238 = arith.addf %236, %237 : vector<1x128xf32>
    %cst_126 = arith.constant 5.000000e-01 : f32
    %239 = vector.broadcast %cst_126 : f32 to vector<1x128xf32>
    %240 = arith.mulf %239, %238 : vector<1x128xf32>
    %241 = math.tanh %240 : vector<1x128xf32>
    %cst_127 = arith.constant 1.000000e+00 : f32
    %242 = vector.broadcast %cst_127 : f32 to vector<1x128xf32>
    %243 = arith.addf %241, %242 : vector<1x128xf32>
    %cst_128 = arith.constant 5.000000e-01 : f32
    %244 = vector.broadcast %cst_128 : f32 to vector<1x128xf32>
    %245 = arith.mulf %244, %243 : vector<1x128xf32>
    %246 = arith.mulf %245, %197 : vector<1x128xf32>
    %247 = arith.addf %246, %234 : vector<1x128xf32>
    %c0_129 = arith.constant 0 : index
    %c384_130 = arith.constant 384 : index
    %248 = vector.load %arg4[%c0_129, %c384_130] : memref<128x512xf32, #tpu.memory_space<vmem>>, vector<128x128xf32>
    %cst_131 = arith.constant dense<0.000000e+00> : vector<1x128xf32>
    %249 = tpu.matmul %210, %248, %cst_131 {dimension_numbers = #tpu.dot_dimension_numbers<[1], [0], [0], [1], [0, 0, 1, 1], [], []>} : vector<1x128xf32>, vector<128x128xf32>, vector<1x128xf32> -> vector<1x128xf32>
    %250 = vector.extract_strided_slice %217 {offsets = [0, 384], sizes = [1, 128], strides = [1, 1]} : vector<1x512xf32> to vector<1x128xf32>
    %251 = arith.addf %249, %250 : vector<1x128xf32>
    %cst_132 = arith.constant 5.000000e-01 : f32
    %252 = vector.broadcast %cst_132 : f32 to vector<1x128xf32>
    %253 = arith.mulf %252, %251 : vector<1x128xf32>
    %254 = math.tanh %253 : vector<1x128xf32>
    %cst_133 = arith.constant 1.000000e+00 : f32
    %255 = vector.broadcast %cst_133 : f32 to vector<1x128xf32>
    %256 = arith.addf %254, %255 : vector<1x128xf32>
    %cst_134 = arith.constant 5.000000e-01 : f32
    %257 = vector.broadcast %cst_134 : f32 to vector<1x128xf32>
    %258 = arith.mulf %257, %256 : vector<1x128xf32>
    %259 = math.tanh %247 : vector<1x128xf32>
    %260 = arith.mulf %258, %259 : vector<1x128xf32>
    %261 = arith.index_cast %c4_i32 : i32 to index
    %c0_135 = arith.constant 0 : index
    %c0_136 = arith.constant 0 : index
    %262 = vector.load %arg10[%261, %c0_135, %c0_136] : memref<8x1x128xf32, #tpu.memory_space<vmem>>, vector<1x1x128xf32>
    %263 = vector.shape_cast %262 : vector<1x1x128xf32> to vector<1x128xf32>
    %264 = vector.shape_cast %260 : vector<1x128xf32> to vector<1x1x128xf32>
    tpu.vector_store %arg10[%261, %c0_135, %c0_136], %264 {strides = array<i32>} : memref<8x1x128xf32, #tpu.memory_space<vmem>>, vector<1x1x128xf32>,
    %c5_i32 = arith.constant 5 : i32
    %265 = arith.index_cast %c5_i32 : i32 to index
    %c0_137 = arith.constant 0 : index
    %c0_138 = arith.constant 0 : index
    %266 = vector.load %arg9[%265, %c0_137, %c0_138] : memref<8x1x512xf32, #tpu.memory_space<vmem>>, vector<1x1x512xf32>
    %267 = vector.shape_cast %266 : vector<1x1x512xf32> to vector<1x512xf32>
    %c0_139 = arith.constant 0 : index
    %c256_140 = arith.constant 256 : index
    %268 = vector.load %arg4[%c0_139, %c256_140] : memref<128x512xf32, #tpu.memory_space<vmem>>, vector<128x128xf32>
    %cst_141 = arith.constant dense<0.000000e+00> : vector<1x128xf32>
    %269 = tpu.matmul %260, %268, %cst_141 {dimension_numbers = #tpu.dot_dimension_numbers<[1], [0], [0], [1], [0, 0, 1, 1], [], []>} : vector<1x128xf32>, vector<128x128xf32>, vector<1x128xf32> -> vector<1x128xf32>
    %270 = vector.extract_strided_slice %267 {offsets = [0, 256], sizes = [1, 128], strides = [1, 1]} : vector<1x512xf32> to vector<1x128xf32>
    %271 = arith.addf %269, %270 : vector<1x128xf32>
    %272 = math.tanh %271 : vector<1x128xf32>
    %c0_142 = arith.constant 0 : index
    %c0_143 = arith.constant 0 : index
    %273 = vector.load %arg4[%c0_142, %c0_143] : memref<128x512xf32, #tpu.memory_space<vmem>>, vector<128x128xf32>
    %cst_144 = arith.constant dense<0.000000e+00> : vector<1x128xf32>
    %274 = tpu.matmul %260, %273, %cst_144 {dimension_numbers = #tpu.dot_dimension_numbers<[1], [0], [0], [1], [0, 0, 1, 1], [], []>} : vector<1x128xf32>, vector<128x128xf32>, vector<1x128xf32> -> vector<1x128xf32>
    %275 = vector.extract_strided_slice %267 {offsets = [0, 0], sizes = [1, 128], strides = [1, 1]} : vector<1x512xf32> to vector<1x128xf32>
    %276 = arith.addf %274, %275 : vector<1x128xf32>
    %cst_145 = arith.constant 5.000000e-01 : f32
    %277 = vector.broadcast %cst_145 : f32 to vector<1x128xf32>
    %278 = arith.mulf %277, %276 : vector<1x128xf32>
    %279 = math.tanh %278 : vector<1x128xf32>
    %cst_146 = arith.constant 1.000000e+00 : f32
    %280 = vector.broadcast %cst_146 : f32 to vector<1x128xf32>
    %281 = arith.addf %279, %280 : vector<1x128xf32>
    %cst_147 = arith.constant 5.000000e-01 : f32
    %282 = vector.broadcast %cst_147 : f32 to vector<1x128xf32>
    %283 = arith.mulf %282, %281 : vector<1x128xf32>
    %284 = arith.mulf %283, %272 : vector<1x128xf32>
    %c0_148 = arith.constant 0 : index
    %c128_149 = arith.constant 128 : index
    %285 = vector.load %arg4[%c0_148, %c128_149] : memref<128x512xf32, #tpu.memory_space<vmem>>, vector<128x128xf32>
    %cst_150 = arith.constant dense<0.000000e+00> : vector<1x128xf32>
    %286 = tpu.matmul %260, %285, %cst_150 {dimension_numbers = #tpu.dot_dimension_numbers<[1], [0], [0], [1], [0, 0, 1, 1], [], []>} : vector<1x128xf32>, vector<128x128xf32>, vector<1x128xf32> -> vector<1x128xf32>
    %287 = vector.extract_strided_slice %267 {offsets = [0, 128], sizes = [1, 128], strides = [1, 1]} : vector<1x512xf32> to vector<1x128xf32>
    %288 = arith.addf %286, %287 : vector<1x128xf32>
    %cst_151 = arith.constant 5.000000e-01 : f32
    %289 = vector.broadcast %cst_151 : f32 to vector<1x128xf32>
    %290 = arith.mulf %289, %288 : vector<1x128xf32>
    %291 = math.tanh %290 : vector<1x128xf32>
    %cst_152 = arith.constant 1.000000e+00 : f32
    %292 = vector.broadcast %cst_152 : f32 to vector<1x128xf32>
    %293 = arith.addf %291, %292 : vector<1x128xf32>
    %cst_153 = arith.constant 5.000000e-01 : f32
    %294 = vector.broadcast %cst_153 : f32 to vector<1x128xf32>
    %295 = arith.mulf %294, %293 : vector<1x128xf32>
    %296 = arith.mulf %295, %247 : vector<1x128xf32>
    %297 = arith.addf %296, %284 : vector<1x128xf32>
    %c0_154 = arith.constant 0 : index
    %c384_155 = arith.constant 384 : index
    %298 = vector.load %arg4[%c0_154, %c384_155] : memref<128x512xf32, #tpu.memory_space<vmem>>, vector<128x128xf32>
    %cst_156 = arith.constant dense<0.000000e+00> : vector<1x128xf32>
    %299 = tpu.matmul %260, %298, %cst_156 {dimension_numbers = #tpu.dot_dimension_numbers<[1], [0], [0], [1], [0, 0, 1, 1], [], []>} : vector<1x128xf32>, vector<128x128xf32>, vector<1x128xf32> -> vector<1x128xf32>
    %300 = vector.extract_strided_slice %267 {offsets = [0, 384], sizes = [1, 128], strides = [1, 1]} : vector<1x512xf32> to vector<1x128xf32>
    %301 = arith.addf %299, %300 : vector<1x128xf32>
    %cst_157 = arith.constant 5.000000e-01 : f32
    %302 = vector.broadcast %cst_157 : f32 to vector<1x128xf32>
    %303 = arith.mulf %302, %301 : vector<1x128xf32>
    %304 = math.tanh %303 : vector<1x128xf32>
    %cst_158 = arith.constant 1.000000e+00 : f32
    %305 = vector.broadcast %cst_158 : f32 to vector<1x128xf32>
    %306 = arith.addf %304, %305 : vector<1x128xf32>
    %cst_159 = arith.constant 5.000000e-01 : f32
    %307 = vector.broadcast %cst_159 : f32 to vector<1x128xf32>
    %308 = arith.mulf %307, %306 : vector<1x128xf32>
    %309 = math.tanh %297 : vector<1x128xf32>
    %310 = arith.mulf %308, %309 : vector<1x128xf32>
    %311 = arith.index_cast %c5_i32 : i32 to index
    %c0_160 = arith.constant 0 : index
    %c0_161 = arith.constant 0 : index
    %312 = vector.load %arg10[%311, %c0_160, %c0_161] : memref<8x1x128xf32, #tpu.memory_space<vmem>>, vector<1x1x128xf32>
    %313 = vector.shape_cast %312 : vector<1x1x128xf32> to vector<1x128xf32>
    %314 = vector.shape_cast %310 : vector<1x128xf32> to vector<1x1x128xf32>
    tpu.vector_store %arg10[%311, %c0_160, %c0_161], %314 {strides = array<i32>} : memref<8x1x128xf32, #tpu.memory_space<vmem>>, vector<1x1x128xf32>,
    %c6_i32 = arith.constant 6 : i32
    %315 = arith.index_cast %c6_i32 : i32 to index
    %c0_162 = arith.constant 0 : index
    %c0_163 = arith.constant 0 : index
    %316 = vector.load %arg9[%315, %c0_162, %c0_163] : memref<8x1x512xf32, #tpu.memory_space<vmem>>, vector<1x1x512xf32>
    %317 = vector.shape_cast %316 : vector<1x1x512xf32> to vector<1x512xf32>
    %c0_164 = arith.constant 0 : index
    %c256_165 = arith.constant 256 : index
    %318 = vector.load %arg4[%c0_164, %c256_165] : memref<128x512xf32, #tpu.memory_space<vmem>>, vector<128x128xf32>
    %cst_166 = arith.constant dense<0.000000e+00> : vector<1x128xf32>
    %319 = tpu.matmul %310, %318, %cst_166 {dimension_numbers = #tpu.dot_dimension_numbers<[1], [0], [0], [1], [0, 0, 1, 1], [], []>} : vector<1x128xf32>, vector<128x128xf32>, vector<1x128xf32> -> vector<1x128xf32>
    %320 = vector.extract_strided_slice %317 {offsets = [0, 256], sizes = [1, 128], strides = [1, 1]} : vector<1x512xf32> to vector<1x128xf32>
    %321 = arith.addf %319, %320 : vector<1x128xf32>
    %322 = math.tanh %321 : vector<1x128xf32>
    %c0_167 = arith.constant 0 : index
    %c0_168 = arith.constant 0 : index
    %323 = vector.load %arg4[%c0_167, %c0_168] : memref<128x512xf32, #tpu.memory_space<vmem>>, vector<128x128xf32>
    %cst_169 = arith.constant dense<0.000000e+00> : vector<1x128xf32>
    %324 = tpu.matmul %310, %323, %cst_169 {dimension_numbers = #tpu.dot_dimension_numbers<[1], [0], [0], [1], [0, 0, 1, 1], [], []>} : vector<1x128xf32>, vector<128x128xf32>, vector<1x128xf32> -> vector<1x128xf32>
    %325 = vector.extract_strided_slice %317 {offsets = [0, 0], sizes = [1, 128], strides = [1, 1]} : vector<1x512xf32> to vector<1x128xf32>
    %326 = arith.addf %324, %325 : vector<1x128xf32>
    %cst_170 = arith.constant 5.000000e-01 : f32
    %327 = vector.broadcast %cst_170 : f32 to vector<1x128xf32>
    %328 = arith.mulf %327, %326 : vector<1x128xf32>
    %329 = math.tanh %328 : vector<1x128xf32>
    %cst_171 = arith.constant 1.000000e+00 : f32
    %330 = vector.broadcast %cst_171 : f32 to vector<1x128xf32>
    %331 = arith.addf %329, %330 : vector<1x128xf32>
    %cst_172 = arith.constant 5.000000e-01 : f32
    %332 = vector.broadcast %cst_172 : f32 to vector<1x128xf32>
    %333 = arith.mulf %332, %331 : vector<1x128xf32>
    %334 = arith.mulf %333, %322 : vector<1x128xf32>
    %c0_173 = arith.constant 0 : index
    %c128_174 = arith.constant 128 : index
    %335 = vector.load %arg4[%c0_173, %c128_174] : memref<128x512xf32, #tpu.memory_space<vmem>>, vector<128x128xf32>
    %cst_175 = arith.constant dense<0.000000e+00> : vector<1x128xf32>
    %336 = tpu.matmul %310, %335, %cst_175 {dimension_numbers = #tpu.dot_dimension_numbers<[1], [0], [0], [1], [0, 0, 1, 1], [], []>} : vector<1x128xf32>, vector<128x128xf32>, vector<1x128xf32> -> vector<1x128xf32>
    %337 = vector.extract_strided_slice %317 {offsets = [0, 128], sizes = [1, 128], strides = [1, 1]} : vector<1x512xf32> to vector<1x128xf32>
    %338 = arith.addf %336, %337 : vector<1x128xf32>
    %cst_176 = arith.constant 5.000000e-01 : f32
    %339 = vector.broadcast %cst_176 : f32 to vector<1x128xf32>
    %340 = arith.mulf %339, %338 : vector<1x128xf32>
    %341 = math.tanh %340 : vector<1x128xf32>
    %cst_177 = arith.constant 1.000000e+00 : f32
    %342 = vector.broadcast %cst_177 : f32 to vector<1x128xf32>
    %343 = arith.addf %341, %342 : vector<1x128xf32>
    %cst_178 = arith.constant 5.000000e-01 : f32
    %344 = vector.broadcast %cst_178 : f32 to vector<1x128xf32>
    %345 = arith.mulf %344, %343 : vector<1x128xf32>
    %346 = arith.mulf %345, %297 : vector<1x128xf32>
    %347 = arith.addf %346, %334 : vector<1x128xf32>
    %c0_179 = arith.constant 0 : index
    %c384_180 = arith.constant 384 : index
    %348 = vector.load %arg4[%c0_179, %c384_180] : memref<128x512xf32, #tpu.memory_space<vmem>>, vector<128x128xf32>
    %cst_181 = arith.constant dense<0.000000e+00> : vector<1x128xf32>
    %349 = tpu.matmul %310, %348, %cst_181 {dimension_numbers = #tpu.dot_dimension_numbers<[1], [0], [0], [1], [0, 0, 1, 1], [], []>} : vector<1x128xf32>, vector<128x128xf32>, vector<1x128xf32> -> vector<1x128xf32>
    %350 = vector.extract_strided_slice %317 {offsets = [0, 384], sizes = [1, 128], strides = [1, 1]} : vector<1x512xf32> to vector<1x128xf32>
    %351 = arith.addf %349, %350 : vector<1x128xf32>
    %cst_182 = arith.constant 5.000000e-01 : f32
    %352 = vector.broadcast %cst_182 : f32 to vector<1x128xf32>
    %353 = arith.mulf %352, %351 : vector<1x128xf32>
    %354 = math.tanh %353 : vector<1x128xf32>
    %cst_183 = arith.constant 1.000000e+00 : f32
    %355 = vector.broadcast %cst_183 : f32 to vector<1x128xf32>
    %356 = arith.addf %354, %355 : vector<1x128xf32>
    %cst_184 = arith.constant 5.000000e-01 : f32
    %357 = vector.broadcast %cst_184 : f32 to vector<1x128xf32>
    %358 = arith.mulf %357, %356 : vector<1x128xf32>
    %359 = math.tanh %347 : vector<1x128xf32>
    %360 = arith.mulf %358, %359 : vector<1x128xf32>
    %361 = arith.index_cast %c6_i32 : i32 to index
    %c0_185 = arith.constant 0 : index
    %c0_186 = arith.constant 0 : index
    %362 = vector.load %arg10[%361, %c0_185, %c0_186] : memref<8x1x128xf32, #tpu.memory_space<vmem>>, vector<1x1x128xf32>
    %363 = vector.shape_cast %362 : vector<1x1x128xf32> to vector<1x128xf32>
    %364 = vector.shape_cast %360 : vector<1x128xf32> to vector<1x1x128xf32>
    tpu.vector_store %arg10[%361, %c0_185, %c0_186], %364 {strides = array<i32>} : memref<8x1x128xf32, #tpu.memory_space<vmem>>, vector<1x1x128xf32>,
    %c7_i32 = arith.constant 7 : i32
    %365 = arith.index_cast %c7_i32 : i32 to index
    %c0_187 = arith.constant 0 : index
    %c0_188 = arith.constant 0 : index
    %366 = vector.load %arg9[%365, %c0_187, %c0_188] : memref<8x1x512xf32, #tpu.memory_space<vmem>>, vector<1x1x512xf32>
    %367 = vector.shape_cast %366 : vector<1x1x512xf32> to vector<1x512xf32>
    %c0_189 = arith.constant 0 : index
    %c256_190 = arith.constant 256 : index
    %368 = vector.load %arg4[%c0_189, %c256_190] : memref<128x512xf32, #tpu.memory_space<vmem>>, vector<128x128xf32>
    %cst_191 = arith.constant dense<0.000000e+00> : vector<1x128xf32>
    %369 = tpu.matmul %360, %368, %cst_191 {dimension_numbers = #tpu.dot_dimension_numbers<[1], [0], [0], [1], [0, 0, 1, 1], [], []>} : vector<1x128xf32>, vector<128x128xf32>, vector<1x128xf32> -> vector<1x128xf32>
    %370 = vector.extract_strided_slice %367 {offsets = [0, 256], sizes = [1, 128], strides = [1, 1]} : vector<1x512xf32> to vector<1x128xf32>
    %371 = arith.addf %369, %370 : vector<1x128xf32>
    %372 = math.tanh %371 : vector<1x128xf32>
    %c0_192 = arith.constant 0 : index
    %c0_193 = arith.constant 0 : index
    %373 = vector.load %arg4[%c0_192, %c0_193] : memref<128x512xf32, #tpu.memory_space<vmem>>, vector<128x128xf32>
    %cst_194 = arith.constant dense<0.000000e+00> : vector<1x128xf32>
    %374 = tpu.matmul %360, %373, %cst_194 {dimension_numbers = #tpu.dot_dimension_numbers<[1], [0], [0], [1], [0, 0, 1, 1], [], []>} : vector<1x128xf32>, vector<128x128xf32>, vector<1x128xf32> -> vector<1x128xf32>
    %375 = vector.extract_strided_slice %367 {offsets = [0, 0], sizes = [1, 128], strides = [1, 1]} : vector<1x512xf32> to vector<1x128xf32>
    %376 = arith.addf %374, %375 : vector<1x128xf32>
    %cst_195 = arith.constant 5.000000e-01 : f32
    %377 = vector.broadcast %cst_195 : f32 to vector<1x128xf32>
    %378 = arith.mulf %377, %376 : vector<1x128xf32>
    %379 = math.tanh %378 : vector<1x128xf32>
    %cst_196 = arith.constant 1.000000e+00 : f32
    %380 = vector.broadcast %cst_196 : f32 to vector<1x128xf32>
    %381 = arith.addf %379, %380 : vector<1x128xf32>
    %cst_197 = arith.constant 5.000000e-01 : f32
    %382 = vector.broadcast %cst_197 : f32 to vector<1x128xf32>
    %383 = arith.mulf %382, %381 : vector<1x128xf32>
    %384 = arith.mulf %383, %372 : vector<1x128xf32>
    %c0_198 = arith.constant 0 : index
    %c128_199 = arith.constant 128 : index
    %385 = vector.load %arg4[%c0_198, %c128_199] : memref<128x512xf32, #tpu.memory_space<vmem>>, vector<128x128xf32>
    %cst_200 = arith.constant dense<0.000000e+00> : vector<1x128xf32>
    %386 = tpu.matmul %360, %385, %cst_200 {dimension_numbers = #tpu.dot_dimension_numbers<[1], [0], [0], [1], [0, 0, 1, 1], [], []>} : vector<1x128xf32>, vector<128x128xf32>, vector<1x128xf32> -> vector<1x128xf32>
    %387 = vector.extract_strided_slice %367 {offsets = [0, 128], sizes = [1, 128], strides = [1, 1]} : vector<1x512xf32> to vector<1x128xf32>
    %388 = arith.addf %386, %387 : vector<1x128xf32>
    %cst_201 = arith.constant 5.000000e-01 : f32
    %389 = vector.broadcast %cst_201 : f32 to vector<1x128xf32>
    %390 = arith.mulf %389, %388 : vector<1x128xf32>
    %391 = math.tanh %390 : vector<1x128xf32>
    %cst_202 = arith.constant 1.000000e+00 : f32
    %392 = vector.broadcast %cst_202 : f32 to vector<1x128xf32>
    %393 = arith.addf %391, %392 : vector<1x128xf32>
    %cst_203 = arith.constant 5.000000e-01 : f32
    %394 = vector.broadcast %cst_203 : f32 to vector<1x128xf32>
    %395 = arith.mulf %394, %393 : vector<1x128xf32>
    %396 = arith.mulf %395, %347 : vector<1x128xf32>
    %397 = arith.addf %396, %384 : vector<1x128xf32>
    %c0_204 = arith.constant 0 : index
    %c384_205 = arith.constant 384 : index
    %398 = vector.load %arg4[%c0_204, %c384_205] : memref<128x512xf32, #tpu.memory_space<vmem>>, vector<128x128xf32>
    %cst_206 = arith.constant dense<0.000000e+00> : vector<1x128xf32>
    %399 = tpu.matmul %360, %398, %cst_206 {dimension_numbers = #tpu.dot_dimension_numbers<[1], [0], [0], [1], [0, 0, 1, 1], [], []>} : vector<1x128xf32>, vector<128x128xf32>, vector<1x128xf32> -> vector<1x128xf32>
    %400 = vector.extract_strided_slice %367 {offsets = [0, 384], sizes = [1, 128], strides = [1, 1]} : vector<1x512xf32> to vector<1x128xf32>
    %401 = arith.addf %399, %400 : vector<1x128xf32>
    %cst_207 = arith.constant 5.000000e-01 : f32
    %402 = vector.broadcast %cst_207 : f32 to vector<1x128xf32>
    %403 = arith.mulf %402, %401 : vector<1x128xf32>
    %404 = math.tanh %403 : vector<1x128xf32>
    %cst_208 = arith.constant 1.000000e+00 : f32
    %405 = vector.broadcast %cst_208 : f32 to vector<1x128xf32>
    %406 = arith.addf %404, %405 : vector<1x128xf32>
    %cst_209 = arith.constant 5.000000e-01 : f32
    %407 = vector.broadcast %cst_209 : f32 to vector<1x128xf32>
    %408 = arith.mulf %407, %406 : vector<1x128xf32>
    %409 = math.tanh %397 : vector<1x128xf32>
    %410 = arith.mulf %408, %409 : vector<1x128xf32>
    %411 = arith.index_cast %c7_i32 : i32 to index
    %c0_210 = arith.constant 0 : index
    %c0_211 = arith.constant 0 : index
    %412 = vector.load %arg10[%411, %c0_210, %c0_211] : memref<8x1x128xf32, #tpu.memory_space<vmem>>, vector<1x1x128xf32>
    %413 = vector.shape_cast %412 : vector<1x1x128xf32> to vector<1x128xf32>
    %414 = vector.shape_cast %410 : vector<1x128xf32> to vector<1x1x128xf32>
    tpu.vector_store %arg10[%411, %c0_210, %c0_211], %414 {strides = array<i32>} : memref<8x1x128xf32, #tpu.memory_space<vmem>>, vector<1x1x128xf32>,
    %c8_i32 = arith.constant 8 : i32
    %c0_212 = arith.constant 0 : index
    %c0_213 = arith.constant 0 : index
    %415 = vector.load %arg11[%c0_212, %c0_213] : memref<1x128xf32, #tpu.memory_space<vmem>>, vector<1x128xf32>
    tpu.vector_store %arg11[%c0_212, %c0_213], %410 {strides = array<i32>} : memref<1x128xf32, #tpu.memory_space<vmem>>, vector<1x128xf32>,
    %c0_214 = arith.constant 0 : index
    %c0_215 = arith.constant 0 : index
    %416 = vector.load %arg12[%c0_214, %c0_215] : memref<1x128xf32, #tpu.memory_space<vmem>>, vector<1x128xf32>
    tpu.vector_store %arg12[%c0_214, %c0_215], %397 {strides = array<i32>} : memref<1x128xf32, #tpu.memory_space<vmem>>, vector<1x128xf32>,
    %c0_216 = arith.constant 0 : index
    %c0_217 = arith.constant 0 : index
    %c0_218 = arith.constant 0 : index
    %417 = vector.load %arg10[%c0_216, %c0_217, %c0_218] : memref<8x1x128xf32, #tpu.memory_space<vmem>>, vector<8x1x128xf32>
    %418 = vector.shape_cast %417 : vector<8x1x128xf32> to vector<8x128xf32>
    %c0_219 = arith.constant 0 : index
    %c0_220 = arith.constant 0 : index
    %419 = vector.load %arg6[%c0_219, %c0_220] : memref<128x256xf32, #tpu.memory_space<vmem>>, vector<128x256xf32>
    %cst_221 = arith.constant dense<0.000000e+00> : vector<8x256xf32>
    %420 = tpu.matmul %418, %419, %cst_221 {dimension_numbers = #tpu.dot_dimension_numbers<[1], [0], [0], [1], [0, 0, 1, 1], [], []>} : vector<8x128xf32>, vector<128x256xf32>, vector<8x256xf32> -> vector<8x256xf32>
    %c0_222 = arith.constant 0 : index
    %c0_223 = arith.constant 0 : index
    %421 = vector.load %arg7[%c0_222, %c0_223] : memref<1x256xf32, #tpu.memory_space<vmem>>, vector<1x256xf32>
    %422 = vector.broadcast %421 : vector<1x256xf32> to vector<8x256xf32>
    %423 = arith.addf %420, %422 : vector<8x256xf32>
    %424 = vector.shape_cast %423 : vector<8x256xf32> to vector<8x1x256xf32>
    %425 = tpu.transpose %424, [1, 0, 2] : vector<8x1x256xf32> -> vector<1x8x256xf32>
    %c0_224 = arith.constant 0 : index
    %c0_225 = arith.constant 0 : index
    %c0_226 = arith.constant 0 : index
    %426 = vector.load %arg8[%c0_224, %c0_225, %c0_226] : memref<1x8x256xf32, #tpu.memory_space<vmem>>, vector<1x8x256xf32>
    tpu.vector_store %arg8[%c0_224, %c0_225, %c0_226], %425 {strides = array<i32>} : memref<1x8x256xf32, #tpu.memory_space<vmem>>, vector<1x8x256xf32>,
    return
  }
  func.func @transform_0(%arg0: i32, %arg1: i32) -> (i32, i32, i32) {
    %c0_i32 = arith.constant 0 : i32
    %c0_i32_0 = arith.constant 0 : i32
    return %arg0, %arg1, %c0_i32 : i32, i32, i32
  }
  func.func @transform_1(%arg0: i32, %arg1: i32) -> (i32, i32) {
    %c0_i32 = arith.constant 0 : i32
    %c0_i32_0 = arith.constant 0 : i32
    %c0_i32_1 = arith.constant 0 : i32
    return %c0_i32, %c0_i32_0 : i32, i32
  }
  func.func @transform_2(%arg0: i32, %arg1: i32) -> (i32, i32) {
    %c0_i32 = arith.constant 0 : i32
    %c0_i32_0 = arith.constant 0 : i32
    %c0_i32_1 = arith.constant 0 : i32
    return %c0_i32, %c0_i32_0 : i32, i32
  }
  func.func @transform_3(%arg0: i32, %arg1: i32) -> (i32, i32) {
    %c0_i32 = arith.constant 0 : i32
    %c0_i32_0 = arith.constant 0 : i32
    %c0_i32_1 = arith.constant 0 : i32
    return %c0_i32, %c0_i32_0 : i32, i32
  }
  func.func @transform_4(%arg0: i32, %arg1: i32) -> (i32, i32) {
    %c0_i32 = arith.constant 0 : i32
    %c0_i32_0 = arith.constant 0 : i32
    %c0_i32_1 = arith.constant 0 : i32
    return %c0_i32, %c0_i32_0 : i32, i32
  }
  func.func @transform_5(%arg0: i32, %arg1: i32) -> (i32, i32) {
    %c0_i32 = arith.constant 0 : i32
    %c0_i32_0 = arith.constant 0 : i32
    %c0_i32_1 = arith.constant 0 : i32
    return %c0_i32, %c0_i32_0 : i32, i32
  }
  func.func @transform_6(%arg0: i32, %arg1: i32) -> (i32, i32, i32) {
    %c0_i32 = arith.constant 0 : i32
    %c0_i32_0 = arith.constant 0 : i32
    return %arg0, %arg1, %c0_i32 : i32, i32, i32
  }
}

</mosaic_0001>

<llo_original>
// kernel: tpu_custom_call.1
$region0: #{tpu_custom_call.1}
  #allocation0 [shape = 'u32[]', space=smem, size = 0x4, offset = 0x4, fixed_abs, tag = 'smem constant byte address 0x4 - core index']
  #allocation1 [shape = 'u32[144,128]{1,0:T(1,128)}', space=vmem, size = 0x12000, scoped, tag = 'internal scratch']
  #allocation2 [shape = 'f32[8,1,512]{2,1,0:T(1,128)}', space=vmem, size = 0x4000, scoped, tag = 'scratch operand']
  #allocation3 [shape = 'f32[8,1,128]{2,1,0:T(1,128)}', space=vmem, size = 0x1000, scoped, tag = 'scratch operand']
  #allocation4 [shape = 'f32[1,128]{1,0:T(1,128)}', space=vmem, size = 0x200, scoped, tag = 'scratch operand']
  #allocation5 [shape = 'f32[1,128]{1,0:T(1,128)}', space=vmem, size = 0x200, scoped, tag = 'scratch operand']
  %s0 = inlined_call_operand.hbm [shape: f32[2,8,256], index: 0, kind: input, shape index: {}]
  %s1 = inlined_call_operand.hbm [shape: f32[256,512], index: 1, kind: input, shape index: {}]
  %s2 = inlined_call_operand.hbm [shape: f32[128,512], index: 2, kind: input, shape index: {}]
  %s3 = inlined_call_operand.vmem [shape: f32[1,512], index: 3, kind: input, shape index: {}]
  %s4 = inlined_call_operand.hbm [shape: f32[128,256], index: 4, kind: input, shape index: {}]
  %s5 = inlined_call_operand.vmem [shape: f32[1,256], index: 5, kind: input, shape index: {}]
  %s6 = inlined_call_operand.hbm [shape: f32[2,8,256], index: 6, kind: output, shape index: {}]
  %s7 = sld [smem:[#allocation0]]
  $region77: #{tpu_custom_call.1} parent=0
    _
  %s9 = ssub.s32 1, %s7
  %s10 = scalar_select 0, %s9, %s7
  $region1: #{tpu_custom_call.1} parent=0
    #allocation6 [shape = 'u8[16384]{0}', space=vmem, size = 0x4000, scoped, tag = 'input window, operand 0']
    #allocation7 [shape = 's32[2]{0}', space=sflag, size = 0x8, scoped, tag = 'scoped memory for tpu_custom_call.1']
    #allocation8 [shape = 's32[2]{0}', space=sflag, size = 0x8, scoped, tag = 'scoped memory for tpu_custom_call.1']
    #allocation9 [shape = 'u8[524288]{0}', space=vmem, size = 0x80000, scoped, tag = 'input window, operand 1, single buffered']
    #allocation10 [shape = 's32[1]{0}', space=sflag, size = 0x4, scoped, tag = 'scoped memory for tpu_custom_call.1']
    #allocation11 [shape = 'u8[262144]{0}', space=vmem, size = 0x40000, scoped, tag = 'input window, operand 2, single buffered']
    #allocation12 [shape = 'u8[131072]{0}', space=vmem, size = 0x20000, scoped, tag = 'input window, operand 4, single buffered']
    #allocation13 [shape = 's32[1]{0}', space=sflag, size = 0x4, scoped, tag = 'scoped memory for tpu_custom_call.1']
    #allocation14 [shape = 'u8[16384]{0}', space=vmem, size = 0x4000, scoped, tag = 'output window, operand 0']
    %11 = vsyncpa [#allocation7], 0
    %s12 = scalar_lea.sflag [#allocation7], 1
    %13 = vsyncpa %s12, 0
    %14 = vsyncpa [#allocation10], 0
    %15 = vsyncpa [#allocation13], 0
    %16 = vsyncpa [#allocation8], 0
    %s17 = scalar_lea.sflag [#allocation8], 1
    %18 = vsyncpa %s17, 0
    loop: start=0, step=1, limit=4
    $region2: #{tpu_custom_call.1} parent=1 // loop_pre_header
      _
    $region3: #{tpu_custom_call.1} parent=1 // loop_header
      %s20 = sphi 0, %s24
      %p21 = scmp.ge.s32.totalorder %s20, 4
      %s27 = sphi 0, %s39
      %s28 = sphi 0, %s35
      %s29 = sphi 0, %s27
      %s30 = sphi 0, %s28
      %s31 = sphi 0, %s29
      %s32 = sphi 0, %s30
      %s44 = sphi 0, %s46
      %s47 = sphi 0, %s44
      %s48 = sphi 0, %s47
      %s64 = sphi 0, %s48
      %s68 = sphi 0, %s68
      %s70 = sphi 0, %s68
      %s71 = sphi 0, %s70
      %s85 = sphi 0, %s71
      %s89 = sphi 0, %s89
      %s91 = sphi 0, %s89
      %s92 = sphi 0, %s91
      %s106 = sphi 0, %s92
      %s110 = sphi 0, %s110
      %s112 = sphi 0, %s110
      %s113 = sphi 0, %s112
      %s127 = sphi 0, %s113
      %s131 = sphi 0, %s131
      %s133 = sphi 0, %s131
      %s134 = sphi 0, %s133
      %s148 = sphi 0, %s134
      %s152 = sphi 0, %s152
      %s154 = sphi 0, %s152
      %s155 = sphi 0, %s154
      %s169 = sphi 0, %s155
      %s177 = sphi 0, %s179
      %s180 = sphi 0, %s177
      %s181 = sphi 0, %s180
      %s197 = sphi 0, %s181
    $region4: #{tpu_custom_call.1} parent=1 // loop_header_branch
      %23 = sbr.rel (%p21) target = $region8
    $region5: #{tpu_custom_call.1} parent=1 // loop_body
      %s25 = ssub.s32 %s20, 1
      %s26 = ssub.s32 %s20, 2
      %s33 = sadd.s32 1, %s28
      %p34 = scmp.ge.s32.totalorder %s33, 1
      %s35 = scalar_select %p34, 0, %s33
      %s36 = sadd.s32 1, %s27
      %s37 = scalar_select %p34, %s36, %s27
      %p38 = scmp.ge.s32.totalorder %s37, 2
      %s39 = scalar_select %p38, 0, %s37
      %s40 = ssub.s32 %s27, %s39
      %s41 = ssub.s32 %s28, %s35
      %s42 = sor.u32 %s40, %s41
      %p43 = scmp.eq.s32.totalorder %s42, 0
      %s45 = sadd.s32 %s44, 1
      %s46 = scalar_select %p43, %s44, %s45
      %p49 = pneg %p43
      %p50 = scmp.eq.s32.totalorder %s20, 1
      %p51 = por %p49, %p50
      %p52 = scmp.ne.s32.totalorder %s44, %s47
      %p53 = scmp.eq.s32.totalorder %s20, 0
      %p54 = por %p52, %p53
      %p55 = scmp.ne.s32.totalorder %s44, %s47
      %p56 = scmp.eq.s32.totalorder %s25, 1
      %p57 = por %p55, %p56
      %p58 = scmp.ne.s32.totalorder %s47, %s48
      %p59 = scmp.eq.s32.totalorder %s25, 0
      %p60 = por %p58, %p59
      %p61 = scmp.ne.s32.totalorder %s47, %s48
      %p62 = scmp.eq.s32.totalorder %s26, 1
      %p63 = por %p61, %p62
      %p65 = scmp.ne.s32.totalorder %s48, %s64
      %p66 = scmp.eq.s32.totalorder %s26, 0
      %p67 = por %p65, %p66
      %s69 = sadd.s32 %s68, 1
      %p72 = scmp.eq.s32.totalorder %s20, 1
      %p73 = scmp.ne.s32.totalorder %s68, %s70
      %p74 = scmp.eq.s32.totalorder %s20, 0
      %p75 = por %p73, %p74
      %p76 = scmp.ne.s32.totalorder %s68, %s70
      %p77 = scmp.eq.s32.totalorder %s25, 1
      %p78 = por %p76, %p77
      %p79 = scmp.ne.s32.totalorder %s70, %s71
      %p80 = scmp.eq.s32.totalorder %s25, 0
      %p81 = por %p79, %p80
      %p82 = scmp.ne.s32.totalorder %s70, %s71
      %p83 = scmp.eq.s32.totalorder %s26, 1
      %p84 = por %p82, %p83
      %p86 = scmp.ne.s32.totalorder %s71, %s85
      %p87 = scmp.eq.s32.totalorder %s26, 0
      %p88 = por %p86, %p87
      %s90 = sadd.s32 %s89, 1
      %p93 = scmp.eq.s32.totalorder %s20, 1
      %p94 = scmp.ne.s32.totalorder %s89, %s91
      %p95 = scmp.eq.s32.totalorder %s20, 0
      %p96 = por %p94, %p95
      %p97 = scmp.ne.s32.totalorder %s89, %s91
      %p98 = scmp.eq.s32.totalorder %s25, 1
      %p99 = por %p97, %p98
      %p100 = scmp.ne.s32.totalorder %s91, %s92
      %p101 = scmp.eq.s32.totalorder %s25, 0
      %p102 = por %p100, %p101
      %p103 = scmp.ne.s32.totalorder %s91, %s92
      %p104 = scmp.eq.s32.totalorder %s26, 1
      %p105 = por %p103, %p104
      %p107 = scmp.ne.s32.totalorder %s92, %s106
      %p108 = scmp.eq.s32.totalorder %s26, 0
      %p109 = por %p107, %p108
      %s111 = sadd.s32 %s110, 1
      %p114 = scmp.eq.s32.totalorder %s20, 1
      %p115 = scmp.ne.s32.totalorder %s110, %s112
      %p116 = scmp.eq.s32.totalorder %s20, 0
      %p117 = por %p115, %p116
      %p118 = scmp.ne.s32.totalorder %s110, %s112
      %p119 = scmp.eq.s32.totalorder %s25, 1
      %p120 = por %p118, %p119
      %p121 = scmp.ne.s32.totalorder %s112, %s113
      %p122 = scmp.eq.s32.totalorder %s25, 0
      %p123 = por %p121, %p122
      %p124 = scmp.ne.s32.totalorder %s112, %s113
      %p125 = scmp.eq.s32.totalorder %s26, 1
      %p126 = por %p124, %p125
      %p128 = scmp.ne.s32.totalorder %s113, %s127
      %p129 = scmp.eq.s32.totalorder %s26, 0
      %p130 = por %p128, %p129
      %s132 = sadd.s32 %s131, 1
      %p135 = scmp.eq.s32.totalorder %s20, 1
      %p136 = scmp.ne.s32.totalorder %s131, %s133
      %p137 = scmp.eq.s32.totalorder %s20, 0
      %p138 = por %p136, %p137
      %p139 = scmp.ne.s32.totalorder %s131, %s133
      %p140 = scmp.eq.s32.totalorder %s25, 1
      %p141 = por %p139, %p140
      %p142 = scmp.ne.s32.totalorder %s133, %s134
      %p143 = scmp.eq.s32.totalorder %s25, 0
      %p144 = por %p142, %p143
      %p145 = scmp.ne.s32.totalorder %s133, %s134
      %p146 = scmp.eq.s32.totalorder %s26, 1
      %p147 = por %p145, %p146
      %p149 = scmp.ne.s32.totalorder %s134, %s148
      %p150 = scmp.eq.s32.totalorder %s26, 0
      %p151 = por %p149, %p150
      %s153 = sadd.s32 %s152, 1
      %p156 = scmp.eq.s32.totalorder %s20, 1
      %p157 = scmp.ne.s32.totalorder %s152, %s154
      %p158 = scmp.eq.s32.totalorder %s20, 0
      %p159 = por %p157, %p158
      %p160 = scmp.ne.s32.totalorder %s152, %s154
      %p161 = scmp.eq.s32.totalorder %s25, 1
      %p162 = por %p160, %p161
      %p163 = scmp.ne.s32.totalorder %s154, %s155
      %p164 = scmp.eq.s32.totalorder %s25, 0
      %p165 = por %p163, %p164
      %p166 = scmp.ne.s32.totalorder %s154, %s155
      %p167 = scmp.eq.s32.totalorder %s26, 1
      %p168 = por %p166, %p167
      %p170 = scmp.ne.s32.totalorder %s155, %s169
      %p171 = scmp.eq.s32.totalorder %s26, 0
      %p172 = por %p170, %p171
      %s173 = ssub.s32 %s27, %s39
      %s174 = ssub.s32 %s28, %s35
      %s175 = sor.u32 %s173, %s174
      %p176 = scmp.eq.s32.totalorder %s175, 0
      %s178 = sadd.s32 %s177, 1
      %s179 = scalar_select %p176, %s177, %s178
      %p182 = pneg %p176
      %p183 = scmp.eq.s32.totalorder %s20, 1
      %p184 = por %p182, %p183
      %p185 = scmp.ne.s32.totalorder %s177, %s180
      %p186 = scmp.eq.s32.totalorder %s20, 0
      %p187 = por %p185, %p186
      %p188 = scmp.ne.s32.totalorder %s177, %s180
      %p189 = scmp.eq.s32.totalorder %s25, 1
      %p190 = por %p188, %p189
      %p191 = scmp.ne.s32.totalorder %s180, %s181
      %p192 = scmp.eq.s32.totalorder %s25, 0
      %p193 = por %p191, %p192
      %p194 = scmp.ne.s32.totalorder %s180, %s181
      %p195 = scmp.eq.s32.totalorder %s26, 1
      %p196 = por %p194, %p195
      %p198 = scmp.ne.s32.totalorder %s181, %s197
      %p199 = scmp.eq.s32.totalorder %s26, 0
      %p200 = por %p198, %p199
      %p201 = scmp.le.s32.totalorder 1, %s20
      %p202 = scmp.lt.s32.totalorder %s20, 3
      %p203 = pnand %p201, %p202
      %p204 = pneg %p203
      // Predicated region
      $region9: #{tpu_custom_call.1} parent=5 // pred_check
        _
      $region10: #{tpu_custom_call.1} parent=5 // pred_check_branch
        %206 = sbr.rel (%p203) target = $region12
      $region11: #{tpu_custom_call.1} parent=5 // pred_region
        %s207 = ssub.s32 %s20, 1
        // Predicated region
        $region13: #{tpu_custom_call.1} parent=11 // pred_check
          %p208 = pneg %p81
        $region14: #{tpu_custom_call.1} parent=11 // pred_check_branch
          %210 = sbr.rel (%p208) target = $region16
        $region15: #{tpu_custom_call.1} parent=11 // pred_region
          %s212 = ssub.s32 16384, 16384
          %213 = vsyncadd [#allocation10], %s212
          %s214 = sshll.u32 [#allocation9], 4
          %s215 = int_to_ptr.vmem [resolvable:$true] %s214
          %220 = dma.hbm_to_vmem [thread:$0]  %s1, 16384, %s215, [#allocation10], 512, 512, 32
        $region16: #{tpu_custom_call.1} parent=11 // pred_fallthru
          _
        // Predicated region
        $region17: #{tpu_custom_call.1} parent=11 // pred_check
          %p221 = pneg %p102
        $region18: #{tpu_custom_call.1} parent=11 // pred_check_branch
          %223 = sbr.rel (%p221) target = $region20
        $region19: #{tpu_custom_call.1} parent=11 // pred_region
          %s225 = ssub.s32 8192, 8192
          %226 = vsyncadd [#allocation10], %s225
          %s227 = sshll.u32 [#allocation11], 4
          %s228 = int_to_ptr.vmem [resolvable:$true] %s227
          %233 = dma.hbm_to_vmem [thread:$0]  %s2, 8192, %s228, [#allocation10], 512, 512, 32
        $region20: #{tpu_custom_call.1} parent=11 // pred_fallthru
          _
        // Predicated region
        $region21: #{tpu_custom_call.1} parent=11 // pred_check
          %p234 = pneg %p123
        $region22: #{tpu_custom_call.1} parent=11 // pred_check_branch
          %236 = sbr.rel (%p234) target = $region24
        $region23: #{tpu_custom_call.1} parent=11 // pred_region
          _
        $region24: #{tpu_custom_call.1} parent=11 // pred_fallthru
          _
        // Predicated region
        $region25: #{tpu_custom_call.1} parent=11 // pred_check
          %p237 = pneg %p144
        $region26: #{tpu_custom_call.1} parent=11 // pred_check_branch
          %239 = sbr.rel (%p237) target = $region28
        $region27: #{tpu_custom_call.1} parent=11 // pred_region
          %s241 = ssub.s32 4096, 4096
          %242 = vsyncadd [#allocation13], %s241
          %s243 = sshll.u32 [#allocation12], 4
          %s244 = int_to_ptr.vmem [resolvable:$true] %s243
          %249 = dma.hbm_to_vmem [thread:$0]  %s4, 4096, %s244, [#allocation13], 256, 256, 16
        $region28: #{tpu_custom_call.1} parent=11 // pred_fallthru
          _
        // Predicated region
        $region29: #{tpu_custom_call.1} parent=11 // pred_check
          %p250 = pneg %p165
        $region30: #{tpu_custom_call.1} parent=11 // pred_check_branch
          %252 = sbr.rel (%p250) target = $region32
        $region31: #{tpu_custom_call.1} parent=11 // pred_region
          _
        $region32: #{tpu_custom_call.1} parent=11 // pred_fallthru
          _
      $region12: #{tpu_custom_call.1} parent=5 // pred_fallthru
        _
      %p253 = scmp.lt.s32.totalorder %s20, 2
      // Predicated region
      $region33: #{tpu_custom_call.1} parent=5 // pred_check
        %p254 = pneg %p253
      $region34: #{tpu_custom_call.1} parent=5 // pred_check_branch
        %256 = sbr.rel (%p254) target = $region36
      $region35: #{tpu_custom_call.1} parent=5 // pred_region
        // Predicated region
        $region37: #{tpu_custom_call.1} parent=35 // pred_check
          %p257 = pneg %p54
        $region38: #{tpu_custom_call.1} parent=35 // pred_check_branch
          %259 = sbr.rel (%p257) target = $region40
        $region39: #{tpu_custom_call.1} parent=35 // pred_region
          %s260 = sand.u32 %s44, 1
          %s261 = scalar_lea.sflag [#allocation7], %s260
          %s262 = sand.u32 %s44, 1
          %s263 = smul.addr %s262, 16
          %s264 = scalar_lea.vmem [#allocation6], %s263
          %s266 = ssub.s32 256, 256
          %267 = vsyncadd %s261, %s266
          %s268 = smul.addr %s28, 2
          %s269 = smul.addr %s27, 2
          %s270 = sadd.s32 %s268, %s269
          %s271 = smul.addr %s270, 128
          %s272 = scalar_lea.hbm %s0, %s271
          %s274 = sshll.u32 %s264, 4
          %s275 = int_to_ptr.vmem [resolvable:$true] %s274
          %277 = dma.hbm_to_vmem [thread:$0]  %s272, 256, %s275, %s261
        $region40: #{tpu_custom_call.1} parent=35 // pred_fallthru
          _
      $region36: #{tpu_custom_call.1} parent=5 // pred_fallthru
        _
      %p278 = scmp.le.s32.totalorder 1, %s20
      %p279 = scmp.lt.s32.totalorder %s20, 3
      %p280 = pnand %p278, %p279
      %p281 = pneg %p280
      // Predicated region
      $region41: #{tpu_custom_call.1} parent=5 // pred_check
        _
      $region42: #{tpu_custom_call.1} parent=5 // pred_check_branch
        %283 = sbr.rel (%p280) target = $region44
      $region43: #{tpu_custom_call.1} parent=5 // pred_region
        %s284 = ssub.s32 %s20, 1
        %s285 = sand.u32 %s47, 1
        %s286 = scalar_lea.sflag [#allocation7], %s285
        %s287 = sand.u32 %s47, 1
        %s288 = smul.addr %s287, 16
        %s289 = scalar_lea.vmem [#allocation6], %s288
        // Predicated region
        $region45: #{tpu_custom_call.1} parent=43 // pred_check
          %p290 = pneg %p60
        $region46: #{tpu_custom_call.1} parent=43 // pred_check_branch
          %292 = sbr.rel (%p290) target = $region48
        $region47: #{tpu_custom_call.1} parent=43 // pred_region
          %293 = dma.done %s286, 256
        $region48: #{tpu_custom_call.1} parent=43 // pred_fallthru
          _
        // Predicated region
        $region49: #{tpu_custom_call.1} parent=43 // pred_check
          %p294 = pneg %p81
        $region50: #{tpu_custom_call.1} parent=43 // pred_check_branch
          %296 = sbr.rel (%p294) target = $region52
        $region51: #{tpu_custom_call.1} parent=43 // pred_region
          %297 = dma.done [#allocation10], 16384
        $region52: #{tpu_custom_call.1} parent=43 // pred_fallthru
          _
        // Predicated region
        $region53: #{tpu_custom_call.1} parent=43 // pred_check
          %p298 = pneg %p102
        $region54: #{tpu_custom_call.1} parent=43 // pred_check_branch
          %300 = sbr.rel (%p298) target = $region56
        $region55: #{tpu_custom_call.1} parent=43 // pred_region
          %301 = dma.done [#allocation10], 8192
        $region56: #{tpu_custom_call.1} parent=43 // pred_fallthru
          _
        // Predicated region
        $region57: #{tpu_custom_call.1} parent=43 // pred_check
          %p302 = pneg %p144
        $region58: #{tpu_custom_call.1} parent=43 // pred_check_branch
          %304 = sbr.rel (%p302) target = $region60
        $region59: #{tpu_custom_call.1} parent=43 // pred_region
          %305 = dma.done [#allocation13], 4096
        $region60: #{tpu_custom_call.1} parent=43 // pred_fallthru
          _
        %s306 = sand.u32 %s47, 1
        %s307 = scalar_lea.sflag [#allocation7], %s306
        %s308 = sand.u32 %s47, 1
        %s309 = smul.addr %s308, 16
        %s310 = scalar_lea.vmem [#allocation6], %s309
        %p311 = pneg %p60
        %p312 = pneg %p57
        %p313 = pneg %p81
        %p314 = pneg %p78
        %p315 = pneg %p102
        %p316 = pneg %p99
        %p317 = pneg %p123
        %p318 = pneg %p120
        %p319 = pneg %p144
        %p320 = pneg %p141
        %p321 = pneg %p165
        %p322 = pneg %p162
        %p323 = pneg %p193
        %p324 = pneg %p190
        %s325 = sand.u32 %s180, 1
        %s326 = scalar_lea.sflag [#allocation8], %s325
        %s327 = sand.u32 %s180, 1
        %s328 = smul.addr %s327, 16
        %s329 = scalar_lea.vmem [#allocation14], %s328
        %p330 = scmp.eq.s32.totalorder %s30, 0
        // Predicated region
        $region61: #{tpu_custom_call.1} parent=43 // pred_check
          %p331 = pneg %p330
        $region62: #{tpu_custom_call.1} parent=43 // pred_check_branch
          %333 = sbr.rel (%p331) target = $region64
        $region63: #{tpu_custom_call.1} parent=43 // pred_region
          %334 = vst [vmem:[#allocation4] sm:$0x1] 0.0
          %335 = vst [vmem:[#allocation5] sm:$0x1] 0.0
        $region64: #{tpu_custom_call.1} parent=43 // pred_fallthru
          _
        %v336 = vld [vmem:[%s289] sm:$0xff]
        %v337 = vld [vmem:[%s289 + $0x8] sm:$0xff]
        %v338 = vld [vmem:[#allocation9] sm:$0xff]
        %v339 = vld [vmem:[#allocation9 + $0x8] sm:$0xff]
        %v340 = vld [vmem:[#allocation9 + $0x10] sm:$0xff]
        %v341 = vld [vmem:[#allocation9 + $0x18] sm:$0xff]
        %v342 = vld [vmem:[#allocation9 + $0x20] sm:$0xff]
        %v343 = vld [vmem:[#allocation9 + $0x28] sm:$0xff]
        %v344 = vld [vmem:[#allocation9 + $0x30] sm:$0xff]
        %v345 = vld [vmem:[#allocation9 + $0x38] sm:$0xff]
        %v346 = vld [vmem:[#allocation9 + $0x40] sm:$0xff]
        %v347 = vld [vmem:[#allocation9 + $0x48] sm:$0xff]
        %v348 = vld [vmem:[#allocation9 + $0x50] sm:$0xff]
        %v349 = vld [vmem:[#allocation9 + $0x58] sm:$0xff]
        %v350 = vld [vmem:[#allocation9 + $0x60] sm:$0xff]
        %v351 = vld [vmem:[#allocation9 + $0x68] sm:$0xff]
        %v352 = vld [vmem:[#allocation9 + $0x70] sm:$0xff]
        %v353 = vld [vmem:[#allocation9 + $0x78] sm:$0xff]
        %v354 = vld [vmem:[#allocation9 + $0x80] sm:$0xff]
        %v355 = vld [vmem:[#allocation9 + $0x88] sm:$0xff]
        %v356 = vld [vmem:[#allocation9 + $0x90] sm:$0xff]
        %v357 = vld [vmem:[#allocation9 + $0x98] sm:$0xff]
        %v358 = vld [vmem:[#allocation9 + $0xa0] sm:$0xff]
        %v359 = vld [vmem:[#allocation9 + $0xa8] sm:$0xff]
        %v360 = vld [vmem:[#allocation9 + $0xb0] sm:$0xff]
        %v361 = vld [vmem:[#allocation9 + $0xb8] sm:$0xff]
        %v362 = vld [vmem:[#allocation9 + $0xc0] sm:$0xff]
        %v363 = vld [vmem:[#allocation9 + $0xc8] sm:$0xff]
        %v364 = vld [vmem:[#allocation9 + $0xd0] sm:$0xff]
        %v365 = vld [vmem:[#allocation9 + $0xd8] sm:$0xff]
        %v366 = vld [vmem:[#allocation9 + $0xe0] sm:$0xff]
        %v367 = vld [vmem:[#allocation9 + $0xe8] sm:$0xff]
        %v368 = vld [vmem:[#allocation9 + $0xf0] sm:$0xff]
        %v369 = vld [vmem:[#allocation9 + $0xf8] sm:$0xff]
        %v370 = vld [vmem:[#allocation9 + $0x100] sm:$0xff]
        %v371 = vld [vmem:[#allocation9 + $0x108] sm:$0xff]
        %v372 = vld [vmem:[#allocation9 + $0x110] sm:$0xff]
        %v373 = vld [vmem:[#allocation9 + $0x118] sm:$0xff]
        %v374 = vld [vmem:[#allocation9 + $0x120] sm:$0xff]
        %v375 = vld [vmem:[#allocation9 + $0x128] sm:$0xff]
        %v376 = vld [vmem:[#allocation9 + $0x130] sm:$0xff]
        %v377 = vld [vmem:[#allocation9 + $0x138] sm:$0xff]
        %v378 = vld [vmem:[#allocation9 + $0x140] sm:$0xff]
        %v379 = vld [vmem:[#allocation9 + $0x148] sm:$0xff]
        %v380 = vld [vmem:[#allocation9 + $0x150] sm:$0xff]
        %v381 = vld [vmem:[#allocation9 + $0x158] sm:$0xff]
        %v382 = vld [vmem:[#allocation9 + $0x160] sm:$0xff]
        %v383 = vld [vmem:[#allocation9 + $0x168] sm:$0xff]
        %v384 = vld [vmem:[#allocation9 + $0x170] sm:$0xff]
        %v385 = vld [vmem:[#allocation9 + $0x178] sm:$0xff]
        %v386 = vld [vmem:[#allocation9 + $0x180] sm:$0xff]
        %v387 = vld [vmem:[#allocation9 + $0x188] sm:$0xff]
        %v388 = vld [vmem:[#allocation9 + $0x190] sm:$0xff]
        %v389 = vld [vmem:[#allocation9 + $0x198] sm:$0xff]
        %v390 = vld [vmem:[#allocation9 + $0x1a0] sm:$0xff]
        %v391 = vld [vmem:[#allocation9 + $0x1a8] sm:$0xff]
        %v392 = vld [vmem:[#allocation9 + $0x1b0] sm:$0xff]
        %v393 = vld [vmem:[#allocation9 + $0x1b8] sm:$0xff]
        %v394 = vld [vmem:[#allocation9 + $0x1c0] sm:$0xff]
        %v395 = vld [vmem:[#allocation9 + $0x1c8] sm:$0xff]
        %v396 = vld [vmem:[#allocation9 + $0x1d0] sm:$0xff]
        %v397 = vld [vmem:[#allocation9 + $0x1d8] sm:$0xff]
        %v398 = vld [vmem:[#allocation9 + $0x1e0] sm:$0xff]
        %v399 = vld [vmem:[#allocation9 + $0x1e8] sm:$0xff]
        %v400 = vld [vmem:[#allocation9 + $0x1f0] sm:$0xff]
        %v401 = vld [vmem:[#allocation9 + $0x1f8] sm:$0xff]
        %v402 = vld [vmem:[#allocation9 + $0x200] sm:$0xff]
        %v403 = vld [vmem:[#allocation9 + $0x208] sm:$0xff]
        %v404 = vld [vmem:[#allocation9 + $0x210] sm:$0xff]
        %v405 = vld [vmem:[#allocation9 + $0x218] sm:$0xff]
        %v406 = vld [vmem:[#allocation9 + $0x220] sm:$0xff]
        %v407 = vld [vmem:[#allocation9 + $0x228] sm:$0xff]
        %v408 = vld [vmem:[#allocation9 + $0x230] sm:$0xff]
        %v409 = vld [vmem:[#allocation9 + $0x238] sm:$0xff]
        %v410 = vld [vmem:[#allocation9 + $0x240] sm:$0xff]
        %v411 = vld [vmem:[#allocation9 + $0x248] sm:$0xff]
        %v412 = vld [vmem:[#allocation9 + $0x250] sm:$0xff]
        %v413 = vld [vmem:[#allocation9 + $0x258] sm:$0xff]
        %v414 = vld [vmem:[#allocation9 + $0x260] sm:$0xff]
        %v415 = vld [vmem:[#allocation9 + $0x268] sm:$0xff]
        %v416 = vld [vmem:[#allocation9 + $0x270] sm:$0xff]
        %v417 = vld [vmem:[#allocation9 + $0x278] sm:$0xff]
        %v418 = vld [vmem:[#allocation9 + $0x280] sm:$0xff]
        %v419 = vld [vmem:[#allocation9 + $0x288] sm:$0xff]
        %v420 = vld [vmem:[#allocation9 + $0x290] sm:$0xff]
        %v421 = vld [vmem:[#allocation9 + $0x298] sm:$0xff]
        %v422 = vld [vmem:[#allocation9 + $0x2a0] sm:$0xff]
        %v423 = vld [vmem:[#allocation9 + $0x2a8] sm:$0xff]
        %v424 = vld [vmem:[#allocation9 + $0x2b0] sm:$0xff]
        %v425 = vld [vmem:[#allocation9 + $0x2b8] sm:$0xff]
        %v426 = vld [vmem:[#allocation9 + $0x2c0] sm:$0xff]
        %v427 = vld [vmem:[#allocation9 + $0x2c8] sm:$0xff]
        %v428 = vld [vmem:[#allocation9 + $0x2d0] sm:$0xff]
        %v429 = vld [vmem:[#allocation9 + $0x2d8] sm:$0xff]
        %v430 = vld [vmem:[#allocation9 + $0x2e0] sm:$0xff]
        %v431 = vld [vmem:[#allocation9 + $0x2e8] sm:$0xff]
        %v432 = vld [vmem:[#allocation9 + $0x2f0] sm:$0xff]
        %v433 = vld [vmem:[#allocation9 + $0x2f8] sm:$0xff]
        %v434 = vld [vmem:[#allocation9 + $0x300] sm:$0xff]
        %v435 = vld [vmem:[#allocation9 + $0x308] sm:$0xff]
        %v436 = vld [vmem:[#allocation9 + $0x310] sm:$0xff]
        %v437 = vld [vmem:[#allocation9 + $0x318] sm:$0xff]
        %v438 = vld [vmem:[#allocation9 + $0x320] sm:$0xff]
        %v439 = vld [vmem:[#allocation9 + $0x328] sm:$0xff]
        %v440 = vld [vmem:[#allocation9 + $0x330] sm:$0xff]
        %v441 = vld [vmem:[#allocation9 + $0x338] sm:$0xff]
        %v442 = vld [vmem:[#allocation9 + $0x340] sm:$0xff]
        %v443 = vld [vmem:[#allocation9 + $0x348] sm:$0xff]
        %v444 = vld [vmem:[#allocation9 + $0x350] sm:$0xff]
        %v445 = vld [vmem:[#allocation9 + $0x358] sm:$0xff]
        %v446 = vld [vmem:[#allocation9 + $0x360] sm:$0xff]
        %v447 = vld [vmem:[#allocation9 + $0x368] sm:$0xff]
        %v448 = vld [vmem:[#allocation9 + $0x370] sm:$0xff]
        %v449 = vld [vmem:[#allocation9 + $0x378] sm:$0xff]
        %v450 = vld [vmem:[#allocation9 + $0x380] sm:$0xff]
        %v451 = vld [vmem:[#allocation9 + $0x388] sm:$0xff]
        %v452 = vld [vmem:[#allocation9 + $0x390] sm:$0xff]
        %v453 = vld [vmem:[#allocation9 + $0x398] sm:$0xff]
        %v454 = vld [vmem:[#allocation9 + $0x3a0] sm:$0xff]
        %v455 = vld [vmem:[#allocation9 + $0x3a8] sm:$0xff]
        %v456 = vld [vmem:[#allocation9 + $0x3b0] sm:$0xff]
        %v457 = vld [vmem:[#allocation9 + $0x3b8] sm:$0xff]
        %v458 = vld [vmem:[#allocation9 + $0x3c0] sm:$0xff]
        %v459 = vld [vmem:[#allocation9 + $0x3c8] sm:$0xff]
        %v460 = vld [vmem:[#allocation9 + $0x3d0] sm:$0xff]
        %v461 = vld [vmem:[#allocation9 + $0x3d8] sm:$0xff]
        %v462 = vld [vmem:[#allocation9 + $0x3e0] sm:$0xff]
        %v463 = vld [vmem:[#allocation9 + $0x3e8] sm:$0xff]
        %v464 = vld [vmem:[#allocation9 + $0x3f0] sm:$0xff]
        %v465 = vld [vmem:[#allocation9 + $0x3f8] sm:$0xff]
        %v466 = vld [vmem:[%s3] sm:$0xf]
        %v468 = vlaneseq
        %v469 = vshrl.u32 %v468, 7
        %v470 = vsub.s32 0, %v469
        %v471 = vrot.slane %v466, %v470
        %v472 = vlaneseq
        %v473 = vshrl.u32 %v472, 7
        %v474 = vsub.s32 1, %v473
        %v475 = vrot.slane %v466, %v474
        %v476 = vlaneseq
        %v477 = vshrl.u32 %v476, 7
        %v478 = vsub.s32 2, %v477
        %v479 = vrot.slane %v466, %v478
        %v480 = vlaneseq
        %v481 = vshrl.u32 %v480, 7
        %v482 = vsub.s32 3, %v481
        %v483 = vrot.slane %v466, %v482
        %488 = vmatprep.subr.mxu0 %v339
        %489 = vmatpush1.msra.mxu0 %v338
        %490 = vmatprep.subr.mxu0 %v343
        %491 = vmatpush1.msra.mxu0 %v342
        %492 = vmatprep.subr.mxu0 %v347
        %493 = vmatpush1.msra.mxu0 %v346
        %494 = vmatprep.subr.mxu0 %v351
        %495 = vmatpush1.msra.mxu0 %v350
        %496 = vmatprep.subr.mxu0 %v355
        %497 = vmatpush1.msra.mxu0 %v354
        %498 = vmatprep.subr.mxu0 %v359
        %499 = vmatpush1.msra.mxu0 %v358
        %500 = vmatprep.subr.mxu0 %v363
        %501 = vmatpush1.msra.mxu0 %v362
        %502 = vmatprep.subr.mxu0 %v367
        %503 = vmatpush1.msra.mxu0 %v366
        %504 = vmatprep.subr.mxu0 %v371
        %505 = vmatpush1.msra.mxu0 %v370
        %506 = vmatprep.subr.mxu0 %v375
        %507 = vmatpush1.msra.mxu0 %v374
        %508 = vmatprep.subr.mxu0 %v379
        %509 = vmatpush1.msra.mxu0 %v378
        %510 = vmatprep.subr.mxu0 %v383
        %511 = vmatpush1.msra.mxu0 %v382
        %512 = vmatprep.subr.mxu0 %v387
        %513 = vmatpush1.msra.mxu0 %v386
        %514 = vmatprep.subr.mxu0 %v391
        %515 = vmatpush1.msra.mxu0 %v390
        %516 = vmatprep.subr.mxu0 %v395
        %517 = vmatpush1.msra.mxu0 %v394
        %518 = vmatprep.subr.mxu0 %v399
        %519 = vmatpush1.msra.mxu0 %v398
        %520 = vmatprep.subr.mxu0 %v403
        %521 = vmatpush1.msra.mxu0 %v402
        %522 = vmatprep.subr.mxu0 %v407
        %523 = vmatpush1.msra.mxu0 %v406
        %524 = vmatprep.subr.mxu0 %v411
        %525 = vmatpush1.msra.mxu0 %v410
        %526 = vmatprep.subr.mxu0 %v415
        %527 = vmatpush1.msra.mxu0 %v414
        %528 = vmatprep.subr.mxu0 %v419
        %529 = vmatpush1.msra.mxu0 %v418
        %530 = vmatprep.subr.mxu0 %v423
        %531 = vmatpush1.msra.mxu0 %v422
        %532 = vmatprep.subr.mxu0 %v427
        %533 = vmatpush1.msra.mxu0 %v426
        %534 = vmatprep.subr.mxu0 %v431
        %535 = vmatpush1.msra.mxu0 %v430
        %536 = vmatprep.subr.mxu0 %v435
        %537 = vmatpush1.msra.mxu0 %v434
        %538 = vmatprep.subr.mxu0 %v439
        %539 = vmatpush1.msra.mxu0 %v438
        %540 = vmatprep.subr.mxu0 %v443
        %541 = vmatpush1.msra.mxu0 %v442
        %542 = vmatprep.subr.mxu0 %v447
        %543 = vmatpush1.msra.mxu0 %v446
        %544 = vmatprep.subr.mxu0 %v451
        %545 = vmatpush1.msra.mxu0 %v450
        %546 = vmatprep.subr.mxu0 %v455
        %547 = vmatpush1.msra.mxu0 %v454
        %548 = vmatprep.subr.mxu0 %v459
        %549 = vmatpush1.msra.mxu0 %v458
        %550 = vmatprep.subr.mxu0 %v463
        %551 = vmatpush1.msra.mxu0 %v462
        %552 = vmatprep.mubr.f32.mxu0 %v337
        %553 = vmatmul.mubr.f32.gmra.mrb[0].mxu0 %v336
        %v554 = vpop.f32.mrb[0].mxu0
        %v555 = vadd.f32 %v471, %v554
        %v556 = vpop.f32.mrb[0].mxu0
        %v557 = vadd.f32 %v475, %v556
        %558 = vdwg.mxu0
        %559 = vmatprep.subr.mxu0 %v341
        %560 = vmatpush1.msra.mxu0 %v340
        %561 = vmatprep.subr.mxu0 %v345
        %562 = vmatpush1.msra.mxu0 %v344
        %563 = vmatprep.subr.mxu0 %v349
        %564 = vmatpush1.msra.mxu0 %v348
        %565 = vmatprep.subr.mxu0 %v353
        %566 = vmatpush1.msra.mxu0 %v352
        %567 = vmatprep.subr.mxu0 %v357
        %568 = vmatpush1.msra.mxu0 %v356
        %569 = vmatprep.subr.mxu0 %v361
        %570 = vmatpush1.msra.mxu0 %v360
        %571 = vmatprep.subr.mxu0 %v365
        %572 = vmatpush1.msra.mxu0 %v364
        %573 = vmatprep.subr.mxu0 %v369
        %574 = vmatpush1.msra.mxu0 %v368
        %575 = vmatprep.subr.mxu0 %v373
        %576 = vmatpush1.msra.mxu0 %v372
        %577 = vmatprep.subr.mxu0 %v377
        %578 = vmatpush1.msra.mxu0 %v376
        %579 = vmatprep.subr.mxu0 %v381
        %580 = vmatpush1.msra.mxu0 %v380
        %581 = vmatprep.subr.mxu0 %v385
        %582 = vmatpush1.msra.mxu0 %v384
        %583 = vmatprep.subr.mxu0 %v389
        %584 = vmatpush1.msra.mxu0 %v388
        %585 = vmatprep.subr.mxu0 %v393
        %586 = vmatpush1.msra.mxu0 %v392
        %587 = vmatprep.subr.mxu0 %v397
        %588 = vmatpush1.msra.mxu0 %v396
        %589 = vmatprep.subr.mxu0 %v401
        %590 = vmatpush1.msra.mxu0 %v400
        %591 = vmatprep.subr.mxu0 %v405
        %592 = vmatpush1.msra.mxu0 %v404
        %593 = vmatprep.subr.mxu0 %v409
        %594 = vmatpush1.msra.mxu0 %v408
        %595 = vmatprep.subr.mxu0 %v413
        %596 = vmatpush1.msra.mxu0 %v412
        %597 = vmatprep.subr.mxu0 %v417
        %598 = vmatpush1.msra.mxu0 %v416
        %599 = vmatprep.subr.mxu0 %v421
        %600 = vmatpush1.msra.mxu0 %v420
        %601 = vmatprep.subr.mxu0 %v425
        %602 = vmatpush1.msra.mxu0 %v424
        %603 = vmatprep.subr.mxu0 %v429
        %604 = vmatpush1.msra.mxu0 %v428
        %605 = vmatprep.subr.mxu0 %v433
        %606 = vmatpush1.msra.mxu0 %v432
        %607 = vmatprep.subr.mxu0 %v437
        %608 = vmatpush1.msra.mxu0 %v436
        %609 = vmatprep.subr.mxu0 %v441
        %610 = vmatpush1.msra.mxu0 %v440
        %611 = vmatprep.subr.mxu0 %v445
        %612 = vmatpush1.msra.mxu0 %v444
        %613 = vmatprep.subr.mxu0 %v449
        %614 = vmatpush1.msra.mxu0 %v448
        %615 = vmatprep.subr.mxu0 %v453
        %616 = vmatpush1.msra.mxu0 %v452
        %617 = vmatprep.subr.mxu0 %v457
        %618 = vmatpush1.msra.mxu0 %v456
        %619 = vmatprep.subr.mxu0 %v461
        %620 = vmatpush1.msra.mxu0 %v460
        %621 = vmatprep.subr.mxu0 %v465
        %622 = vmatpush1.msra.mxu0 %v464
        %623 = vmatprep.mubr.f32.mxu0 %v337
        %624 = vmatmul.mubr.f32.gmra.mrb[0].mxu0 %v336
        %v625 = vpop.f32.mrb[0].mxu0
        %v626 = vadd.f32 %v479, %v625
        %v627 = vpop.f32.mrb[0].mxu0
        %v628 = vadd.f32 %v483, %v627
        %629 = vdwg.mxu0
        %v630 = vcombine.high %v555, 0.0
        %v632 = vunpack.c.l.s4 1983009808
        %v633 = vunpack.c.0.s8 %v632
        %v634 = vlaneseq
        %v635 = vshrl.u32 %v634, 7
        %v636 = vsub.s32 %v633, %v635
        %v637 = vrot.slane %v555, %v636
        %v639 = vunpack.c.l.s4 1983009808
        %v640 = vunpack.c.0.s8 %v639
        %v641 = vlaneseq
        %v642 = vshrl.u32 %v641, 7
        %v643 = vsub.s32 %v640, %v642
        %v644 = vrot.slane %v630, %v643
        %v645 = vcombine.high %v637, 0.0
        %v647 = vunpack.c.l.s4 1934713408
        %v648 = vunpack.c.0.s8 %v647
        %v649 = vlaneseq
        %v650 = vshrl.u32 %v649, 7
        %v651 = vsub.s32 %v648, %v650
        %v652 = vrot.slane %v637, %v651
        %v654 = vunpack.c.l.s4 1934713408
        %v655 = vunpack.c.0.s8 %v654
        %v656 = vlaneseq
        %v657 = vshrl.u32 %v656, 7
        %v658 = vsub.s32 %v655, %v657
        %v659 = vrot.slane %v645, %v658
        %v660 = vcombine.high %v644, 0.0
        %v662 = vunpack.c.l.s4 1934713408
        %v663 = vunpack.c.0.s8 %v662
        %v664 = vlaneseq
        %v665 = vshrl.u32 %v664, 7
        %v666 = vsub.s32 %v663, %v665
        %v667 = vrot.slane %v644, %v666
        %v669 = vunpack.c.l.s4 1934713408
        %v670 = vunpack.c.0.s8 %v669
        %v671 = vlaneseq
        %v672 = vshrl.u32 %v671, 7
        %v673 = vsub.s32 %v670, %v672
        %v674 = vrot.slane %v660, %v673
        %v675 = vcombine.high %v652, 0.0
        %v676 = vcombine.high %v659, 0.0
        %v677 = vcombine.high %v667, 0.0
        %v678 = vcombine.high %v674, 0.0
        %v679 = vcombine.high %v557, 0.0
        %v681 = vunpack.c.l.s4 1983009808
        %v682 = vunpack.c.0.s8 %v681
        %v683 = vlaneseq
        %v684 = vshrl.u32 %v683, 7
        %v685 = vsub.s32 %v682, %v684
        %v686 = vrot.slane %v557, %v685
        %v688 = vunpack.c.l.s4 1983009808
        %v689 = vunpack.c.0.s8 %v688
        %v690 = vlaneseq
        %v691 = vshrl.u32 %v690, 7
        %v692 = vsub.s32 %v689, %v691
        %v693 = vrot.slane %v679, %v692
        %v694 = vcombine.high %v686, 0.0
        %v696 = vunpack.c.l.s4 1934713408
        %v697 = vunpack.c.0.s8 %v696
        %v698 = vlaneseq
        %v699 = vshrl.u32 %v698, 7
        %v700 = vsub.s32 %v697, %v699
        %v701 = vrot.slane %v686, %v700
        %v703 = vunpack.c.l.s4 1934713408
        %v704 = vunpack.c.0.s8 %v703
        %v705 = vlaneseq
        %v706 = vshrl.u32 %v705, 7
        %v707 = vsub.s32 %v704, %v706
        %v708 = vrot.slane %v694, %v707
        %v709 = vcombine.high %v693, 0.0
        %v711 = vunpack.c.l.s4 1934713408
        %v712 = vunpack.c.0.s8 %v711
        %v713 = vlaneseq
        %v714 = vshrl.u32 %v713, 7
        %v715 = vsub.s32 %v712, %v714
        %v716 = vrot.slane %v693, %v715
        %v718 = vunpack.c.l.s4 1934713408
        %v719 = vunpack.c.0.s8 %v718
        %v720 = vlaneseq
        %v721 = vshrl.u32 %v720, 7
        %v722 = vsub.s32 %v719, %v721
        %v723 = vrot.slane %v709, %v722
        %v724 = vcombine.high %v701, 0.0
        %v725 = vcombine.high %v708, 0.0
        %v726 = vcombine.high %v716, 0.0
        %v727 = vcombine.high %v723, 0.0
        %v728 = vcombine.high %v626, 0.0
        %v730 = vunpack.c.l.s4 1983009808
        %v731 = vunpack.c.0.s8 %v730
        %v732 = vlaneseq
        %v733 = vshrl.u32 %v732, 7
        %v734 = vsub.s32 %v731, %v733
        %v735 = vrot.slane %v626, %v734
        %v737 = vunpack.c.l.s4 1983009808
        %v738 = vunpack.c.0.s8 %v737
        %v739 = vlaneseq
        %v740 = vshrl.u32 %v739, 7
        %v741 = vsub.s32 %v738, %v740
        %v742 = vrot.slane %v728, %v741
        %v743 = vcombine.high %v735, 0.0
        %v745 = vunpack.c.l.s4 1934713408
        %v746 = vunpack.c.0.s8 %v745
        %v747 = vlaneseq
        %v748 = vshrl.u32 %v747, 7
        %v749 = vsub.s32 %v746, %v748
        %v750 = vrot.slane %v735, %v749
        %v752 = vunpack.c.l.s4 1934713408
        %v753 = vunpack.c.0.s8 %v752
        %v754 = vlaneseq
        %v755 = vshrl.u32 %v754, 7
        %v756 = vsub.s32 %v753, %v755
        %v757 = vrot.slane %v743, %v756
        %v758 = vcombine.high %v742, 0.0
        %v760 = vunpack.c.l.s4 1934713408
        %v761 = vunpack.c.0.s8 %v760
        %v762 = vlaneseq
        %v763 = vshrl.u32 %v762, 7
        %v764 = vsub.s32 %v761, %v763
        %v765 = vrot.slane %v742, %v764
        %v767 = vunpack.c.l.s4 1934713408
        %v768 = vunpack.c.0.s8 %v767
        %v769 = vlaneseq
        %v770 = vshrl.u32 %v769, 7
        %v771 = vsub.s32 %v768, %v770
        %v772 = vrot.slane %v758, %v771
        %v773 = vcombine.high %v750, 0.0
        %v774 = vcombine.high %v757, 0.0
        %v775 = vcombine.high %v765, 0.0
        %v776 = vcombine.high %v772, 0.0
        %v777 = vcombine.high %v628, 0.0
        %v779 = vunpack.c.l.s4 1983009808
        %v780 = vunpack.c.0.s8 %v779
        %v781 = vlaneseq
        %v782 = vshrl.u32 %v781, 7
        %v783 = vsub.s32 %v780, %v782
        %v784 = vrot.slane %v628, %v783
        %v786 = vunpack.c.l.s4 1983009808
        %v787 = vunpack.c.0.s8 %v786
        %v788 = vlaneseq
        %v789 = vshrl.u32 %v788, 7
        %v790 = vsub.s32 %v787, %v789
        %v791 = vrot.slane %v777, %v790
        %v792 = vcombine.high %v784, 0.0
        %v794 = vunpack.c.l.s4 1934713408
        %v795 = vunpack.c.0.s8 %v794
        %v796 = vlaneseq
        %v797 = vshrl.u32 %v796, 7
        %v798 = vsub.s32 %v795, %v797
        %v799 = vrot.slane %v784, %v798
        %v801 = vunpack.c.l.s4 1934713408
        %v802 = vunpack.c.0.s8 %v801
        %v803 = vlaneseq
        %v804 = vshrl.u32 %v803, 7
        %v805 = vsub.s32 %v802, %v804
        %v806 = vrot.slane %v792, %v805
        %v807 = vcombine.high %v791, 0.0
        %v809 = vunpack.c.l.s4 1934713408
        %v810 = vunpack.c.0.s8 %v809
        %v811 = vlaneseq
        %v812 = vshrl.u32 %v811, 7
        %v813 = vsub.s32 %v810, %v812
        %v814 = vrot.slane %v791, %v813
        %v816 = vunpack.c.l.s4 1934713408
        %v817 = vunpack.c.0.s8 %v816
        %v818 = vlaneseq
        %v819 = vshrl.u32 %v818, 7
        %v820 = vsub.s32 %v817, %v819
        %v821 = vrot.slane %v807, %v820
        %v822 = vcombine.high %v799, 0.0
        %v823 = vcombine.high %v806, 0.0
        %v824 = vcombine.high %v814, 0.0
        %v825 = vcombine.high %v821, 0.0
        %v858 = vcombine.low %v652, %v701
        %v859 = vcombine.low %v750, %v799
        %v861 = vunpack.c.l.s4 1966171168
        %v862 = vunpack.c.0.s8 %v861
        %v863 = vlaneseq
        %v864 = vshrl.u32 %v863, 7
        %v865 = vsub.s32 %v862, %v864
        %v866 = vrot.slane %v858, %v865
        %v868 = vunpack.c.l.s4 1966171168
        %v869 = vunpack.c.0.s8 %v868
        %v870 = vlaneseq
        %v871 = vshrl.u32 %v870, 7
        %v872 = vsub.s32 %v869, %v871
        %v873 = vrot.slane %v859, %v872
        %v874 = vcombine.low %v866, %v873
        %v876 = vunpack.c.l.s4 1966171168
        %v877 = vunpack.c.0.s8 %v876
        %v878 = vlaneseq
        %v879 = vshrl.u32 %v878, 7
        %v880 = vsub.s32 %v877, %v879
        %v881 = vrot.slane %v874, %v880
        %v882 = vcombine.low %v675, %v724
        %v883 = vcombine.low %v773, %v822
        %v885 = vunpack.c.l.s4 1966171168
        %v886 = vunpack.c.0.s8 %v885
        %v887 = vlaneseq
        %v888 = vshrl.u32 %v887, 7
        %v889 = vsub.s32 %v886, %v888
        %v890 = vrot.slane %v882, %v889
        %v892 = vunpack.c.l.s4 1966171168
        %v893 = vunpack.c.0.s8 %v892
        %v894 = vlaneseq
        %v895 = vshrl.u32 %v894, 7
        %v896 = vsub.s32 %v893, %v895
        %v897 = vrot.slane %v883, %v896
        %v898 = vcombine.low %v890, %v897
        %v900 = vunpack.c.l.s4 1966171168
        %v901 = vunpack.c.0.s8 %v900
        %v902 = vlaneseq
        %v903 = vshrl.u32 %v902, 7
        %v904 = vsub.s32 %v901, %v903
        %v905 = vrot.slane %v898, %v904
        %v906 = vcombine.low %v659, %v708
        %v907 = vcombine.low %v757, %v806
        %v909 = vunpack.c.l.s4 1966171168
        %v910 = vunpack.c.0.s8 %v909
        %v911 = vlaneseq
        %v912 = vshrl.u32 %v911, 7
        %v913 = vsub.s32 %v910, %v912
        %v914 = vrot.slane %v906, %v913
        %v916 = vunpack.c.l.s4 1966171168
        %v917 = vunpack.c.0.s8 %v916
        %v918 = vlaneseq
        %v919 = vshrl.u32 %v918, 7
        %v920 = vsub.s32 %v917, %v919
        %v921 = vrot.slane %v907, %v920
        %v922 = vcombine.low %v914, %v921
        %v924 = vunpack.c.l.s4 1966171168
        %v925 = vunpack.c.0.s8 %v924
        %v926 = vlaneseq
        %v927 = vshrl.u32 %v926, 7
        %v928 = vsub.s32 %v925, %v927
        %v929 = vrot.slane %v922, %v928
        %v930 = vcombine.low %v676, %v725
        %v931 = vcombine.low %v774, %v823
        %v933 = vunpack.c.l.s4 1966171168
        %v934 = vunpack.c.0.s8 %v933
        %v935 = vlaneseq
        %v936 = vshrl.u32 %v935, 7
        %v937 = vsub.s32 %v934, %v936
        %v938 = vrot.slane %v930, %v937
        %v940 = vunpack.c.l.s4 1966171168
        %v941 = vunpack.c.0.s8 %v940
        %v942 = vlaneseq
        %v943 = vshrl.u32 %v942, 7
        %v944 = vsub.s32 %v941, %v943
        %v945 = vrot.slane %v931, %v944
        %v946 = vcombine.low %v938, %v945
        %v948 = vunpack.c.l.s4 1966171168
        %v949 = vunpack.c.0.s8 %v948
        %v950 = vlaneseq
        %v951 = vshrl.u32 %v950, 7
        %v952 = vsub.s32 %v949, %v951
        %v953 = vrot.slane %v946, %v952
        %v954 = vcombine.low %v667, %v716
        %v955 = vcombine.low %v765, %v814
        %v957 = vunpack.c.l.s4 1966171168
        %v958 = vunpack.c.0.s8 %v957
        %v959 = vlaneseq
        %v960 = vshrl.u32 %v959, 7
        %v961 = vsub.s32 %v958, %v960
        %v962 = vrot.slane %v954, %v961
        %v964 = vunpack.c.l.s4 1966171168
        %v965 = vunpack.c.0.s8 %v964
        %v966 = vlaneseq
        %v967 = vshrl.u32 %v966, 7
        %v968 = vsub.s32 %v965, %v967
        %v969 = vrot.slane %v955, %v968
        %v970 = vcombine.low %v962, %v969
        %v972 = vunpack.c.l.s4 1966171168
        %v973 = vunpack.c.0.s8 %v972
        %v974 = vlaneseq
        %v975 = vshrl.u32 %v974, 7
        %v976 = vsub.s32 %v973, %v975
        %v977 = vrot.slane %v970, %v976
        %v978 = vcombine.low %v677, %v726
        %v979 = vcombine.low %v775, %v824
        %v981 = vunpack.c.l.s4 1966171168
        %v982 = vunpack.c.0.s8 %v981
        %v983 = vlaneseq
        %v984 = vshrl.u32 %v983, 7
        %v985 = vsub.s32 %v982, %v984
        %v986 = vrot.slane %v978, %v985
        %v988 = vunpack.c.l.s4 1966171168
        %v989 = vunpack.c.0.s8 %v988
        %v990 = vlaneseq
        %v991 = vshrl.u32 %v990, 7
        %v992 = vsub.s32 %v989, %v991
        %v993 = vrot.slane %v979, %v992
        %v994 = vcombine.low %v986, %v993
        %v996 = vunpack.c.l.s4 1966171168
        %v997 = vunpack.c.0.s8 %v996
        %v998 = vlaneseq
        %v999 = vshrl.u32 %v998, 7
        %v1000 = vsub.s32 %v997, %v999
        %v1001 = vrot.slane %v994, %v1000
        %v1002 = vcombine.low %v674, %v723
        %v1003 = vcombine.low %v772, %v821
        %v1005 = vunpack.c.l.s4 1966171168
        %v1006 = vunpack.c.0.s8 %v1005
        %v1007 = vlaneseq
        %v1008 = vshrl.u32 %v1007, 7
        %v1009 = vsub.s32 %v1006, %v1008
        %v1010 = vrot.slane %v1002, %v1009
        %v1012 = vunpack.c.l.s4 1966171168
        %v1013 = vunpack.c.0.s8 %v1012
        %v1014 = vlaneseq
        %v1015 = vshrl.u32 %v1014, 7
        %v1016 = vsub.s32 %v1013, %v1015
        %v1017 = vrot.slane %v1003, %v1016
        %v1018 = vcombine.low %v1010, %v1017
        %v1020 = vunpack.c.l.s4 1966171168
        %v1021 = vunpack.c.0.s8 %v1020
        %v1022 = vlaneseq
        %v1023 = vshrl.u32 %v1022, 7
        %v1024 = vsub.s32 %v1021, %v1023
        %v1025 = vrot.slane %v1018, %v1024
        %v1026 = vcombine.low %v678, %v727
        %v1027 = vcombine.low %v776, %v825
        %v1029 = vunpack.c.l.s4 1966171168
        %v1030 = vunpack.c.0.s8 %v1029
        %v1031 = vlaneseq
        %v1032 = vshrl.u32 %v1031, 7
        %v1033 = vsub.s32 %v1030, %v1032
        %v1034 = vrot.slane %v1026, %v1033
        %v1036 = vunpack.c.l.s4 1966171168
        %v1037 = vunpack.c.0.s8 %v1036
        %v1038 = vlaneseq
        %v1039 = vshrl.u32 %v1038, 7
        %v1040 = vsub.s32 %v1037, %v1039
        %v1041 = vrot.slane %v1027, %v1040
        %v1042 = vcombine.low %v1034, %v1041
        %v1044 = vunpack.c.l.s4 1966171168
        %v1045 = vunpack.c.0.s8 %v1044
        %v1046 = vlaneseq
        %v1047 = vshrl.u32 %v1046, 7
        %v1048 = vsub.s32 %v1045, %v1047
        %v1049 = vrot.slane %v1042, %v1048
        %v1058 = vlaneseq
        %vm1059 = vcmp.ge.s32.totalorder %v1058, 0
        %vm1060 = vcmp.lt.s32.totalorder %v1058, 512
        %vm1061 = vmand %vm1059, %vm1060
        %1062 = vst.msk [vmem:[#allocation2] sm:$0xf] %vm1061, %v881
        %1063 = vst.msk [vmem:[#allocation2 + $0x4] sm:$0xf] %vm1061, %v905
        %1064 = vst.msk [vmem:[#allocation2 + $0x8] sm:$0xf] %vm1061, %v929
        %1065 = vst.msk [vmem:[#allocation2 + $0xc] sm:$0xf] %vm1061, %v953
        %1066 = vst.msk [vmem:[#allocation2 + $0x10] sm:$0xf] %vm1061, %v977
        %1067 = vst.msk [vmem:[#allocation2 + $0x14] sm:$0xf] %vm1061, %v1001
        %1068 = vst.msk [vmem:[#allocation2 + $0x18] sm:$0xf] %vm1061, %v1025
        %1069 = vst.msk [vmem:[#allocation2 + $0x1c] sm:$0xf] %vm1061, %v1049
        %v1070 = vld [vmem:[#allocation4] sm:$0x1]
        %v1071 = vld [vmem:[#allocation5] sm:$0x1]
        %v1072 = vld [vmem:[#allocation2] sm:$0xf]
        %v1073 = vld [vmem:[#allocation11 + $0x10] sm:$0xff]
        %v1074 = vld [vmem:[#allocation11 + $0x30] sm:$0xff]
        %v1075 = vld [vmem:[#allocation11 + $0x50] sm:$0xff]
        %v1076 = vld [vmem:[#allocation11 + $0x70] sm:$0xff]
        %v1077 = vld [vmem:[#allocation11 + $0x90] sm:$0xff]
        %v1078 = vld [vmem:[#allocation11 + $0xb0] sm:$0xff]
        %v1079 = vld [vmem:[#allocation11 + $0xd0] sm:$0xff]
        %v1080 = vld [vmem:[#allocation11 + $0xf0] sm:$0xff]
        %v1081 = vld [vmem:[#allocation11 + $0x110] sm:$0xff]
        %v1082 = vld [vmem:[#allocation11 + $0x130] sm:$0xff]
        %v1083 = vld [vmem:[#allocation11 + $0x150] sm:$0xff]
        %v1084 = vld [vmem:[#allocation11 + $0x170] sm:$0xff]
        %v1085 = vld [vmem:[#allocation11 + $0x190] sm:$0xff]
        %v1086 = vld [vmem:[#allocation11 + $0x1b0] sm:$0xff]
        %v1087 = vld [vmem:[#allocation11 + $0x1d0] sm:$0xff]
        %v1088 = vld [vmem:[#allocation11 + $0x1f0] sm:$0xff]
        %v1090 = vlaneseq
        %v1091 = vshrl.u32 %v1090, 7
        %v1092 = vsub.s32 2, %v1091
        %v1093 = vrot.slane %v1072, %v1092
        %1095 = vmatprep.subr.mxu0 0.0
        %1096 = vmatpush1.msra.mxu0 %v1073
        %1097 = vmatprep.subr.mxu0 0.0
        %1098 = vmatpush1.msra.mxu0 %v1074
        %1099 = vmatprep.subr.mxu0 0.0
        %1100 = vmatpush1.msra.mxu0 %v1075
        %1101 = vmatprep.subr.mxu0 0.0
        %1102 = vmatpush1.msra.mxu0 %v1076
        %1103 = vmatprep.subr.mxu0 0.0
        %1104 = vmatpush1.msra.mxu0 %v1077
        %1105 = vmatprep.subr.mxu0 0.0
        %1106 = vmatpush1.msra.mxu0 %v1078
        %1107 = vmatprep.subr.mxu0 0.0
        %1108 = vmatpush1.msra.mxu0 %v1079
        %1109 = vmatprep.subr.mxu0 0.0
        %1110 = vmatpush1.msra.mxu0 %v1080
        %1111 = vmatprep.subr.mxu0 0.0
        %1112 = vmatpush1.msra.mxu0 %v1081
        %1113 = vmatprep.subr.mxu0 0.0
        %1114 = vmatpush1.msra.mxu0 %v1082
        %1115 = vmatprep.subr.mxu0 0.0
        %1116 = vmatpush1.msra.mxu0 %v1083
        %1117 = vmatprep.subr.mxu0 0.0
        %1118 = vmatpush1.msra.mxu0 %v1084
        %1119 = vmatprep.subr.mxu0 0.0
        %1120 = vmatpush1.msra.mxu0 %v1085
        %1121 = vmatprep.subr.mxu0 0.0
        %1122 = vmatpush1.msra.mxu0 %v1086
        %1123 = vmatprep.subr.mxu0 0.0
        %1124 = vmatpush1.msra.mxu0 %v1087
        %1125 = vmatprep.subr.mxu0 0.0
        %1126 = vmatpush1.msra.mxu0 %v1088
        %1127 = vmatprep.subr.mxu0 0.0
        %1128 = vmatpush1.msra.mxu0 0.0
        %1129 = vmatprep.subr.mxu0 0.0
        %1130 = vmatpush1.msra.mxu0 0.0
        %1131 = vmatprep.subr.mxu0 0.0
        %1132 = vmatpush1.msra.mxu0 0.0
        %1133 = vmatprep.subr.mxu0 0.0
        %1134 = vmatpush1.msra.mxu0 0.0
        %1135 = vmatprep.subr.mxu0 0.0
        %1136 = vmatpush1.msra.mxu0 0.0
        %1137 = vmatprep.subr.mxu0 0.0
        %1138 = vmatpush1.msra.mxu0 0.0
        %1139 = vmatprep.subr.mxu0 0.0
        %1140 = vmatpush1.msra.mxu0 0.0
        %1141 = vmatprep.subr.mxu0 0.0
        %1142 = vmatpush1.msra.mxu0 0.0
        %1143 = vmatprep.subr.mxu0 0.0
        %1144 = vmatpush1.msra.mxu0 0.0
        %1145 = vmatprep.subr.mxu0 0.0
        %1146 = vmatpush1.msra.mxu0 0.0
        %1147 = vmatprep.subr.mxu0 0.0
        %1148 = vmatpush1.msra.mxu0 0.0
        %1149 = vmatprep.subr.mxu0 0.0
        %1150 = vmatpush1.msra.mxu0 0.0
        %1151 = vmatprep.subr.mxu0 0.0
        %1152 = vmatpush1.msra.mxu0 0.0
        %1153 = vmatprep.subr.mxu0 0.0
        %1154 = vmatpush1.msra.mxu0 0.0
        %1155 = vmatprep.subr.mxu0 0.0
        %1156 = vmatpush1.msra.mxu0 0.0
        %1157 = vmatprep.subr.mxu0 0.0
        %1158 = vmatpush1.msra.mxu0 0.0
        %1159 = vmatprep.mubr.f32.mxu0 0.0
        %1160 = vmatmul.mubr.f32.gmra.mrb[0].mxu0 %v1070
        %v1161 = vpop.f32.mrb[0].mxu0
        %v1162 = vadd.f32 %v1093, %v1161
        %v1163 = vpop.f32.mrb[0].mxu0
        %1164 = vdwg.mxu0
        %v1165 = vtanh.pop %v1162
        %v1166 = vld [vmem:[#allocation11] sm:$0xff]
        %v1167 = vld [vmem:[#allocation11 + $0x20] sm:$0xff]
        %v1168 = vld [vmem:[#allocation11 + $0x40] sm:$0xff]
        %v1169 = vld [vmem:[#allocation11 + $0x60] sm:$0xff]
        %v1170 = vld [vmem:[#allocation11 + $0x80] sm:$0xff]
        %v1171 = vld [vmem:[#allocation11 + $0xa0] sm:$0xff]
        %v1172 = vld [vmem:[#allocation11 + $0xc0] sm:$0xff]
        %v1173 = vld [vmem:[#allocation11 + $0xe0] sm:$0xff]
        %v1174 = vld [vmem:[#allocation11 + $0x100] sm:$0xff]
        %v1175 = vld [vmem:[#allocation11 + $0x120] sm:$0xff]
        %v1176 = vld [vmem:[#allocation11 + $0x140] sm:$0xff]
        %v1177 = vld [vmem:[#allocation11 + $0x160] sm:$0xff]
        %v1178 = vld [vmem:[#allocation11 + $0x180] sm:$0xff]
        %v1179 = vld [vmem:[#allocation11 + $0x1a0] sm:$0xff]
        %v1180 = vld [vmem:[#allocation11 + $0x1c0] sm:$0xff]
        %v1181 = vld [vmem:[#allocation11 + $0x1e0] sm:$0xff]
        %1182 = vmatprep.subr.mxu0 0.0
        %1183 = vmatpush1.msra.mxu0 %v1166
        %1184 = vmatprep.subr.mxu0 0.0
        %1185 = vmatpush1.msra.mxu0 %v1167
        %1186 = vmatprep.subr.mxu0 0.0
        %1187 = vmatpush1.msra.mxu0 %v1168
        %1188 = vmatprep.subr.mxu0 0.0
        %1189 = vmatpush1.msra.mxu0 %v1169
        %1190 = vmatprep.subr.mxu0 0.0
        %1191 = vmatpush1.msra.mxu0 %v1170
        %1192 = vmatprep.subr.mxu0 0.0
        %1193 = vmatpush1.msra.mxu0 %v1171
        %1194 = vmatprep.subr.mxu0 0.0
        %1195 = vmatpush1.msra.mxu0 %v1172
        %1196 = vmatprep.subr.mxu0 0.0
        %1197 = vmatpush1.msra.mxu0 %v1173
        %1198 = vmatprep.subr.mxu0 0.0
        %1199 = vmatpush1.msra.mxu0 %v1174
        %1200 = vmatprep.subr.mxu0 0.0
        %1201 = vmatpush1.msra.mxu0 %v1175
        %1202 = vmatprep.subr.mxu0 0.0
        %1203 = vmatpush1.msra.mxu0 %v1176
        %1204 = vmatprep.subr.mxu0 0.0
        %1205 = vmatpush1.msra.mxu0 %v1177
        %1206 = vmatprep.subr.mxu0 0.0
        %1207 = vmatpush1.msra.mxu0 %v1178
        %1208 = vmatprep.subr.mxu0 0.0
        %1209 = vmatpush1.msra.mxu0 %v1179
        %1210 = vmatprep.subr.mxu0 0.0
        %1211 = vmatpush1.msra.mxu0 %v1180
        %1212 = vmatprep.subr.mxu0 0.0
        %1213 = vmatpush1.msra.mxu0 %v1181
        %1214 = vmatprep.subr.mxu0 0.0
        %1215 = vmatpush1.msra.mxu0 0.0
        %1216 = vmatprep.subr.mxu0 0.0
        %1217 = vmatpush1.msra.mxu0 0.0
        %1218 = vmatprep.subr.mxu0 0.0
        %1219 = vmatpush1.msra.mxu0 0.0
        %1220 = vmatprep.subr.mxu0 0.0
        %1221 = vmatpush1.msra.mxu0 0.0
        %1222 = vmatprep.subr.mxu0 0.0
        %1223 = vmatpush1.msra.mxu0 0.0
        %1224 = vmatprep.subr.mxu0 0.0
        %1225 = vmatpush1.msra.mxu0 0.0
        %1226 = vmatprep.subr.mxu0 0.0
        %1227 = vmatpush1.msra.mxu0 0.0
        %1228 = vmatprep.subr.mxu0 0.0
        %1229 = vmatpush1.msra.mxu0 0.0
        %1230 = vmatprep.subr.mxu0 0.0
        %1231 = vmatpush1.msra.mxu0 0.0
        %1232 = vmatprep.subr.mxu0 0.0
        %1233 = vmatpush1.msra.mxu0 0.0
        %1234 = vmatprep.subr.mxu0 0.0
        %1235 = vmatpush1.msra.mxu0 0.0
        %1236 = vmatprep.subr.mxu0 0.0
        %1237 = vmatpush1.msra.mxu0 0.0
        %1238 = vmatprep.subr.mxu0 0.0
        %1239 = vmatpush1.msra.mxu0 0.0
        %1240 = vmatprep.subr.mxu0 0.0
        %1241 = vmatpush1.msra.mxu0 0.0
        %1242 = vmatprep.subr.mxu0 0.0
        %1243 = vmatpush1.msra.mxu0 0.0
        %1244 = vmatprep.subr.mxu0 0.0
        %1245 = vmatpush1.msra.mxu0 0.0
        %1246 = vmatprep.mubr.f32.mxu0 0.0
        %1247 = vmatmul.mubr.f32.gmra.mrb[0].mxu0 %v1070
        %v1248 = vpop.f32.mrb[0].mxu0
        %v1249 = vadd.f32 %v1072, %v1248
        %v1250 = vpop.f32.mrb[0].mxu0
        %1251 = vdwg.mxu0
        %v1252 = vmul.f32 %v1249, 0.5
        %v1253 = vtanh.pop %v1252
        %v1254 = vadd.f32 %v1253, 1.0
        %v1255 = vmul.f32 %v1254, 0.5
        %v1256 = vmul.f32 %v1255, %v1165
        %v1257 = vld [vmem:[#allocation11 + $0x8] sm:$0xff]
        %v1258 = vld [vmem:[#allocation11 + $0x28] sm:$0xff]
        %v1259 = vld [vmem:[#allocation11 + $0x48] sm:$0xff]
        %v1260 = vld [vmem:[#allocation11 + $0x68] sm:$0xff]
        %v1261 = vld [vmem:[#allocation11 + $0x88] sm:$0xff]
        %v1262 = vld [vmem:[#allocation11 + $0xa8] sm:$0xff]
        %v1263 = vld [vmem:[#allocation11 + $0xc8] sm:$0xff]
        %v1264 = vld [vmem:[#allocation11 + $0xe8] sm:$0xff]
        %v1265 = vld [vmem:[#allocation11 + $0x108] sm:$0xff]
        %v1266 = vld [vmem:[#allocation11 + $0x128] sm:$0xff]
        %v1267 = vld [vmem:[#allocation11 + $0x148] sm:$0xff]
        %v1268 = vld [vmem:[#allocation11 + $0x168] sm:$0xff]
        %v1269 = vld [vmem:[#allocation11 + $0x188] sm:$0xff]
        %v1270 = vld [vmem:[#allocation11 + $0x1a8] sm:$0xff]
        %v1271 = vld [vmem:[#allocation11 + $0x1c8] sm:$0xff]
        %v1272 = vld [vmem:[#allocation11 + $0x1e8] sm:$0xff]
        %v1273 = vlaneseq
        %v1274 = vshrl.u32 %v1273, 7
        %v1275 = vsub.s32 1, %v1274
        %v1276 = vrot.slane %v1072, %v1275
        %1278 = vmatprep.subr.mxu0 0.0
        %1279 = vmatpush1.msra.mxu0 %v1257
        %1280 = vmatprep.subr.mxu0 0.0
        %1281 = vmatpush1.msra.mxu0 %v1258
        %1282 = vmatprep.subr.mxu0 0.0
        %1283 = vmatpush1.msra.mxu0 %v1259
        %1284 = vmatprep.subr.mxu0 0.0
        %1285 = vmatpush1.msra.mxu0 %v1260
        %1286 = vmatprep.subr.mxu0 0.0
        %1287 = vmatpush1.msra.mxu0 %v1261
        %1288 = vmatprep.subr.mxu0 0.0
        %1289 = vmatpush1.msra.mxu0 %v1262
        %1290 = vmatprep.subr.mxu0 0.0
        %1291 = vmatpush1.msra.mxu0 %v1263
        %1292 = vmatprep.subr.mxu0 0.0
        %1293 = vmatpush1.msra.mxu0 %v1264
        %1294 = vmatprep.subr.mxu0 0.0
        %1295 = vmatpush1.msra.mxu0 %v1265
        %1296 = vmatprep.subr.mxu0 0.0
        %1297 = vmatpush1.msra.mxu0 %v1266
        %1298 = vmatprep.subr.mxu0 0.0
        %1299 = vmatpush1.msra.mxu0 %v1267
        %1300 = vmatprep.subr.mxu0 0.0
        %1301 = vmatpush1.msra.mxu0 %v1268
        %1302 = vmatprep.subr.mxu0 0.0
        %1303 = vmatpush1.msra.mxu0 %v1269
        %1304 = vmatprep.subr.mxu0 0.0
        %1305 = vmatpush1.msra.mxu0 %v1270
        %1306 = vmatprep.subr.mxu0 0.0
        %1307 = vmatpush1.msra.mxu0 %v1271
        %1308 = vmatprep.subr.mxu0 0.0
        %1309 = vmatpush1.msra.mxu0 %v1272
        %1310 = vmatprep.subr.mxu0 0.0
        %1311 = vmatpush1.msra.mxu0 0.0
        %1312 = vmatprep.subr.mxu0 0.0
        %1313 = vmatpush1.msra.mxu0 0.0
        %1314 = vmatprep.subr.mxu0 0.0
        %1315 = vmatpush1.msra.mxu0 0.0
        %1316 = vmatprep.subr.mxu0 0.0
        %1317 = vmatpush1.msra.mxu0 0.0
        %1318 = vmatprep.subr.mxu0 0.0
        %1319 = vmatpush1.msra.mxu0 0.0
        %1320 = vmatprep.subr.mxu0 0.0
        %1321 = vmatpush1.msra.mxu0 0.0
        %1322 = vmatprep.subr.mxu0 0.0
        %1323 = vmatpush1.msra.mxu0 0.0
        %1324 = vmatprep.subr.mxu0 0.0
        %1325 = vmatpush1.msra.mxu0 0.0
        %1326 = vmatprep.subr.mxu0 0.0
        %1327 = vmatpush1.msra.mxu0 0.0
        %1328 = vmatprep.subr.mxu0 0.0
        %1329 = vmatpush1.msra.mxu0 0.0
        %1330 = vmatprep.subr.mxu0 0.0
        %1331 = vmatpush1.msra.mxu0 0.0
        %1332 = vmatprep.subr.mxu0 0.0
        %1333 = vmatpush1.msra.mxu0 0.0
        %1334 = vmatprep.subr.mxu0 0.0
        %1335 = vmatpush1.msra.mxu0 0.0
        %1336 = vmatprep.subr.mxu0 0.0
        %1337 = vmatpush1.msra.mxu0 0.0
        %1338 = vmatprep.subr.mxu0 0.0
        %1339 = vmatpush1.msra.mxu0 0.0
        %1340 = vmatprep.subr.mxu0 0.0
        %1341 = vmatpush1.msra.mxu0 0.0
        %1342 = vmatprep.mubr.f32.mxu0 0.0
        %1343 = vmatmul.mubr.f32.gmra.mrb[0].mxu0 %v1070
        %v1344 = vpop.f32.mrb[0].mxu0
        %v1345 = vadd.f32 %v1276, %v1344
        %v1346 = vpop.f32.mrb[0].mxu0
        %1347 = vdwg.mxu0
        %v1348 = vmul.f32 %v1345, 0.5
        %v1349 = vtanh.pop %v1348
        %v1350 = vadd.f32 %v1349, 1.0
        %v1351 = vmul.f32 %v1350, 0.5
        %v1352 = vmul.f32 %v1351, %v1071
        %v1353 = vadd.f32 %v1352, %v1256
        %v1354 = vld [vmem:[#allocation11 + $0x18] sm:$0xff]
        %v1355 = vld [vmem:[#allocation11 + $0x38] sm:$0xff]
        %v1356 = vld [vmem:[#allocation11 + $0x58] sm:$0xff]
        %v1357 = vld [vmem:[#allocation11 + $0x78] sm:$0xff]
        %v1358 = vld [vmem:[#allocation11 + $0x98] sm:$0xff]
        %v1359 = vld [vmem:[#allocation11 + $0xb8] sm:$0xff]
        %v1360 = vld [vmem:[#allocation11 + $0xd8] sm:$0xff]
        %v1361 = vld [vmem:[#allocation11 + $0xf8] sm:$0xff]
        %v1362 = vld [vmem:[#allocation11 + $0x118] sm:$0xff]
        %v1363 = vld [vmem:[#allocation11 + $0x138] sm:$0xff]
        %v1364 = vld [vmem:[#allocation11 + $0x158] sm:$0xff]
        %v1365 = vld [vmem:[#allocation11 + $0x178] sm:$0xff]
        %v1366 = vld [vmem:[#allocation11 + $0x198] sm:$0xff]
        %v1367 = vld [vmem:[#allocation11 + $0x1b8] sm:$0xff]
        %v1368 = vld [vmem:[#allocation11 + $0x1d8] sm:$0xff]
        %v1369 = vld [vmem:[#allocation11 + $0x1f8] sm:$0xff]
        %v1370 = vlaneseq
        %v1371 = vshrl.u32 %v1370, 7
        %v1372 = vsub.s32 3, %v1371
        %v1373 = vrot.slane %v1072, %v1372
        %1375 = vmatprep.subr.mxu0 0.0
        %1376 = vmatpush1.msra.mxu0 %v1354
        %1377 = vmatprep.subr.mxu0 0.0
        %1378 = vmatpush1.msra.mxu0 %v1355
        %1379 = vmatprep.subr.mxu0 0.0
        %1380 = vmatpush1.msra.mxu0 %v1356
        %1381 = vmatprep.subr.mxu0 0.0
        %1382 = vmatpush1.msra.mxu0 %v1357
        %1383 = vmatprep.subr.mxu0 0.0
        %1384 = vmatpush1.msra.mxu0 %v1358
        %1385 = vmatprep.subr.mxu0 0.0
        %1386 = vmatpush1.msra.mxu0 %v1359
        %1387 = vmatprep.subr.mxu0 0.0
        %1388 = vmatpush1.msra.mxu0 %v1360
        %1389 = vmatprep.subr.mxu0 0.0
        %1390 = vmatpush1.msra.mxu0 %v1361
        %1391 = vmatprep.subr.mxu0 0.0
        %1392 = vmatpush1.msra.mxu0 %v1362
        %1393 = vmatprep.subr.mxu0 0.0
        %1394 = vmatpush1.msra.mxu0 %v1363
        %1395 = vmatprep.subr.mxu0 0.0
        %1396 = vmatpush1.msra.mxu0 %v1364
        %1397 = vmatprep.subr.mxu0 0.0
        %1398 = vmatpush1.msra.mxu0 %v1365
        %1399 = vmatprep.subr.mxu0 0.0
        %1400 = vmatpush1.msra.mxu0 %v1366
        %1401 = vmatprep.subr.mxu0 0.0
        %1402 = vmatpush1.msra.mxu0 %v1367
        %1403 = vmatprep.subr.mxu0 0.0
        %1404 = vmatpush1.msra.mxu0 %v1368
        %1405 = vmatprep.subr.mxu0 0.0
        %1406 = vmatpush1.msra.mxu0 %v1369
        %1407 = vmatprep.subr.mxu0 0.0
        %1408 = vmatpush1.msra.mxu0 0.0
        %1409 = vmatprep.subr.mxu0 0.0
        %1410 = vmatpush1.msra.mxu0 0.0
        %1411 = vmatprep.subr.mxu0 0.0
        %1412 = vmatpush1.msra.mxu0 0.0
        %1413 = vmatprep.subr.mxu0 0.0
        %1414 = vmatpush1.msra.mxu0 0.0
        %1415 = vmatprep.subr.mxu0 0.0
        %1416 = vmatpush1.msra.mxu0 0.0
        %1417 = vmatprep.subr.mxu0 0.0
        %1418 = vmatpush1.msra.mxu0 0.0
        %1419 = vmatprep.subr.mxu0 0.0
        %1420 = vmatpush1.msra.mxu0 0.0
        %1421 = vmatprep.subr.mxu0 0.0
        %1422 = vmatpush1.msra.mxu0 0.0
        %1423 = vmatprep.subr.mxu0 0.0
        %1424 = vmatpush1.msra.mxu0 0.0
        %1425 = vmatprep.subr.mxu0 0.0
        %1426 = vmatpush1.msra.mxu0 0.0
        %1427 = vmatprep.subr.mxu0 0.0
        %1428 = vmatpush1.msra.mxu0 0.0
        %1429 = vmatprep.subr.mxu0 0.0
        %1430 = vmatpush1.msra.mxu0 0.0
        %1431 = vmatprep.subr.mxu0 0.0
        %1432 = vmatpush1.msra.mxu0 0.0
        %1433 = vmatprep.subr.mxu0 0.0
        %1434 = vmatpush1.msra.mxu0 0.0
        %1435 = vmatprep.subr.mxu0 0.0
        %1436 = vmatpush1.msra.mxu0 0.0
        %1437 = vmatprep.subr.mxu0 0.0
        %1438 = vmatpush1.msra.mxu0 0.0
        %1439 = vmatprep.mubr.f32.mxu0 0.0
        %1440 = vmatmul.mubr.f32.gmra.mrb[0].mxu0 %v1070
        %v1441 = vpop.f32.mrb[0].mxu0
        %v1442 = vadd.f32 %v1373, %v1441
        %v1443 = vpop.f32.mrb[0].mxu0
        %1444 = vdwg.mxu0
        %v1445 = vmul.f32 %v1442, 0.5
        %v1446 = vtanh.pop %v1445
        %v1447 = vadd.f32 %v1446, 1.0
        %v1448 = vmul.f32 %v1447, 0.5
        %v1449 = vtanh.pop %v1353
        %v1450 = vmul.f32 %v1448, %v1449
        %1451 = vst [vmem:[#allocation3] sm:$0x1] %v1450
        %s1452 = scalar_lea.vmem [#allocation2], 4
        %v1453 = vld [vmem:[%s1452] sm:$0xf]
        %v1454 = vld [vmem:[#allocation11 + $0x10] sm:$0xff]
        %v1455 = vld [vmem:[#allocation11 + $0x30] sm:$0xff]
        %v1456 = vld [vmem:[#allocation11 + $0x50] sm:$0xff]
        %v1457 = vld [vmem:[#allocation11 + $0x70] sm:$0xff]
        %v1458 = vld [vmem:[#allocation11 + $0x90] sm:$0xff]
        %v1459 = vld [vmem:[#allocation11 + $0xb0] sm:$0xff]
        %v1460 = vld [vmem:[#allocation11 + $0xd0] sm:$0xff]
        %v1461 = vld [vmem:[#allocation11 + $0xf0] sm:$0xff]
        %v1462 = vld [vmem:[#allocation11 + $0x110] sm:$0xff]
        %v1463 = vld [vmem:[#allocation11 + $0x130] sm:$0xff]
        %v1464 = vld [vmem:[#allocation11 + $0x150] sm:$0xff]
        %v1465 = vld [vmem:[#allocation11 + $0x170] sm:$0xff]
        %v1466 = vld [vmem:[#allocation11 + $0x190] sm:$0xff]
        %v1467 = vld [vmem:[#allocation11 + $0x1b0] sm:$0xff]
        %v1468 = vld [vmem:[#allocation11 + $0x1d0] sm:$0xff]
        %v1469 = vld [vmem:[#allocation11 + $0x1f0] sm:$0xff]
        %v1471 = vlaneseq
        %v1472 = vshrl.u32 %v1471, 7
        %v1473 = vsub.s32 2, %v1472
        %v1474 = vrot.slane %v1453, %v1473
        %1476 = vmatprep.subr.mxu0 0.0
        %1477 = vmatpush1.msra.mxu0 %v1454
        %1478 = vmatprep.subr.mxu0 0.0
        %1479 = vmatpush1.msra.mxu0 %v1455
        %1480 = vmatprep.subr.mxu0 0.0
        %1481 = vmatpush1.msra.mxu0 %v1456
        %1482 = vmatprep.subr.mxu0 0.0
        %1483 = vmatpush1.msra.mxu0 %v1457
        %1484 = vmatprep.subr.mxu0 0.0
        %1485 = vmatpush1.msra.mxu0 %v1458
        %1486 = vmatprep.subr.mxu0 0.0
        %1487 = vmatpush1.msra.mxu0 %v1459
        %1488 = vmatprep.subr.mxu0 0.0
        %1489 = vmatpush1.msra.mxu0 %v1460
        %1490 = vmatprep.subr.mxu0 0.0
        %1491 = vmatpush1.msra.mxu0 %v1461
        %1492 = vmatprep.subr.mxu0 0.0
        %1493 = vmatpush1.msra.mxu0 %v1462
        %1494 = vmatprep.subr.mxu0 0.0
        %1495 = vmatpush1.msra.mxu0 %v1463
        %1496 = vmatprep.subr.mxu0 0.0
        %1497 = vmatpush1.msra.mxu0 %v1464
        %1498 = vmatprep.subr.mxu0 0.0
        %1499 = vmatpush1.msra.mxu0 %v1465
        %1500 = vmatprep.subr.mxu0 0.0
        %1501 = vmatpush1.msra.mxu0 %v1466
        %1502 = vmatprep.subr.mxu0 0.0
        %1503 = vmatpush1.msra.mxu0 %v1467
        %1504 = vmatprep.subr.mxu0 0.0
        %1505 = vmatpush1.msra.mxu0 %v1468
        %1506 = vmatprep.subr.mxu0 0.0
        %1507 = vmatpush1.msra.mxu0 %v1469
        %1508 = vmatprep.subr.mxu0 0.0
        %1509 = vmatpush1.msra.mxu0 0.0
        %1510 = vmatprep.subr.mxu0 0.0
        %1511 = vmatpush1.msra.mxu0 0.0
        %1512 = vmatprep.subr.mxu0 0.0
        %1513 = vmatpush1.msra.mxu0 0.0
        %1514 = vmatprep.subr.mxu0 0.0
        %1515 = vmatpush1.msra.mxu0 0.0
        %1516 = vmatprep.subr.mxu0 0.0
        %1517 = vmatpush1.msra.mxu0 0.0
        %1518 = vmatprep.subr.mxu0 0.0
        %1519 = vmatpush1.msra.mxu0 0.0
        %1520 = vmatprep.subr.mxu0 0.0
        %1521 = vmatpush1.msra.mxu0 0.0
        %1522 = vmatprep.subr.mxu0 0.0
        %1523 = vmatpush1.msra.mxu0 0.0
        %1524 = vmatprep.subr.mxu0 0.0
        %1525 = vmatpush1.msra.mxu0 0.0
        %1526 = vmatprep.subr.mxu0 0.0
        %1527 = vmatpush1.msra.mxu0 0.0
        %1528 = vmatprep.subr.mxu0 0.0
        %1529 = vmatpush1.msra.mxu0 0.0
        %1530 = vmatprep.subr.mxu0 0.0
        %1531 = vmatpush1.msra.mxu0 0.0
        %1532 = vmatprep.subr.mxu0 0.0
        %1533 = vmatpush1.msra.mxu0 0.0
        %1534 = vmatprep.subr.mxu0 0.0
        %1535 = vmatpush1.msra.mxu0 0.0
        %1536 = vmatprep.subr.mxu0 0.0
        %1537 = vmatpush1.msra.mxu0 0.0
        %1538 = vmatprep.subr.mxu0 0.0
        %1539 = vmatpush1.msra.mxu0 0.0
        %1540 = vmatprep.mubr.f32.mxu0 0.0
        %1541 = vmatmul.mubr.f32.gmra.mrb[0].mxu0 %v1450
        %v1542 = vpop.f32.mrb[0].mxu0
        %v1543 = vadd.f32 %v1474, %v1542
        %v1544 = vpop.f32.mrb[0].mxu0
        %1545 = vdwg.mxu0
        %v1546 = vtanh.pop %v1543
        %v1547 = vld [vmem:[#allocation11] sm:$0xff]
        %v1548 = vld [vmem:[#allocation11 + $0x20] sm:$0xff]
        %v1549 = vld [vmem:[#allocation11 + $0x40] sm:$0xff]
        %v1550 = vld [vmem:[#allocation11 + $0x60] sm:$0xff]
        %v1551 = vld [vmem:[#allocation11 + $0x80] sm:$0xff]
        %v1552 = vld [vmem:[#allocation11 + $0xa0] sm:$0xff]
        %v1553 = vld [vmem:[#allocation11 + $0xc0] sm:$0xff]
        %v1554 = vld [vmem:[#allocation11 + $0xe0] sm:$0xff]
        %v1555 = vld [vmem:[#allocation11 + $0x100] sm:$0xff]
        %v1556 = vld [vmem:[#allocation11 + $0x120] sm:$0xff]
        %v1557 = vld [vmem:[#allocation11 + $0x140] sm:$0xff]
        %v1558 = vld [vmem:[#allocation11 + $0x160] sm:$0xff]
        %v1559 = vld [vmem:[#allocation11 + $0x180] sm:$0xff]
        %v1560 = vld [vmem:[#allocation11 + $0x1a0] sm:$0xff]
        %v1561 = vld [vmem:[#allocation11 + $0x1c0] sm:$0xff]
        %v1562 = vld [vmem:[#allocation11 + $0x1e0] sm:$0xff]
        %1563 = vmatprep.subr.mxu0 0.0
        %1564 = vmatpush1.msra.mxu0 %v1547
        %1565 = vmatprep.subr.mxu0 0.0
        %1566 = vmatpush1.msra.mxu0 %v1548
        %1567 = vmatprep.subr.mxu0 0.0
        %1568 = vmatpush1.msra.mxu0 %v1549
        %1569 = vmatprep.subr.mxu0 0.0
        %1570 = vmatpush1.msra.mxu0 %v1550
        %1571 = vmatprep.subr.mxu0 0.0
        %1572 = vmatpush1.msra.mxu0 %v1551
        %1573 = vmatprep.subr.mxu0 0.0
        %1574 = vmatpush1.msra.mxu0 %v1552
        %1575 = vmatprep.subr.mxu0 0.0
        %1576 = vmatpush1.msra.mxu0 %v1553
        %1577 = vmatprep.subr.mxu0 0.0
        %1578 = vmatpush1.msra.mxu0 %v1554
        %1579 = vmatprep.subr.mxu0 0.0
        %1580 = vmatpush1.msra.mxu0 %v1555
        %1581 = vmatprep.subr.mxu0 0.0
        %1582 = vmatpush1.msra.mxu0 %v1556
        %1583 = vmatprep.subr.mxu0 0.0
        %1584 = vmatpush1.msra.mxu0 %v1557
        %1585 = vmatprep.subr.mxu0 0.0
        %1586 = vmatpush1.msra.mxu0 %v1558
        %1587 = vmatprep.subr.mxu0 0.0
        %1588 = vmatpush1.msra.mxu0 %v1559
        %1589 = vmatprep.subr.mxu0 0.0
        %1590 = vmatpush1.msra.mxu0 %v1560
        %1591 = vmatprep.subr.mxu0 0.0
        %1592 = vmatpush1.msra.mxu0 %v1561
        %1593 = vmatprep.subr.mxu0 0.0
        %1594 = vmatpush1.msra.mxu0 %v1562
        %1595 = vmatprep.subr.mxu0 0.0
        %1596 = vmatpush1.msra.mxu0 0.0
        %1597 = vmatprep.subr.mxu0 0.0
        %1598 = vmatpush1.msra.mxu0 0.0
        %1599 = vmatprep.subr.mxu0 0.0
        %1600 = vmatpush1.msra.mxu0 0.0
        %1601 = vmatprep.subr.mxu0 0.0
        %1602 = vmatpush1.msra.mxu0 0.0
        %1603 = vmatprep.subr.mxu0 0.0
        %1604 = vmatpush1.msra.mxu0 0.0
        %1605 = vmatprep.subr.mxu0 0.0
        %1606 = vmatpush1.msra.mxu0 0.0
        %1607 = vmatprep.subr.mxu0 0.0
        %1608 = vmatpush1.msra.mxu0 0.0
        %1609 = vmatprep.subr.mxu0 0.0
        %1610 = vmatpush1.msra.mxu0 0.0
        %1611 = vmatprep.subr.mxu0 0.0
        %1612 = vmatpush1.msra.mxu0 0.0
        %1613 = vmatprep.subr.mxu0 0.0
        %1614 = vmatpush1.msra.mxu0 0.0
        %1615 = vmatprep.subr.mxu0 0.0
        %1616 = vmatpush1.msra.mxu0 0.0
        %1617 = vmatprep.subr.mxu0 0.0
        %1618 = vmatpush1.msra.mxu0 0.0
        %1619 = vmatprep.subr.mxu0 0.0
        %1620 = vmatpush1.msra.mxu0 0.0
        %1621 = vmatprep.subr.mxu0 0.0
        %1622 = vmatpush1.msra.mxu0 0.0
        %1623 = vmatprep.subr.mxu0 0.0
        %1624 = vmatpush1.msra.mxu0 0.0
        %1625 = vmatprep.subr.mxu0 0.0
        %1626 = vmatpush1.msra.mxu0 0.0
        %1627 = vmatprep.mubr.f32.mxu0 0.0
        %1628 = vmatmul.mubr.f32.gmra.mrb[0].mxu0 %v1450
        %v1629 = vpop.f32.mrb[0].mxu0
        %v1630 = vadd.f32 %v1453, %v1629
        %v1631 = vpop.f32.mrb[0].mxu0
        %1632 = vdwg.mxu0
        %v1633 = vmul.f32 %v1630, 0.5
        %v1634 = vtanh.pop %v1633
        %v1635 = vadd.f32 %v1634, 1.0
        %v1636 = vmul.f32 %v1635, 0.5
        %v1637 = vmul.f32 %v1636, %v1546
        %v1638 = vld [vmem:[#allocation11 + $0x8] sm:$0xff]
        %v1639 = vld [vmem:[#allocation11 + $0x28] sm:$0xff]
        %v1640 = vld [vmem:[#allocation11 + $0x48] sm:$0xff]
        %v1641 = vld [vmem:[#allocation11 + $0x68] sm:$0xff]
        %v1642 = vld [vmem:[#allocation11 + $0x88] sm:$0xff]
        %v1643 = vld [vmem:[#allocation11 + $0xa8] sm:$0xff]
        %v1644 = vld [vmem:[#allocation11 + $0xc8] sm:$0xff]
        %v1645 = vld [vmem:[#allocation11 + $0xe8] sm:$0xff]
        %v1646 = vld [vmem:[#allocation11 + $0x108] sm:$0xff]
        %v1647 = vld [vmem:[#allocation11 + $0x128] sm:$0xff]
        %v1648 = vld [vmem:[#allocation11 + $0x148] sm:$0xff]
        %v1649 = vld [vmem:[#allocation11 + $0x168] sm:$0xff]
        %v1650 = vld [vmem:[#allocation11 + $0x188] sm:$0xff]
        %v1651 = vld [vmem:[#allocation11 + $0x1a8] sm:$0xff]
        %v1652 = vld [vmem:[#allocation11 + $0x1c8] sm:$0xff]
        %v1653 = vld [vmem:[#allocation11 + $0x1e8] sm:$0xff]
        %v1654 = vlaneseq
        %v1655 = vshrl.u32 %v1654, 7
        %v1656 = vsub.s32 1, %v1655
        %v1657 = vrot.slane %v1453, %v1656
        %1659 = vmatprep.subr.mxu0 0.0
        %1660 = vmatpush1.msra.mxu0 %v1638
        %1661 = vmatprep.subr.mxu0 0.0
        %1662 = vmatpush1.msra.mxu0 %v1639
        %1663 = vmatprep.subr.mxu0 0.0
        %1664 = vmatpush1.msra.mxu0 %v1640
        %1665 = vmatprep.subr.mxu0 0.0
        %1666 = vmatpush1.msra.mxu0 %v1641
        %1667 = vmatprep.subr.mxu0 0.0
        %1668 = vmatpush1.msra.mxu0 %v1642
        %1669 = vmatprep.subr.mxu0 0.0
        %1670 = vmatpush1.msra.mxu0 %v1643
        %1671 = vmatprep.subr.mxu0 0.0
        %1672 = vmatpush1.msra.mxu0 %v1644
        %1673 = vmatprep.subr.mxu0 0.0
        %1674 = vmatpush1.msra.mxu0 %v1645
        %1675 = vmatprep.subr.mxu0 0.0
        %1676 = vmatpush1.msra.mxu0 %v1646
        %1677 = vmatprep.subr.mxu0 0.0
        %1678 = vmatpush1.msra.mxu0 %v1647
        %1679 = vmatprep.subr.mxu0 0.0
        %1680 = vmatpush1.msra.mxu0 %v1648
        %1681 = vmatprep.subr.mxu0 0.0
        %1682 = vmatpush1.msra.mxu0 %v1649
        %1683 = vmatprep.subr.mxu0 0.0
        %1684 = vmatpush1.msra.mxu0 %v1650
        %1685 = vmatprep.subr.mxu0 0.0
        %1686 = vmatpush1.msra.mxu0 %v1651
        %1687 = vmatprep.subr.mxu0 0.0
        %1688 = vmatpush1.msra.mxu0 %v1652
        %1689 = vmatprep.subr.mxu0 0.0
        %1690 = vmatpush1.msra.mxu0 %v1653
        %1691 = vmatprep.subr.mxu0 0.0
        %1692 = vmatpush1.msra.mxu0 0.0
        %1693 = vmatprep.subr.mxu0 0.0
        %1694 = vmatpush1.msra.mxu0 0.0
        %1695 = vmatprep.subr.mxu0 0.0
        %1696 = vmatpush1.msra.mxu0 0.0
        %1697 = vmatprep.subr.mxu0 0.0
        %1698 = vmatpush1.msra.mxu0 0.0
        %1699 = vmatprep.subr.mxu0 0.0
        %1700 = vmatpush1.msra.mxu0 0.0
        %1701 = vmatprep.subr.mxu0 0.0
        %1702 = vmatpush1.msra.mxu0 0.0
        %1703 = vmatprep.subr.mxu0 0.0
        %1704 = vmatpush1.msra.mxu0 0.0
        %1705 = vmatprep.subr.mxu0 0.0
        %1706 = vmatpush1.msra.mxu0 0.0
        %1707 = vmatprep.subr.mxu0 0.0
        %1708 = vmatpush1.msra.mxu0 0.0
        %1709 = vmatprep.subr.mxu0 0.0
        %1710 = vmatpush1.msra.mxu0 0.0
        %1711 = vmatprep.subr.mxu0 0.0
        %1712 = vmatpush1.msra.mxu0 0.0
        %1713 = vmatprep.subr.mxu0 0.0
        %1714 = vmatpush1.msra.mxu0 0.0
        %1715 = vmatprep.subr.mxu0 0.0
        %1716 = vmatpush1.msra.mxu0 0.0
        %1717 = vmatprep.subr.mxu0 0.0
        %1718 = vmatpush1.msra.mxu0 0.0
        %1719 = vmatprep.subr.mxu0 0.0
        %1720 = vmatpush1.msra.mxu0 0.0
        %1721 = vmatprep.subr.mxu0 0.0
        %1722 = vmatpush1.msra.mxu0 0.0
        %1723 = vmatprep.mubr.f32.mxu0 0.0
        %1724 = vmatmul.mubr.f32.gmra.mrb[0].mxu0 %v1450
        %v1725 = vpop.f32.mrb[0].mxu0
        %v1726 = vadd.f32 %v1657, %v1725
        %v1727 = vpop.f32.mrb[0].mxu0
        %1728 = vdwg.mxu0
        %v1729 = vmul.f32 %v1726, 0.5
        %v1730 = vtanh.pop %v1729
        %v1731 = vadd.f32 %v1730, 1.0
        %v1732 = vmul.f32 %v1731, 0.5
        %v1733 = vmul.f32 %v1732, %v1353
        %v1734 = vadd.f32 %v1733, %v1637
        %v1735 = vld [vmem:[#allocation11 + $0x18] sm:$0xff]
        %v1736 = vld [vmem:[#allocation11 + $0x38] sm:$0xff]
        %v1737 = vld [vmem:[#allocation11 + $0x58] sm:$0xff]
        %v1738 = vld [vmem:[#allocation11 + $0x78] sm:$0xff]
        %v1739 = vld [vmem:[#allocation11 + $0x98] sm:$0xff]
        %v1740 = vld [vmem:[#allocation11 + $0xb8] sm:$0xff]
        %v1741 = vld [vmem:[#allocation11 + $0xd8] sm:$0xff]
        %v1742 = vld [vmem:[#allocation11 + $0xf8] sm:$0xff]
        %v1743 = vld [vmem:[#allocation11 + $0x118] sm:$0xff]
        %v1744 = vld [vmem:[#allocation11 + $0x138] sm:$0xff]
        %v1745 = vld [vmem:[#allocation11 + $0x158] sm:$0xff]
        %v1746 = vld [vmem:[#allocation11 + $0x178] sm:$0xff]
        %v1747 = vld [vmem:[#allocation11 + $0x198] sm:$0xff]
        %v1748 = vld [vmem:[#allocation11 + $0x1b8] sm:$0xff]
        %v1749 = vld [vmem:[#allocation11 + $0x1d8] sm:$0xff]
        %v1750 = vld [vmem:[#allocation11 + $0x1f8] sm:$0xff]
        %v1751 = vlaneseq
        %v1752 = vshrl.u32 %v1751, 7
        %v1753 = vsub.s32 3, %v1752
        %v1754 = vrot.slane %v1453, %v1753
        %1756 = vmatprep.subr.mxu0 0.0
        %1757 = vmatpush1.msra.mxu0 %v1735
        %1758 = vmatprep.subr.mxu0 0.0
        %1759 = vmatpush1.msra.mxu0 %v1736
        %1760 = vmatprep.subr.mxu0 0.0
        %1761 = vmatpush1.msra.mxu0 %v1737
        %1762 = vmatprep.subr.mxu0 0.0
        %1763 = vmatpush1.msra.mxu0 %v1738
        %1764 = vmatprep.subr.mxu0 0.0
        %1765 = vmatpush1.msra.mxu0 %v1739
        %1766 = vmatprep.subr.mxu0 0.0
        %1767 = vmatpush1.msra.mxu0 %v1740
        %1768 = vmatprep.subr.mxu0 0.0
        %1769 = vmatpush1.msra.mxu0 %v1741
        %1770 = vmatprep.subr.mxu0 0.0
        %1771 = vmatpush1.msra.mxu0 %v1742
        %1772 = vmatprep.subr.mxu0 0.0
        %1773 = vmatpush1.msra.mxu0 %v1743
        %1774 = vmatprep.subr.mxu0 0.0
        %1775 = vmatpush1.msra.mxu0 %v1744
        %1776 = vmatprep.subr.mxu0 0.0
        %1777 = vmatpush1.msra.mxu0 %v1745
        %1778 = vmatprep.subr.mxu0 0.0
        %1779 = vmatpush1.msra.mxu0 %v1746
        %1780 = vmatprep.subr.mxu0 0.0
        %1781 = vmatpush1.msra.mxu0 %v1747
        %1782 = vmatprep.subr.mxu0 0.0
        %1783 = vmatpush1.msra.mxu0 %v1748
        %1784 = vmatprep.subr.mxu0 0.0
        %1785 = vmatpush1.msra.mxu0 %v1749
        %1786 = vmatprep.subr.mxu0 0.0
        %1787 = vmatpush1.msra.mxu0 %v1750
        %1788 = vmatprep.subr.mxu0 0.0
        %1789 = vmatpush1.msra.mxu0 0.0
        %1790 = vmatprep.subr.mxu0 0.0
        %1791 = vmatpush1.msra.mxu0 0.0
        %1792 = vmatprep.subr.mxu0 0.0
        %1793 = vmatpush1.msra.mxu0 0.0
        %1794 = vmatprep.subr.mxu0 0.0
        %1795 = vmatpush1.msra.mxu0 0.0
        %1796 = vmatprep.subr.mxu0 0.0
        %1797 = vmatpush1.msra.mxu0 0.0
        %1798 = vmatprep.subr.mxu0 0.0
        %1799 = vmatpush1.msra.mxu0 0.0
        %1800 = vmatprep.subr.mxu0 0.0
        %1801 = vmatpush1.msra.mxu0 0.0
        %1802 = vmatprep.subr.mxu0 0.0
        %1803 = vmatpush1.msra.mxu0 0.0
        %1804 = vmatprep.subr.mxu0 0.0
        %1805 = vmatpush1.msra.mxu0 0.0
        %1806 = vmatprep.subr.mxu0 0.0
        %1807 = vmatpush1.msra.mxu0 0.0
        %1808 = vmatprep.subr.mxu0 0.0
        %1809 = vmatpush1.msra.mxu0 0.0
        %1810 = vmatprep.subr.mxu0 0.0
        %1811 = vmatpush1.msra.mxu0 0.0
        %1812 = vmatprep.subr.mxu0 0.0
        %1813 = vmatpush1.msra.mxu0 0.0
        %1814 = vmatprep.subr.mxu0 0.0
        %1815 = vmatpush1.msra.mxu0 0.0
        %1816 = vmatprep.subr.mxu0 0.0
        %1817 = vmatpush1.msra.mxu0 0.0
        %1818 = vmatprep.subr.mxu0 0.0
        %1819 = vmatpush1.msra.mxu0 0.0
        %1820 = vmatprep.mubr.f32.mxu0 0.0
        %1821 = vmatmul.mubr.f32.gmra.mrb[0].mxu0 %v1450
        %v1822 = vpop.f32.mrb[0].mxu0
        %v1823 = vadd.f32 %v1754, %v1822
        %v1824 = vpop.f32.mrb[0].mxu0
        %1825 = vdwg.mxu0
        %v1826 = vmul.f32 %v1823, 0.5
        %v1827 = vtanh.pop %v1826
        %v1828 = vadd.f32 %v1827, 1.0
        %v1829 = vmul.f32 %v1828, 0.5
        %v1830 = vtanh.pop %v1734
        %v1831 = vmul.f32 %v1829, %v1830
        %s1832 = scalar_lea.vmem [#allocation3], 1
        %1833 = vst [vmem:[%s1832] sm:$0x1] %v1831
        %s1834 = scalar_lea.vmem [#allocation2], 8
        %v1835 = vld [vmem:[%s1834] sm:$0xf]
        %v1836 = vld [vmem:[#allocation11 + $0x10] sm:$0xff]
        %v1837 = vld [vmem:[#allocation11 + $0x30] sm:$0xff]
        %v1838 = vld [vmem:[#allocation11 + $0x50] sm:$0xff]
        %v1839 = vld [vmem:[#allocation11 + $0x70] sm:$0xff]
        %v1840 = vld [vmem:[#allocation11 + $0x90] sm:$0xff]
        %v1841 = vld [vmem:[#allocation11 + $0xb0] sm:$0xff]
        %v1842 = vld [vmem:[#allocation11 + $0xd0] sm:$0xff]
        %v1843 = vld [vmem:[#allocation11 + $0xf0] sm:$0xff]
        %v1844 = vld [vmem:[#allocation11 + $0x110] sm:$0xff]
        %v1845 = vld [vmem:[#allocation11 + $0x130] sm:$0xff]
        %v1846 = vld [vmem:[#allocation11 + $0x150] sm:$0xff]
        %v1847 = vld [vmem:[#allocation11 + $0x170] sm:$0xff]
        %v1848 = vld [vmem:[#allocation11 + $0x190] sm:$0xff]
        %v1849 = vld [vmem:[#allocation11 + $0x1b0] sm:$0xff]
        %v1850 = vld [vmem:[#allocation11 + $0x1d0] sm:$0xff]
        %v1851 = vld [vmem:[#allocation11 + $0x1f0] sm:$0xff]
        %v1853 = vlaneseq
        %v1854 = vshrl.u32 %v1853, 7
        %v1855 = vsub.s32 2, %v1854
        %v1856 = vrot.slane %v1835, %v1855
        %1858 = vmatprep.subr.mxu0 0.0
        %1859 = vmatpush1.msra.mxu0 %v1836
        %1860 = vmatprep.subr.mxu0 0.0
        %1861 = vmatpush1.msra.mxu0 %v1837
        %1862 = vmatprep.subr.mxu0 0.0
        %1863 = vmatpush1.msra.mxu0 %v1838
        %1864 = vmatprep.subr.mxu0 0.0
        %1865 = vmatpush1.msra.mxu0 %v1839
        %1866 = vmatprep.subr.mxu0 0.0
        %1867 = vmatpush1.msra.mxu0 %v1840
        %1868 = vmatprep.subr.mxu0 0.0
        %1869 = vmatpush1.msra.mxu0 %v1841
        %1870 = vmatprep.subr.mxu0 0.0
        %1871 = vmatpush1.msra.mxu0 %v1842
        %1872 = vmatprep.subr.mxu0 0.0
        %1873 = vmatpush1.msra.mxu0 %v1843
        %1874 = vmatprep.subr.mxu0 0.0
        %1875 = vmatpush1.msra.mxu0 %v1844
        %1876 = vmatprep.subr.mxu0 0.0
        %1877 = vmatpush1.msra.mxu0 %v1845
        %1878 = vmatprep.subr.mxu0 0.0
        %1879 = vmatpush1.msra.mxu0 %v1846
        %1880 = vmatprep.subr.mxu0 0.0
        %1881 = vmatpush1.msra.mxu0 %v1847
        %1882 = vmatprep.subr.mxu0 0.0
        %1883 = vmatpush1.msra.mxu0 %v1848
        %1884 = vmatprep.subr.mxu0 0.0
        %1885 = vmatpush1.msra.mxu0 %v1849
        %1886 = vmatprep.subr.mxu0 0.0
        %1887 = vmatpush1.msra.mxu0 %v1850
        %1888 = vmatprep.subr.mxu0 0.0
        %1889 = vmatpush1.msra.mxu0 %v1851
        %1890 = vmatprep.subr.mxu0 0.0
        %1891 = vmatpush1.msra.mxu0 0.0
        %1892 = vmatprep.subr.mxu0 0.0
        %1893 = vmatpush1.msra.mxu0 0.0
        %1894 = vmatprep.subr.mxu0 0.0
        %1895 = vmatpush1.msra.mxu0 0.0
        %1896 = vmatprep.subr.mxu0 0.0
        %1897 = vmatpush1.msra.mxu0 0.0
        %1898 = vmatprep.subr.mxu0 0.0
        %1899 = vmatpush1.msra.mxu0 0.0
        %1900 = vmatprep.subr.mxu0 0.0
        %1901 = vmatpush1.msra.mxu0 0.0
        %1902 = vmatprep.subr.mxu0 0.0
        %1903 = vmatpush1.msra.mxu0 0.0
        %1904 = vmatprep.subr.mxu0 0.0
        %1905 = vmatpush1.msra.mxu0 0.0
        %1906 = vmatprep.subr.mxu0 0.0
        %1907 = vmatpush1.msra.mxu0 0.0
        %1908 = vmatprep.subr.mxu0 0.0
        %1909 = vmatpush1.msra.mxu0 0.0
        %1910 = vmatprep.subr.mxu0 0.0
        %1911 = vmatpush1.msra.mxu0 0.0
        %1912 = vmatprep.subr.mxu0 0.0
        %1913 = vmatpush1.msra.mxu0 0.0
        %1914 = vmatprep.subr.mxu0 0.0
        %1915 = vmatpush1.msra.mxu0 0.0
        %1916 = vmatprep.subr.mxu0 0.0
        %1917 = vmatpush1.msra.mxu0 0.0
        %1918 = vmatprep.subr.mxu0 0.0
        %1919 = vmatpush1.msra.mxu0 0.0
        %1920 = vmatprep.subr.mxu0 0.0
        %1921 = vmatpush1.msra.mxu0 0.0
        %1922 = vmatprep.mubr.f32.mxu0 0.0
        %1923 = vmatmul.mubr.f32.gmra.mrb[0].mxu0 %v1831
        %v1924 = vpop.f32.mrb[0].mxu0
        %v1925 = vadd.f32 %v1856, %v1924
        %v1926 = vpop.f32.mrb[0].mxu0
        %1927 = vdwg.mxu0
        %v1928 = vtanh.pop %v1925
        %v1929 = vld [vmem:[#allocation11] sm:$0xff]
        %v1930 = vld [vmem:[#allocation11 + $0x20] sm:$0xff]
        %v1931 = vld [vmem:[#allocation11 + $0x40] sm:$0xff]
        %v1932 = vld [vmem:[#allocation11 + $0x60] sm:$0xff]
        %v1933 = vld [vmem:[#allocation11 + $0x80] sm:$0xff]
        %v1934 = vld [vmem:[#allocation11 + $0xa0] sm:$0xff]
        %v1935 = vld [vmem:[#allocation11 + $0xc0] sm:$0xff]
        %v1936 = vld [vmem:[#allocation11 + $0xe0] sm:$0xff]
        %v1937 = vld [vmem:[#allocation11 + $0x100] sm:$0xff]
        %v1938 = vld [vmem:[#allocation11 + $0x120] sm:$0xff]
        %v1939 = vld [vmem:[#allocation11 + $0x140] sm:$0xff]
        %v1940 = vld [vmem:[#allocation11 + $0x160] sm:$0xff]
        %v1941 = vld [vmem:[#allocation11 + $0x180] sm:$0xff]
        %v1942 = vld [vmem:[#allocation11 + $0x1a0] sm:$0xff]
        %v1943 = vld [vmem:[#allocation11 + $0x1c0] sm:$0xff]
        %v1944 = vld [vmem:[#allocation11 + $0x1e0] sm:$0xff]
        %1945 = vmatprep.subr.mxu0 0.0
        %1946 = vmatpush1.msra.mxu0 %v1929
        %1947 = vmatprep.subr.mxu0 0.0
        %1948 = vmatpush1.msra.mxu0 %v1930
        %1949 = vmatprep.subr.mxu0 0.0
        %1950 = vmatpush1.msra.mxu0 %v1931
        %1951 = vmatprep.subr.mxu0 0.0
        %1952 = vmatpush1.msra.mxu0 %v1932
        %1953 = vmatprep.subr.mxu0 0.0
        %1954 = vmatpush1.msra.mxu0 %v1933
        %1955 = vmatprep.subr.mxu0 0.0
        %1956 = vmatpush1.msra.mxu0 %v1934
        %1957 = vmatprep.subr.mxu0 0.0
        %1958 = vmatpush1.msra.mxu0 %v1935
        %1959 = vmatprep.subr.mxu0 0.0
        %1960 = vmatpush1.msra.mxu0 %v1936
        %1961 = vmatprep.subr.mxu0 0.0
        %1962 = vmatpush1.msra.mxu0 %v1937
        %1963 = vmatprep.subr.mxu0 0.0
        %1964 = vmatpush1.msra.mxu0 %v1938
        %1965 = vmatprep.subr.mxu0 0.0
        %1966 = vmatpush1.msra.mxu0 %v1939
        %1967 = vmatprep.subr.mxu0 0.0
        %1968 = vmatpush1.msra.mxu0 %v1940
        %1969 = vmatprep.subr.mxu0 0.0
        %1970 = vmatpush1.msra.mxu0 %v1941
        %1971 = vmatprep.subr.mxu0 0.0
        %1972 = vmatpush1.msra.mxu0 %v1942
        %1973 = vmatprep.subr.mxu0 0.0
        %1974 = vmatpush1.msra.mxu0 %v1943
        %1975 = vmatprep.subr.mxu0 0.0
        %1976 = vmatpush1.msra.mxu0 %v1944
        %1977 = vmatprep.subr.mxu0 0.0
        %1978 = vmatpush1.msra.mxu0 0.0
        %1979 = vmatprep.subr.mxu0 0.0
        %1980 = vmatpush1.msra.mxu0 0.0
        %1981 = vmatprep.subr.mxu0 0.0
        %1982 = vmatpush1.msra.mxu0 0.0
        %1983 = vmatprep.subr.mxu0 0.0
        %1984 = vmatpush1.msra.mxu0 0.0
        %1985 = vmatprep.subr.mxu0 0.0
        %1986 = vmatpush1.msra.mxu0 0.0
        %1987 = vmatprep.subr.mxu0 0.0
        %1988 = vmatpush1.msra.mxu0 0.0
        %1989 = vmatprep.subr.mxu0 0.0
        %1990 = vmatpush1.msra.mxu0 0.0
        %1991 = vmatprep.subr.mxu0 0.0
        %1992 = vmatpush1.msra.mxu0 0.0
        %1993 = vmatprep.subr.mxu0 0.0
        %1994 = vmatpush1.msra.mxu0 0.0
        %1995 = vmatprep.subr.mxu0 0.0
        %1996 = vmatpush1.msra.mxu0 0.0
        %1997 = vmatprep.subr.mxu0 0.0
        %1998 = vmatpush1.msra.mxu0 0.0
        %1999 = vmatprep.subr.mxu0 0.0
        %2000 = vmatpush1.msra.mxu0 0.0
        %2001 = vmatprep.subr.mxu0 0.0
        %2002 = vmatpush1.msra.mxu0 0.0
        %2003 = vmatprep.subr.mxu0 0.0
        %2004 = vmatpush1.msra.mxu0 0.0
        %2005 = vmatprep.subr.mxu0 0.0
        %2006 = vmatpush1.msra.mxu0 0.0
        %2007 = vmatprep.subr.mxu0 0.0
        %2008 = vmatpush1.msra.mxu0 0.0
        %2009 = vmatprep.mubr.f32.mxu0 0.0
        %2010 = vmatmul.mubr.f32.gmra.mrb[0].mxu0 %v1831
        %v2011 = vpop.f32.mrb[0].mxu0
        %v2012 = vadd.f32 %v1835, %v2011
        %v2013 = vpop.f32.mrb[0].mxu0
        %2014 = vdwg.mxu0
        %v2015 = vmul.f32 %v2012, 0.5
        %v2016 = vtanh.pop %v2015
        %v2017 = vadd.f32 %v2016, 1.0
        %v2018 = vmul.f32 %v2017, 0.5
        %v2019 = vmul.f32 %v2018, %v1928
        %v2020 = vld [vmem:[#allocation11 + $0x8] sm:$0xff]
        %v2021 = vld [vmem:[#allocation11 + $0x28] sm:$0xff]
        %v2022 = vld [vmem:[#allocation11 + $0x48] sm:$0xff]
        %v2023 = vld [vmem:[#allocation11 + $0x68] sm:$0xff]
        %v2024 = vld [vmem:[#allocation11 + $0x88] sm:$0xff]
        %v2025 = vld [vmem:[#allocation11 + $0xa8] sm:$0xff]
        %v2026 = vld [vmem:[#allocation11 + $0xc8] sm:$0xff]
        %v2027 = vld [vmem:[#allocation11 + $0xe8] sm:$0xff]
        %v2028 = vld [vmem:[#allocation11 + $0x108] sm:$0xff]
        %v2029 = vld [vmem:[#allocation11 + $0x128] sm:$0xff]
        %v2030 = vld [vmem:[#allocation11 + $0x148] sm:$0xff]
        %v2031 = vld [vmem:[#allocation11 + $0x168] sm:$0xff]
        %v2032 = vld [vmem:[#allocation11 + $0x188] sm:$0xff]
        %v2033 = vld [vmem:[#allocation11 + $0x1a8] sm:$0xff]
        %v2034 = vld [vmem:[#allocation11 + $0x1c8] sm:$0xff]
        %v2035 = vld [vmem:[#allocation11 + $0x1e8] sm:$0xff]
        %v2036 = vlaneseq
        %v2037 = vshrl.u32 %v2036, 7
        %v2038 = vsub.s32 1, %v2037
        %v2039 = vrot.slane %v1835, %v2038
        %2041 = vmatprep.subr.mxu0 0.0
        %2042 = vmatpush1.msra.mxu0 %v2020
        %2043 = vmatprep.subr.mxu0 0.0
        %2044 = vmatpush1.msra.mxu0 %v2021
        %2045 = vmatprep.subr.mxu0 0.0
        %2046 = vmatpush1.msra.mxu0 %v2022
        %2047 = vmatprep.subr.mxu0 0.0
        %2048 = vmatpush1.msra.mxu0 %v2023
        %2049 = vmatprep.subr.mxu0 0.0
        %2050 = vmatpush1.msra.mxu0 %v2024
        %2051 = vmatprep.subr.mxu0 0.0
        %2052 = vmatpush1.msra.mxu0 %v2025
        %2053 = vmatprep.subr.mxu0 0.0
        %2054 = vmatpush1.msra.mxu0 %v2026
        %2055 = vmatprep.subr.mxu0 0.0
        %2056 = vmatpush1.msra.mxu0 %v2027
        %2057 = vmatprep.subr.mxu0 0.0
        %2058 = vmatpush1.msra.mxu0 %v2028
        %2059 = vmatprep.subr.mxu0 0.0
        %2060 = vmatpush1.msra.mxu0 %v2029
        %2061 = vmatprep.subr.mxu0 0.0
        %2062 = vmatpush1.msra.mxu0 %v2030
        %2063 = vmatprep.subr.mxu0 0.0
        %2064 = vmatpush1.msra.mxu0 %v2031
        %2065 = vmatprep.subr.mxu0 0.0
        %2066 = vmatpush1.msra.mxu0 %v2032
        %2067 = vmatprep.subr.mxu0 0.0
        %2068 = vmatpush1.msra.mxu0 %v2033
        %2069 = vmatprep.subr.mxu0 0.0
        %2070 = vmatpush1.msra.mxu0 %v2034
        %2071 = vmatprep.subr.mxu0 0.0
        %2072 = vmatpush1.msra.mxu0 %v2035
        %2073 = vmatprep.subr.mxu0 0.0
        %2074 = vmatpush1.msra.mxu0 0.0
        %2075 = vmatprep.subr.mxu0 0.0
        %2076 = vmatpush1.msra.mxu0 0.0
        %2077 = vmatprep.subr.mxu0 0.0
        %2078 = vmatpush1.msra.mxu0 0.0
        %2079 = vmatprep.subr.mxu0 0.0
        %2080 = vmatpush1.msra.mxu0 0.0
        %2081 = vmatprep.subr.mxu0 0.0
        %2082 = vmatpush1.msra.mxu0 0.0
        %2083 = vmatprep.subr.mxu0 0.0
        %2084 = vmatpush1.msra.mxu0 0.0
        %2085 = vmatprep.subr.mxu0 0.0
        %2086 = vmatpush1.msra.mxu0 0.0
        %2087 = vmatprep.subr.mxu0 0.0
        %2088 = vmatpush1.msra.mxu0 0.0
        %2089 = vmatprep.subr.mxu0 0.0
        %2090 = vmatpush1.msra.mxu0 0.0
        %2091 = vmatprep.subr.mxu0 0.0
        %2092 = vmatpush1.msra.mxu0 0.0
        %2093 = vmatprep.subr.mxu0 0.0
        %2094 = vmatpush1.msra.mxu0 0.0
        %2095 = vmatprep.subr.mxu0 0.0
        %2096 = vmatpush1.msra.mxu0 0.0
        %2097 = vmatprep.subr.mxu0 0.0
        %2098 = vmatpush1.msra.mxu0 0.0
        %2099 = vmatprep.subr.mxu0 0.0
        %2100 = vmatpush1.msra.mxu0 0.0
        %2101 = vmatprep.subr.mxu0 0.0
        %2102 = vmatpush1.msra.mxu0 0.0
        %2103 = vmatprep.subr.mxu0 0.0
        %2104 = vmatpush1.msra.mxu0 0.0
        %2105 = vmatprep.mubr.f32.mxu0 0.0
        %2106 = vmatmul.mubr.f32.gmra.mrb[0].mxu0 %v1831
        %v2107 = vpop.f32.mrb[0].mxu0
        %v2108 = vadd.f32 %v2039, %v2107
        %v2109 = vpop.f32.mrb[0].mxu0
        %2110 = vdwg.mxu0
        %v2111 = vmul.f32 %v2108, 0.5
        %v2112 = vtanh.pop %v2111
        %v2113 = vadd.f32 %v2112, 1.0
        %v2114 = vmul.f32 %v2113, 0.5
        %v2115 = vmul.f32 %v2114, %v1734
        %v2116 = vadd.f32 %v2115, %v2019
        %v2117 = vld [vmem:[#allocation11 + $0x18] sm:$0xff]
        %v2118 = vld [vmem:[#allocation11 + $0x38] sm:$0xff]
        %v2119 = vld [vmem:[#allocation11 + $0x58] sm:$0xff]
        %v2120 = vld [vmem:[#allocation11 + $0x78] sm:$0xff]
        %v2121 = vld [vmem:[#allocation11 + $0x98] sm:$0xff]
        %v2122 = vld [vmem:[#allocation11 + $0xb8] sm:$0xff]
        %v2123 = vld [vmem:[#allocation11 + $0xd8] sm:$0xff]
        %v2124 = vld [vmem:[#allocation11 + $0xf8] sm:$0xff]
        %v2125 = vld [vmem:[#allocation11 + $0x118] sm:$0xff]
        %v2126 = vld [vmem:[#allocation11 + $0x138] sm:$0xff]
        %v2127 = vld [vmem:[#allocation11 + $0x158] sm:$0xff]
        %v2128 = vld [vmem:[#allocation11 + $0x178] sm:$0xff]
        %v2129 = vld [vmem:[#allocation11 + $0x198] sm:$0xff]
        %v2130 = vld [vmem:[#allocation11 + $0x1b8] sm:$0xff]
        %v2131 = vld [vmem:[#allocation11 + $0x1d8] sm:$0xff]
        %v2132 = vld [vmem:[#allocation11 + $0x1f8] sm:$0xff]
        %v2133 = vlaneseq
        %v2134 = vshrl.u32 %v2133, 7
        %v2135 = vsub.s32 3, %v2134
        %v2136 = vrot.slane %v1835, %v2135
        %2138 = vmatprep.subr.mxu0 0.0
        %2139 = vmatpush1.msra.mxu0 %v2117
        %2140 = vmatprep.subr.mxu0 0.0
        %2141 = vmatpush1.msra.mxu0 %v2118
        %2142 = vmatprep.subr.mxu0 0.0
        %2143 = vmatpush1.msra.mxu0 %v2119
        %2144 = vmatprep.subr.mxu0 0.0
        %2145 = vmatpush1.msra.mxu0 %v2120
        %2146 = vmatprep.subr.mxu0 0.0
        %2147 = vmatpush1.msra.mxu0 %v2121
        %2148 = vmatprep.subr.mxu0 0.0
        %2149 = vmatpush1.msra.mxu0 %v2122
        %2150 = vmatprep.subr.mxu0 0.0
        %2151 = vmatpush1.msra.mxu0 %v2123
        %2152 = vmatprep.subr.mxu0 0.0
        %2153 = vmatpush1.msra.mxu0 %v2124
        %2154 = vmatprep.subr.mxu0 0.0
        %2155 = vmatpush1.msra.mxu0 %v2125
        %2156 = vmatprep.subr.mxu0 0.0
        %2157 = vmatpush1.msra.mxu0 %v2126
        %2158 = vmatprep.subr.mxu0 0.0
        %2159 = vmatpush1.msra.mxu0 %v2127
        %2160 = vmatprep.subr.mxu0 0.0
        %2161 = vmatpush1.msra.mxu0 %v2128
        %2162 = vmatprep.subr.mxu0 0.0
        %2163 = vmatpush1.msra.mxu0 %v2129
        %2164 = vmatprep.subr.mxu0 0.0
        %2165 = vmatpush1.msra.mxu0 %v2130
        %2166 = vmatprep.subr.mxu0 0.0
        %2167 = vmatpush1.msra.mxu0 %v2131
        %2168 = vmatprep.subr.mxu0 0.0
        %2169 = vmatpush1.msra.mxu0 %v2132
        %2170 = vmatprep.subr.mxu0 0.0
        %2171 = vmatpush1.msra.mxu0 0.0
        %2172 = vmatprep.subr.mxu0 0.0
        %2173 = vmatpush1.msra.mxu0 0.0
        %2174 = vmatprep.subr.mxu0 0.0
        %2175 = vmatpush1.msra.mxu0 0.0
        %2176 = vmatprep.subr.mxu0 0.0
        %2177 = vmatpush1.msra.mxu0 0.0
        %2178 = vmatprep.subr.mxu0 0.0
        %2179 = vmatpush1.msra.mxu0 0.0
        %2180 = vmatprep.subr.mxu0 0.0
        %2181 = vmatpush1.msra.mxu0 0.0
        %2182 = vmatprep.subr.mxu0 0.0
        %2183 = vmatpush1.msra.mxu0 0.0
        %2184 = vmatprep.subr.mxu0 0.0
        %2185 = vmatpush1.msra.mxu0 0.0
        %2186 = vmatprep.subr.mxu0 0.0
        %2187 = vmatpush1.msra.mxu0 0.0
        %2188 = vmatprep.subr.mxu0 0.0
        %2189 = vmatpush1.msra.mxu0 0.0
        %2190 = vmatprep.subr.mxu0 0.0
        %2191 = vmatpush1.msra.mxu0 0.0
        %2192 = vmatprep.subr.mxu0 0.0
        %2193 = vmatpush1.msra.mxu0 0.0
        %2194 = vmatprep.subr.mxu0 0.0
        %2195 = vmatpush1.msra.mxu0 0.0
        %2196 = vmatprep.subr.mxu0 0.0
        %2197 = vmatpush1.msra.mxu0 0.0
        %2198 = vmatprep.subr.mxu0 0.0
        %2199 = vmatpush1.msra.mxu0 0.0
        %2200 = vmatprep.subr.mxu0 0.0
        %2201 = vmatpush1.msra.mxu0 0.0
        %2202 = vmatprep.mubr.f32.mxu0 0.0
        %2203 = vmatmul.mubr.f32.gmra.mrb[0].mxu0 %v1831
        %v2204 = vpop.f32.mrb[0].mxu0
        %v2205 = vadd.f32 %v2136, %v2204
        %v2206 = vpop.f32.mrb[0].mxu0
        %2207 = vdwg.mxu0
        %v2208 = vmul.f32 %v2205, 0.5
        %v2209 = vtanh.pop %v2208
        %v2210 = vadd.f32 %v2209, 1.0
        %v2211 = vmul.f32 %v2210, 0.5
        %v2212 = vtanh.pop %v2116
        %v2213 = vmul.f32 %v2211, %v2212
        %s2214 = scalar_lea.vmem [#allocation3], 2
        %2215 = vst [vmem:[%s2214] sm:$0x1] %v2213
        %s2216 = scalar_lea.vmem [#allocation2], 12
        %v2217 = vld [vmem:[%s2216] sm:$0xf]
        %v2218 = vld [vmem:[#allocation11 + $0x10] sm:$0xff]
        %v2219 = vld [vmem:[#allocation11 + $0x30] sm:$0xff]
        %v2220 = vld [vmem:[#allocation11 + $0x50] sm:$0xff]
        %v2221 = vld [vmem:[#allocation11 + $0x70] sm:$0xff]
        %v2222 = vld [vmem:[#allocation11 + $0x90] sm:$0xff]
        %v2223 = vld [vmem:[#allocation11 + $0xb0] sm:$0xff]
        %v2224 = vld [vmem:[#allocation11 + $0xd0] sm:$0xff]
        %v2225 = vld [vmem:[#allocation11 + $0xf0] sm:$0xff]
        %v2226 = vld [vmem:[#allocation11 + $0x110] sm:$0xff]
        %v2227 = vld [vmem:[#allocation11 + $0x130] sm:$0xff]
        %v2228 = vld [vmem:[#allocation11 + $0x150] sm:$0xff]
        %v2229 = vld [vmem:[#allocation11 + $0x170] sm:$0xff]
        %v2230 = vld [vmem:[#allocation11 + $0x190] sm:$0xff]
        %v2231 = vld [vmem:[#allocation11 + $0x1b0] sm:$0xff]
        %v2232 = vld [vmem:[#allocation11 + $0x1d0] sm:$0xff]
        %v2233 = vld [vmem:[#allocation11 + $0x1f0] sm:$0xff]
        %v2235 = vlaneseq
        %v2236 = vshrl.u32 %v2235, 7
        %v2237 = vsub.s32 2, %v2236
        %v2238 = vrot.slane %v2217, %v2237
        %2240 = vmatprep.subr.mxu0 0.0
        %2241 = vmatpush1.msra.mxu0 %v2218
        %2242 = vmatprep.subr.mxu0 0.0
        %2243 = vmatpush1.msra.mxu0 %v2219
        %2244 = vmatprep.subr.mxu0 0.0
        %2245 = vmatpush1.msra.mxu0 %v2220
        %2246 = vmatprep.subr.mxu0 0.0
        %2247 = vmatpush1.msra.mxu0 %v2221
        %2248 = vmatprep.subr.mxu0 0.0
        %2249 = vmatpush1.msra.mxu0 %v2222
        %2250 = vmatprep.subr.mxu0 0.0
        %2251 = vmatpush1.msra.mxu0 %v2223
        %2252 = vmatprep.subr.mxu0 0.0
        %2253 = vmatpush1.msra.mxu0 %v2224
        %2254 = vmatprep.subr.mxu0 0.0
        %2255 = vmatpush1.msra.mxu0 %v2225
        %2256 = vmatprep.subr.mxu0 0.0
        %2257 = vmatpush1.msra.mxu0 %v2226
        %2258 = vmatprep.subr.mxu0 0.0
        %2259 = vmatpush1.msra.mxu0 %v2227
        %2260 = vmatprep.subr.mxu0 0.0
        %2261 = vmatpush1.msra.mxu0 %v2228
        %2262 = vmatprep.subr.mxu0 0.0
        %2263 = vmatpush1.msra.mxu0 %v2229
        %2264 = vmatprep.subr.mxu0 0.0
        %2265 = vmatpush1.msra.mxu0 %v2230
        %2266 = vmatprep.subr.mxu0 0.0
        %2267 = vmatpush1.msra.mxu0 %v2231
        %2268 = vmatprep.subr.mxu0 0.0
        %2269 = vmatpush1.msra.mxu0 %v2232
        %2270 = vmatprep.subr.mxu0 0.0
        %2271 = vmatpush1.msra.mxu0 %v2233
        %2272 = vmatprep.subr.mxu0 0.0
        %2273 = vmatpush1.msra.mxu0 0.0
        %2274 = vmatprep.subr.mxu0 0.0
        %2275 = vmatpush1.msra.mxu0 0.0
        %2276 = vmatprep.subr.mxu0 0.0
        %2277 = vmatpush1.msra.mxu0 0.0
        %2278 = vmatprep.subr.mxu0 0.0
        %2279 = vmatpush1.msra.mxu0 0.0
        %2280 = vmatprep.subr.mxu0 0.0
        %2281 = vmatpush1.msra.mxu0 0.0
        %2282 = vmatprep.subr.mxu0 0.0
        %2283 = vmatpush1.msra.mxu0 0.0
        %2284 = vmatprep.subr.mxu0 0.0
        %2285 = vmatpush1.msra.mxu0 0.0
        %2286 = vmatprep.subr.mxu0 0.0
        %2287 = vmatpush1.msra.mxu0 0.0
        %2288 = vmatprep.subr.mxu0 0.0
        %2289 = vmatpush1.msra.mxu0 0.0
        %2290 = vmatprep.subr.mxu0 0.0
        %2291 = vmatpush1.msra.mxu0 0.0
        %2292 = vmatprep.subr.mxu0 0.0
        %2293 = vmatpush1.msra.mxu0 0.0
        %2294 = vmatprep.subr.mxu0 0.0
        %2295 = vmatpush1.msra.mxu0 0.0
        %2296 = vmatprep.subr.mxu0 0.0
        %2297 = vmatpush1.msra.mxu0 0.0
        %2298 = vmatprep.subr.mxu0 0.0
        %2299 = vmatpush1.msra.mxu0 0.0
        %2300 = vmatprep.subr.mxu0 0.0
        %2301 = vmatpush1.msra.mxu0 0.0
        %2302 = vmatprep.subr.mxu0 0.0
        %2303 = vmatpush1.msra.mxu0 0.0
        %2304 = vmatprep.mubr.f32.mxu0 0.0
        %2305 = vmatmul.mubr.f32.gmra.mrb[0].mxu0 %v2213
        %v2306 = vpop.f32.mrb[0].mxu0
        %v2307 = vadd.f32 %v2238, %v2306
        %v2308 = vpop.f32.mrb[0].mxu0
        %2309 = vdwg.mxu0
        %v2310 = vtanh.pop %v2307
        %v2311 = vld [vmem:[#allocation11] sm:$0xff]
        %v2312 = vld [vmem:[#allocation11 + $0x20] sm:$0xff]
        %v2313 = vld [vmem:[#allocation11 + $0x40] sm:$0xff]
        %v2314 = vld [vmem:[#allocation11 + $0x60] sm:$0xff]
        %v2315 = vld [vmem:[#allocation11 + $0x80] sm:$0xff]
        %v2316 = vld [vmem:[#allocation11 + $0xa0] sm:$0xff]
        %v2317 = vld [vmem:[#allocation11 + $0xc0] sm:$0xff]
        %v2318 = vld [vmem:[#allocation11 + $0xe0] sm:$0xff]
        %v2319 = vld [vmem:[#allocation11 + $0x100] sm:$0xff]
        %v2320 = vld [vmem:[#allocation11 + $0x120] sm:$0xff]
        %v2321 = vld [vmem:[#allocation11 + $0x140] sm:$0xff]
        %v2322 = vld [vmem:[#allocation11 + $0x160] sm:$0xff]
        %v2323 = vld [vmem:[#allocation11 + $0x180] sm:$0xff]
        %v2324 = vld [vmem:[#allocation11 + $0x1a0] sm:$0xff]
        %v2325 = vld [vmem:[#allocation11 + $0x1c0] sm:$0xff]
        %v2326 = vld [vmem:[#allocation11 + $0x1e0] sm:$0xff]
        %2327 = vmatprep.subr.mxu0 0.0
        %2328 = vmatpush1.msra.mxu0 %v2311
        %2329 = vmatprep.subr.mxu0 0.0
        %2330 = vmatpush1.msra.mxu0 %v2312
        %2331 = vmatprep.subr.mxu0 0.0
        %2332 = vmatpush1.msra.mxu0 %v2313
        %2333 = vmatprep.subr.mxu0 0.0
        %2334 = vmatpush1.msra.mxu0 %v2314
        %2335 = vmatprep.subr.mxu0 0.0
        %2336 = vmatpush1.msra.mxu0 %v2315
        %2337 = vmatprep.subr.mxu0 0.0
        %2338 = vmatpush1.msra.mxu0 %v2316
        %2339 = vmatprep.subr.mxu0 0.0
        %2340 = vmatpush1.msra.mxu0 %v2317
        %2341 = vmatprep.subr.mxu0 0.0
        %2342 = vmatpush1.msra.mxu0 %v2318
        %2343 = vmatprep.subr.mxu0 0.0
        %2344 = vmatpush1.msra.mxu0 %v2319
        %2345 = vmatprep.subr.mxu0 0.0
        %2346 = vmatpush1.msra.mxu0 %v2320
        %2347 = vmatprep.subr.mxu0 0.0
        %2348 = vmatpush1.msra.mxu0 %v2321
        %2349 = vmatprep.subr.mxu0 0.0
        %2350 = vmatpush1.msra.mxu0 %v2322
        %2351 = vmatprep.subr.mxu0 0.0
        %2352 = vmatpush1.msra.mxu0 %v2323
        %2353 = vmatprep.subr.mxu0 0.0
        %2354 = vmatpush1.msra.mxu0 %v2324
        %2355 = vmatprep.subr.mxu0 0.0
        %2356 = vmatpush1.msra.mxu0 %v2325
        %2357 = vmatprep.subr.mxu0 0.0
        %2358 = vmatpush1.msra.mxu0 %v2326
        %2359 = vmatprep.subr.mxu0 0.0
        %2360 = vmatpush1.msra.mxu0 0.0
        %2361 = vmatprep.subr.mxu0 0.0
        %2362 = vmatpush1.msra.mxu0 0.0
        %2363 = vmatprep.subr.mxu0 0.0
        %2364 = vmatpush1.msra.mxu0 0.0
        %2365 = vmatprep.subr.mxu0 0.0
        %2366 = vmatpush1.msra.mxu0 0.0
        %2367 = vmatprep.subr.mxu0 0.0
        %2368 = vmatpush1.msra.mxu0 0.0
        %2369 = vmatprep.subr.mxu0 0.0
        %2370 = vmatpush1.msra.mxu0 0.0
        %2371 = vmatprep.subr.mxu0 0.0
        %2372 = vmatpush1.msra.mxu0 0.0
        %2373 = vmatprep.subr.mxu0 0.0
        %2374 = vmatpush1.msra.mxu0 0.0
        %2375 = vmatprep.subr.mxu0 0.0
        %2376 = vmatpush1.msra.mxu0 0.0
        %2377 = vmatprep.subr.mxu0 0.0
        %2378 = vmatpush1.msra.mxu0 0.0
        %2379 = vmatprep.subr.mxu0 0.0
        %2380 = vmatpush1.msra.mxu0 0.0
        %2381 = vmatprep.subr.mxu0 0.0
        %2382 = vmatpush1.msra.mxu0 0.0
        %2383 = vmatprep.subr.mxu0 0.0
        %2384 = vmatpush1.msra.mxu0 0.0
        %2385 = vmatprep.subr.mxu0 0.0
        %2386 = vmatpush1.msra.mxu0 0.0
        %2387 = vmatprep.subr.mxu0 0.0
        %2388 = vmatpush1.msra.mxu0 0.0
        %2389 = vmatprep.subr.mxu0 0.0
        %2390 = vmatpush1.msra.mxu0 0.0
        %2391 = vmatprep.mubr.f32.mxu0 0.0
        %2392 = vmatmul.mubr.f32.gmra.mrb[0].mxu0 %v2213
        %v2393 = vpop.f32.mrb[0].mxu0
        %v2394 = vadd.f32 %v2217, %v2393
        %v2395 = vpop.f32.mrb[0].mxu0
        %2396 = vdwg.mxu0
        %v2397 = vmul.f32 %v2394, 0.5
        %v2398 = vtanh.pop %v2397
        %v2399 = vadd.f32 %v2398, 1.0
        %v2400 = vmul.f32 %v2399, 0.5
        %v2401 = vmul.f32 %v2400, %v2310
        %v2402 = vld [vmem:[#allocation11 + $0x8] sm:$0xff]
        %v2403 = vld [vmem:[#allocation11 + $0x28] sm:$0xff]
        %v2404 = vld [vmem:[#allocation11 + $0x48] sm:$0xff]
        %v2405 = vld [vmem:[#allocation11 + $0x68] sm:$0xff]
        %v2406 = vld [vmem:[#allocation11 + $0x88] sm:$0xff]
        %v2407 = vld [vmem:[#allocation11 + $0xa8] sm:$0xff]
        %v2408 = vld [vmem:[#allocation11 + $0xc8] sm:$0xff]
        %v2409 = vld [vmem:[#allocation11 + $0xe8] sm:$0xff]
        %v2410 = vld [vmem:[#allocation11 + $0x108] sm:$0xff]
        %v2411 = vld [vmem:[#allocation11 + $0x128] sm:$0xff]
        %v2412 = vld [vmem:[#allocation11 + $0x148] sm:$0xff]
        %v2413 = vld [vmem:[#allocation11 + $0x168] sm:$0xff]
        %v2414 = vld [vmem:[#allocation11 + $0x188] sm:$0xff]
        %v2415 = vld [vmem:[#allocation11 + $0x1a8] sm:$0xff]
        %v2416 = vld [vmem:[#allocation11 + $0x1c8] sm:$0xff]
        %v2417 = vld [vmem:[#allocation11 + $0x1e8] sm:$0xff]
        %v2418 = vlaneseq
        %v2419 = vshrl.u32 %v2418, 7
        %v2420 = vsub.s32 1, %v2419
        %v2421 = vrot.slane %v2217, %v2420
        %2423 = vmatprep.subr.mxu0 0.0
        %2424 = vmatpush1.msra.mxu0 %v2402
        %2425 = vmatprep.subr.mxu0 0.0
        %2426 = vmatpush1.msra.mxu0 %v2403
        %2427 = vmatprep.subr.mxu0 0.0
        %2428 = vmatpush1.msra.mxu0 %v2404
        %2429 = vmatprep.subr.mxu0 0.0
        %2430 = vmatpush1.msra.mxu0 %v2405
        %2431 = vmatprep.subr.mxu0 0.0
        %2432 = vmatpush1.msra.mxu0 %v2406
        %2433 = vmatprep.subr.mxu0 0.0
        %2434 = vmatpush1.msra.mxu0 %v2407
        %2435 = vmatprep.subr.mxu0 0.0
        %2436 = vmatpush1.msra.mxu0 %v2408
        %2437 = vmatprep.subr.mxu0 0.0
        %2438 = vmatpush1.msra.mxu0 %v2409
        %2439 = vmatprep.subr.mxu0 0.0
        %2440 = vmatpush1.msra.mxu0 %v2410
        %2441 = vmatprep.subr.mxu0 0.0
        %2442 = vmatpush1.msra.mxu0 %v2411
        %2443 = vmatprep.subr.mxu0 0.0
        %2444 = vmatpush1.msra.mxu0 %v2412
        %2445 = vmatprep.subr.mxu0 0.0
        %2446 = vmatpush1.msra.mxu0 %v2413
        %2447 = vmatprep.subr.mxu0 0.0
        %2448 = vmatpush1.msra.mxu0 %v2414
        %2449 = vmatprep.subr.mxu0 0.0
        %2450 = vmatpush1.msra.mxu0 %v2415
        %2451 = vmatprep.subr.mxu0 0.0
        %2452 = vmatpush1.msra.mxu0 %v2416
        %2453 = vmatprep.subr.mxu0 0.0
        %2454 = vmatpush1.msra.mxu0 %v2417
        %2455 = vmatprep.subr.mxu0 0.0
        %2456 = vmatpush1.msra.mxu0 0.0
        %2457 = vmatprep.subr.mxu0 0.0
        %2458 = vmatpush1.msra.mxu0 0.0
        %2459 = vmatprep.subr.mxu0 0.0
        %2460 = vmatpush1.msra.mxu0 0.0
        %2461 = vmatprep.subr.mxu0 0.0
        %2462 = vmatpush1.msra.mxu0 0.0
        %2463 = vmatprep.subr.mxu0 0.0
        %2464 = vmatpush1.msra.mxu0 0.0
        %2465 = vmatprep.subr.mxu0 0.0
        %2466 = vmatpush1.msra.mxu0 0.0
        %2467 = vmatprep.subr.mxu0 0.0
        %2468 = vmatpush1.msra.mxu0 0.0
        %2469 = vmatprep.subr.mxu0 0.0
        %2470 = vmatpush1.msra.mxu0 0.0
        %2471 = vmatprep.subr.mxu0 0.0
        %2472 = vmatpush1.msra.mxu0 0.0
        %2473 = vmatprep.subr.mxu0 0.0
        %2474 = vmatpush1.msra.mxu0 0.0
        %2475 = vmatprep.subr.mxu0 0.0
        %2476 = vmatpush1.msra.mxu0 0.0
        %2477 = vmatprep.subr.mxu0 0.0
        %2478 = vmatpush1.msra.mxu0 0.0
        %2479 = vmatprep.subr.mxu0 0.0
        %2480 = vmatpush1.msra.mxu0 0.0
        %2481 = vmatprep.subr.mxu0 0.0
        %2482 = vmatpush1.msra.mxu0 0.0
        %2483 = vmatprep.subr.mxu0 0.0
        %2484 = vmatpush1.msra.mxu0 0.0
        %2485 = vmatprep.subr.mxu0 0.0
        %2486 = vmatpush1.msra.mxu0 0.0
        %2487 = vmatprep.mubr.f32.mxu0 0.0
        %2488 = vmatmul.mubr.f32.gmra.mrb[0].mxu0 %v2213
        %v2489 = vpop.f32.mrb[0].mxu0
        %v2490 = vadd.f32 %v2421, %v2489
        %v2491 = vpop.f32.mrb[0].mxu0
        %2492 = vdwg.mxu0
        %v2493 = vmul.f32 %v2490, 0.5
        %v2494 = vtanh.pop %v2493
        %v2495 = vadd.f32 %v2494, 1.0
        %v2496 = vmul.f32 %v2495, 0.5
        %v2497 = vmul.f32 %v2496, %v2116
        %v2498 = vadd.f32 %v2497, %v2401
        %v2499 = vld [vmem:[#allocation11 + $0x18] sm:$0xff]
        %v2500 = vld [vmem:[#allocation11 + $0x38] sm:$0xff]
        %v2501 = vld [vmem:[#allocation11 + $0x58] sm:$0xff]
        %v2502 = vld [vmem:[#allocation11 + $0x78] sm:$0xff]
        %v2503 = vld [vmem:[#allocation11 + $0x98] sm:$0xff]
        %v2504 = vld [vmem:[#allocation11 + $0xb8] sm:$0xff]
        %v2505 = vld [vmem:[#allocation11 + $0xd8] sm:$0xff]
        %v2506 = vld [vmem:[#allocation11 + $0xf8] sm:$0xff]
        %v2507 = vld [vmem:[#allocation11 + $0x118] sm:$0xff]
        %v2508 = vld [vmem:[#allocation11 + $0x138] sm:$0xff]
        %v2509 = vld [vmem:[#allocation11 + $0x158] sm:$0xff]
        %v2510 = vld [vmem:[#allocation11 + $0x178] sm:$0xff]
        %v2511 = vld [vmem:[#allocation11 + $0x198] sm:$0xff]
        %v2512 = vld [vmem:[#allocation11 + $0x1b8] sm:$0xff]
        %v2513 = vld [vmem:[#allocation11 + $0x1d8] sm:$0xff]
        %v2514 = vld [vmem:[#allocation11 + $0x1f8] sm:$0xff]
        %v2515 = vlaneseq
        %v2516 = vshrl.u32 %v2515, 7
        %v2517 = vsub.s32 3, %v2516
        %v2518 = vrot.slane %v2217, %v2517
        %2520 = vmatprep.subr.mxu0 0.0
        %2521 = vmatpush1.msra.mxu0 %v2499
        %2522 = vmatprep.subr.mxu0 0.0
        %2523 = vmatpush1.msra.mxu0 %v2500
        %2524 = vmatprep.subr.mxu0 0.0
        %2525 = vmatpush1.msra.mxu0 %v2501
        %2526 = vmatprep.subr.mxu0 0.0
        %2527 = vmatpush1.msra.mxu0 %v2502
        %2528 = vmatprep.subr.mxu0 0.0
        %2529 = vmatpush1.msra.mxu0 %v2503
        %2530 = vmatprep.subr.mxu0 0.0
        %2531 = vmatpush1.msra.mxu0 %v2504
        %2532 = vmatprep.subr.mxu0 0.0
        %2533 = vmatpush1.msra.mxu0 %v2505
        %2534 = vmatprep.subr.mxu0 0.0
        %2535 = vmatpush1.msra.mxu0 %v2506
        %2536 = vmatprep.subr.mxu0 0.0
        %2537 = vmatpush1.msra.mxu0 %v2507
        %2538 = vmatprep.subr.mxu0 0.0
        %2539 = vmatpush1.msra.mxu0 %v2508
        %2540 = vmatprep.subr.mxu0 0.0
        %2541 = vmatpush1.msra.mxu0 %v2509
        %2542 = vmatprep.subr.mxu0 0.0
        %2543 = vmatpush1.msra.mxu0 %v2510
        %2544 = vmatprep.subr.mxu0 0.0
        %2545 = vmatpush1.msra.mxu0 %v2511
        %2546 = vmatprep.subr.mxu0 0.0
        %2547 = vmatpush1.msra.mxu0 %v2512
        %2548 = vmatprep.subr.mxu0 0.0
        %2549 = vmatpush1.msra.mxu0 %v2513
        %2550 = vmatprep.subr.mxu0 0.0
        %2551 = vmatpush1.msra.mxu0 %v2514
        %2552 = vmatprep.subr.mxu0 0.0
        %2553 = vmatpush1.msra.mxu0 0.0
        %2554 = vmatprep.subr.mxu0 0.0
        %2555 = vmatpush1.msra.mxu0 0.0
        %2556 = vmatprep.subr.mxu0 0.0
        %2557 = vmatpush1.msra.mxu0 0.0
        %2558 = vmatprep.subr.mxu0 0.0
        %2559 = vmatpush1.msra.mxu0 0.0
        %2560 = vmatprep.subr.mxu0 0.0
        %2561 = vmatpush1.msra.mxu0 0.0
        %2562 = vmatprep.subr.mxu0 0.0
        %2563 = vmatpush1.msra.mxu0 0.0
        %2564 = vmatprep.subr.mxu0 0.0
        %2565 = vmatpush1.msra.mxu0 0.0
        %2566 = vmatprep.subr.mxu0 0.0
        %2567 = vmatpush1.msra.mxu0 0.0
        %2568 = vmatprep.subr.mxu0 0.0
        %2569 = vmatpush1.msra.mxu0 0.0
        %2570 = vmatprep.subr.mxu0 0.0
        %2571 = vmatpush1.msra.mxu0 0.0
        %2572 = vmatprep.subr.mxu0 0.0
        %2573 = vmatpush1.msra.mxu0 0.0
        %2574 = vmatprep.subr.mxu0 0.0
        %2575 = vmatpush1.msra.mxu0 0.0
        %2576 = vmatprep.subr.mxu0 0.0
        %2577 = vmatpush1.msra.mxu0 0.0
        %2578 = vmatprep.subr.mxu0 0.0
        %2579 = vmatpush1.msra.mxu0 0.0
        %2580 = vmatprep.subr.mxu0 0.0
        %2581 = vmatpush1.msra.mxu0 0.0
        %2582 = vmatprep.subr.mxu0 0.0
        %2583 = vmatpush1.msra.mxu0 0.0
        %2584 = vmatprep.mubr.f32.mxu0 0.0
        %2585 = vmatmul.mubr.f32.gmra.mrb[0].mxu0 %v2213
        %v2586 = vpop.f32.mrb[0].mxu0
        %v2587 = vadd.f32 %v2518, %v2586
        %v2588 = vpop.f32.mrb[0].mxu0
        %2589 = vdwg.mxu0
        %v2590 = vmul.f32 %v2587, 0.5
        %v2591 = vtanh.pop %v2590
        %v2592 = vadd.f32 %v2591, 1.0
        %v2593 = vmul.f32 %v2592, 0.5
        %v2594 = vtanh.pop %v2498
        %v2595 = vmul.f32 %v2593, %v2594
        %s2596 = scalar_lea.vmem [#allocation3], 3
        %2597 = vst [vmem:[%s2596] sm:$0x1] %v2595
        %s2598 = scalar_lea.vmem [#allocation2], 16
        %v2599 = vld [vmem:[%s2598] sm:$0xf]
        %v2600 = vld [vmem:[#allocation11 + $0x10] sm:$0xff]
        %v2601 = vld [vmem:[#allocation11 + $0x30] sm:$0xff]
        %v2602 = vld [vmem:[#allocation11 + $0x50] sm:$0xff]
        %v2603 = vld [vmem:[#allocation11 + $0x70] sm:$0xff]
        %v2604 = vld [vmem:[#allocation11 + $0x90] sm:$0xff]
        %v2605 = vld [vmem:[#allocation11 + $0xb0] sm:$0xff]
        %v2606 = vld [vmem:[#allocation11 + $0xd0] sm:$0xff]
        %v2607 = vld [vmem:[#allocation11 + $0xf0] sm:$0xff]
        %v2608 = vld [vmem:[#allocation11 + $0x110] sm:$0xff]
        %v2609 = vld [vmem:[#allocation11 + $0x130] sm:$0xff]
        %v2610 = vld [vmem:[#allocation11 + $0x150] sm:$0xff]
        %v2611 = vld [vmem:[#allocation11 + $0x170] sm:$0xff]
        %v2612 = vld [vmem:[#allocation11 + $0x190] sm:$0xff]
        %v2613 = vld [vmem:[#allocation11 + $0x1b0] sm:$0xff]
        %v2614 = vld [vmem:[#allocation11 + $0x1d0] sm:$0xff]
        %v2615 = vld [vmem:[#allocation11 + $0x1f0] sm:$0xff]
        %v2617 = vlaneseq
        %v2618 = vshrl.u32 %v2617, 7
        %v2619 = vsub.s32 2, %v2618
        %v2620 = vrot.slane %v2599, %v2619
        %2622 = vmatprep.subr.mxu0 0.0
        %2623 = vmatpush1.msra.mxu0 %v2600
        %2624 = vmatprep.subr.mxu0 0.0
        %2625 = vmatpush1.msra.mxu0 %v2601
        %2626 = vmatprep.subr.mxu0 0.0
        %2627 = vmatpush1.msra.mxu0 %v2602
        %2628 = vmatprep.subr.mxu0 0.0
        %2629 = vmatpush1.msra.mxu0 %v2603
        %2630 = vmatprep.subr.mxu0 0.0
        %2631 = vmatpush1.msra.mxu0 %v2604
        %2632 = vmatprep.subr.mxu0 0.0
        %2633 = vmatpush1.msra.mxu0 %v2605
        %2634 = vmatprep.subr.mxu0 0.0
        %2635 = vmatpush1.msra.mxu0 %v2606
        %2636 = vmatprep.subr.mxu0 0.0
        %2637 = vmatpush1.msra.mxu0 %v2607
        %2638 = vmatprep.subr.mxu0 0.0
        %2639 = vmatpush1.msra.mxu0 %v2608
        %2640 = vmatprep.subr.mxu0 0.0
        %2641 = vmatpush1.msra.mxu0 %v2609
        %2642 = vmatprep.subr.mxu0 0.0
        %2643 = vmatpush1.msra.mxu0 %v2610
        %2644 = vmatprep.subr.mxu0 0.0
        %2645 = vmatpush1.msra.mxu0 %v2611
        %2646 = vmatprep.subr.mxu0 0.0
        %2647 = vmatpush1.msra.mxu0 %v2612
        %2648 = vmatprep.subr.mxu0 0.0
        %2649 = vmatpush1.msra.mxu0 %v2613
        %2650 = vmatprep.subr.mxu0 0.0
        %2651 = vmatpush1.msra.mxu0 %v2614
        %2652 = vmatprep.subr.mxu0 0.0
        %2653 = vmatpush1.msra.mxu0 %v2615
        %2654 = vmatprep.subr.mxu0 0.0
        %2655 = vmatpush1.msra.mxu0 0.0
        %2656 = vmatprep.subr.mxu0 0.0
        %2657 = vmatpush1.msra.mxu0 0.0
        %2658 = vmatprep.subr.mxu0 0.0
        %2659 = vmatpush1.msra.mxu0 0.0
        %2660 = vmatprep.subr.mxu0 0.0
        %2661 = vmatpush1.msra.mxu0 0.0
        %2662 = vmatprep.subr.mxu0 0.0
        %2663 = vmatpush1.msra.mxu0 0.0
        %2664 = vmatprep.subr.mxu0 0.0
        %2665 = vmatpush1.msra.mxu0 0.0
        %2666 = vmatprep.subr.mxu0 0.0
        %2667 = vmatpush1.msra.mxu0 0.0
        %2668 = vmatprep.subr.mxu0 0.0
        %2669 = vmatpush1.msra.mxu0 0.0
        %2670 = vmatprep.subr.mxu0 0.0
        %2671 = vmatpush1.msra.mxu0 0.0
        %2672 = vmatprep.subr.mxu0 0.0
        %2673 = vmatpush1.msra.mxu0 0.0
        %2674 = vmatprep.subr.mxu0 0.0
        %2675 = vmatpush1.msra.mxu0 0.0
        %2676 = vmatprep.subr.mxu0 0.0
        %2677 = vmatpush1.msra.mxu0 0.0
        %2678 = vmatprep.subr.mxu0 0.0
        %2679 = vmatpush1.msra.mxu0 0.0
        %2680 = vmatprep.subr.mxu0 0.0
        %2681 = vmatpush1.msra.mxu0 0.0
        %2682 = vmatprep.subr.mxu0 0.0
        %2683 = vmatpush1.msra.mxu0 0.0
        %2684 = vmatprep.subr.mxu0 0.0
        %2685 = vmatpush1.msra.mxu0 0.0
        %2686 = vmatprep.mubr.f32.mxu0 0.0
        %2687 = vmatmul.mubr.f32.gmra.mrb[0].mxu0 %v2595
        %v2688 = vpop.f32.mrb[0].mxu0
        %v2689 = vadd.f32 %v2620, %v2688
        %v2690 = vpop.f32.mrb[0].mxu0
        %2691 = vdwg.mxu0
        %v2692 = vtanh.pop %v2689
        %v2693 = vld [vmem:[#allocation11] sm:$0xff]
        %v2694 = vld [vmem:[#allocation11 + $0x20] sm:$0xff]
        %v2695 = vld [vmem:[#allocation11 + $0x40] sm:$0xff]
        %v2696 = vld [vmem:[#allocation11 + $0x60] sm:$0xff]
        %v2697 = vld [vmem:[#allocation11 + $0x80] sm:$0xff]
        %v2698 = vld [vmem:[#allocation11 + $0xa0] sm:$0xff]
        %v2699 = vld [vmem:[#allocation11 + $0xc0] sm:$0xff]
        %v2700 = vld [vmem:[#allocation11 + $0xe0] sm:$0xff]
        %v2701 = vld [vmem:[#allocation11 + $0x100] sm:$0xff]
        %v2702 = vld [vmem:[#allocation11 + $0x120] sm:$0xff]
        %v2703 = vld [vmem:[#allocation11 + $0x140] sm:$0xff]
        %v2704 = vld [vmem:[#allocation11 + $0x160] sm:$0xff]
        %v2705 = vld [vmem:[#allocation11 + $0x180] sm:$0xff]
        %v2706 = vld [vmem:[#allocation11 + $0x1a0] sm:$0xff]
        %v2707 = vld [vmem:[#allocation11 + $0x1c0] sm:$0xff]
        %v2708 = vld [vmem:[#allocation11 + $0x1e0] sm:$0xff]
        %2709 = vmatprep.subr.mxu0 0.0
        %2710 = vmatpush1.msra.mxu0 %v2693
        %2711 = vmatprep.subr.mxu0 0.0
        %2712 = vmatpush1.msra.mxu0 %v2694
        %2713 = vmatprep.subr.mxu0 0.0
        %2714 = vmatpush1.msra.mxu0 %v2695
        %2715 = vmatprep.subr.mxu0 0.0
        %2716 = vmatpush1.msra.mxu0 %v2696
        %2717 = vmatprep.subr.mxu0 0.0
        %2718 = vmatpush1.msra.mxu0 %v2697
        %2719 = vmatprep.subr.mxu0 0.0
        %2720 = vmatpush1.msra.mxu0 %v2698
        %2721 = vmatprep.subr.mxu0 0.0
        %2722 = vmatpush1.msra.mxu0 %v2699
        %2723 = vmatprep.subr.mxu0 0.0
        %2724 = vmatpush1.msra.mxu0 %v2700
        %2725 = vmatprep.subr.mxu0 0.0
        %2726 = vmatpush1.msra.mxu0 %v2701
        %2727 = vmatprep.subr.mxu0 0.0
        %2728 = vmatpush1.msra.mxu0 %v2702
        %2729 = vmatprep.subr.mxu0 0.0
        %2730 = vmatpush1.msra.mxu0 %v2703
        %2731 = vmatprep.subr.mxu0 0.0
        %2732 = vmatpush1.msra.mxu0 %v2704
        %2733 = vmatprep.subr.mxu0 0.0
        %2734 = vmatpush1.msra.mxu0 %v2705
        %2735 = vmatprep.subr.mxu0 0.0
        %2736 = vmatpush1.msra.mxu0 %v2706
        %2737 = vmatprep.subr.mxu0 0.0
        %2738 = vmatpush1.msra.mxu0 %v2707
        %2739 = vmatprep.subr.mxu0 0.0
        %2740 = vmatpush1.msra.mxu0 %v2708
        %2741 = vmatprep.subr.mxu0 0.0
        %2742 = vmatpush1.msra.mxu0 0.0
        %2743 = vmatprep.subr.mxu0 0.0
        %2744 = vmatpush1.msra.mxu0 0.0
        %2745 = vmatprep.subr.mxu0 0.0
        %2746 = vmatpush1.msra.mxu0 0.0
        %2747 = vmatprep.subr.mxu0 0.0
        %2748 = vmatpush1.msra.mxu0 0.0
        %2749 = vmatprep.subr.mxu0 0.0
        %2750 = vmatpush1.msra.mxu0 0.0
        %2751 = vmatprep.subr.mxu0 0.0
        %2752 = vmatpush1.msra.mxu0 0.0
        %2753 = vmatprep.subr.mxu0 0.0
        %2754 = vmatpush1.msra.mxu0 0.0
        %2755 = vmatprep.subr.mxu0 0.0
        %2756 = vmatpush1.msra.mxu0 0.0
        %2757 = vmatprep.subr.mxu0 0.0
        %2758 = vmatpush1.msra.mxu0 0.0
        %2759 = vmatprep.subr.mxu0 0.0
        %2760 = vmatpush1.msra.mxu0 0.0
        %2761 = vmatprep.subr.mxu0 0.0
        %2762 = vmatpush1.msra.mxu0 0.0
        %2763 = vmatprep.subr.mxu0 0.0
        %2764 = vmatpush1.msra.mxu0 0.0
        %2765 = vmatprep.subr.mxu0 0.0
        %2766 = vmatpush1.msra.mxu0 0.0
        %2767 = vmatprep.subr.mxu0 0.0
        %2768 = vmatpush1.msra.mxu0 0.0
        %2769 = vmatprep.subr.mxu0 0.0
        %2770 = vmatpush1.msra.mxu0 0.0
        %2771 = vmatprep.subr.mxu0 0.0
        %2772 = vmatpush1.msra.mxu0 0.0
        %2773 = vmatprep.mubr.f32.mxu0 0.0
        %2774 = vmatmul.mubr.f32.gmra.mrb[0].mxu0 %v2595
        %v2775 = vpop.f32.mrb[0].mxu0
        %v2776 = vadd.f32 %v2599, %v2775
        %v2777 = vpop.f32.mrb[0].mxu0
        %2778 = vdwg.mxu0
        %v2779 = vmul.f32 %v2776, 0.5
        %v2780 = vtanh.pop %v2779
        %v2781 = vadd.f32 %v2780, 1.0
        %v2782 = vmul.f32 %v2781, 0.5
        %v2783 = vmul.f32 %v2782, %v2692
        %v2784 = vld [vmem:[#allocation11 + $0x8] sm:$0xff]
        %v2785 = vld [vmem:[#allocation11 + $0x28] sm:$0xff]
        %v2786 = vld [vmem:[#allocation11 + $0x48] sm:$0xff]
        %v2787 = vld [vmem:[#allocation11 + $0x68] sm:$0xff]
        %v2788 = vld [vmem:[#allocation11 + $0x88] sm:$0xff]
        %v2789 = vld [vmem:[#allocation11 + $0xa8] sm:$0xff]
        %v2790 = vld [vmem:[#allocation11 + $0xc8] sm:$0xff]
        %v2791 = vld [vmem:[#allocation11 + $0xe8] sm:$0xff]
        %v2792 = vld [vmem:[#allocation11 + $0x108] sm:$0xff]
        %v2793 = vld [vmem:[#allocation11 + $0x128] sm:$0xff]
        %v2794 = vld [vmem:[#allocation11 + $0x148] sm:$0xff]
        %v2795 = vld [vmem:[#allocation11 + $0x168] sm:$0xff]
        %v2796 = vld [vmem:[#allocation11 + $0x188] sm:$0xff]
        %v2797 = vld [vmem:[#allocation11 + $0x1a8] sm:$0xff]
        %v2798 = vld [vmem:[#allocation11 + $0x1c8] sm:$0xff]
        %v2799 = vld [vmem:[#allocation11 + $0x1e8] sm:$0xff]
        %v2800 = vlaneseq
        %v2801 = vshrl.u32 %v2800, 7
        %v2802 = vsub.s32 1, %v2801
        %v2803 = vrot.slane %v2599, %v2802
        %2805 = vmatprep.subr.mxu0 0.0
        %2806 = vmatpush1.msra.mxu0 %v2784
        %2807 = vmatprep.subr.mxu0 0.0
        %2808 = vmatpush1.msra.mxu0 %v2785
        %2809 = vmatprep.subr.mxu0 0.0
        %2810 = vmatpush1.msra.mxu0 %v2786
        %2811 = vmatprep.subr.mxu0 0.0
        %2812 = vmatpush1.msra.mxu0 %v2787
        %2813 = vmatprep.subr.mxu0 0.0
        %2814 = vmatpush1.msra.mxu0 %v2788
        %2815 = vmatprep.subr.mxu0 0.0
        %2816 = vmatpush1.msra.mxu0 %v2789
        %2817 = vmatprep.subr.mxu0 0.0
        %2818 = vmatpush1.msra.mxu0 %v2790
        %2819 = vmatprep.subr.mxu0 0.0
        %2820 = vmatpush1.msra.mxu0 %v2791
        %2821 = vmatprep.subr.mxu0 0.0
        %2822 = vmatpush1.msra.mxu0 %v2792
        %2823 = vmatprep.subr.mxu0 0.0
        %2824 = vmatpush1.msra.mxu0 %v2793
        %2825 = vmatprep.subr.mxu0 0.0
        %2826 = vmatpush1.msra.mxu0 %v2794
        %2827 = vmatprep.subr.mxu0 0.0
        %2828 = vmatpush1.msra.mxu0 %v2795
        %2829 = vmatprep.subr.mxu0 0.0
        %2830 = vmatpush1.msra.mxu0 %v2796
        %2831 = vmatprep.subr.mxu0 0.0
        %2832 = vmatpush1.msra.mxu0 %v2797
        %2833 = vmatprep.subr.mxu0 0.0
        %2834 = vmatpush1.msra.mxu0 %v2798
        %2835 = vmatprep.subr.mxu0 0.0
        %2836 = vmatpush1.msra.mxu0 %v2799
        %2837 = vmatprep.subr.mxu0 0.0
        %2838 = vmatpush1.msra.mxu0 0.0
        %2839 = vmatprep.subr.mxu0 0.0
        %2840 = vmatpush1.msra.mxu0 0.0
        %2841 = vmatprep.subr.mxu0 0.0
        %2842 = vmatpush1.msra.mxu0 0.0
        %2843 = vmatprep.subr.mxu0 0.0
        %2844 = vmatpush1.msra.mxu0 0.0
        %2845 = vmatprep.subr.mxu0 0.0
        %2846 = vmatpush1.msra.mxu0 0.0
        %2847 = vmatprep.subr.mxu0 0.0
        %2848 = vmatpush1.msra.mxu0 0.0
        %2849 = vmatprep.subr.mxu0 0.0
        %2850 = vmatpush1.msra.mxu0 0.0
        %2851 = vmatprep.subr.mxu0 0.0
        %2852 = vmatpush1.msra.mxu0 0.0
        %2853 = vmatprep.subr.mxu0 0.0
        %2854 = vmatpush1.msra.mxu0 0.0
        %2855 = vmatprep.subr.mxu0 0.0
        %2856 = vmatpush1.msra.mxu0 0.0
        %2857 = vmatprep.subr.mxu0 0.0
        %2858 = vmatpush1.msra.mxu0 0.0
        %2859 = vmatprep.subr.mxu0 0.0
        %2860 = vmatpush1.msra.mxu0 0.0
        %2861 = vmatprep.subr.mxu0 0.0
        %2862 = vmatpush1.msra.mxu0 0.0
        %2863 = vmatprep.subr.mxu0 0.0
        %2864 = vmatpush1.msra.mxu0 0.0
        %2865 = vmatprep.subr.mxu0 0.0
        %2866 = vmatpush1.msra.mxu0 0.0
        %2867 = vmatprep.subr.mxu0 0.0
        %2868 = vmatpush1.msra.mxu0 0.0
        %2869 = vmatprep.mubr.f32.mxu0 0.0
        %2870 = vmatmul.mubr.f32.gmra.mrb[0].mxu0 %v2595
        %v2871 = vpop.f32.mrb[0].mxu0
        %v2872 = vadd.f32 %v2803, %v2871
        %v2873 = vpop.f32.mrb[0].mxu0
        %2874 = vdwg.mxu0
        %v2875 = vmul.f32 %v2872, 0.5
        %v2876 = vtanh.pop %v2875
        %v2877 = vadd.f32 %v2876, 1.0
        %v2878 = vmul.f32 %v2877, 0.5
        %v2879 = vmul.f32 %v2878, %v2498
        %v2880 = vadd.f32 %v2879, %v2783
        %v2881 = vld [vmem:[#allocation11 + $0x18] sm:$0xff]
        %v2882 = vld [vmem:[#allocation11 + $0x38] sm:$0xff]
        %v2883 = vld [vmem:[#allocation11 + $0x58] sm:$0xff]
        %v2884 = vld [vmem:[#allocation11 + $0x78] sm:$0xff]
        %v2885 = vld [vmem:[#allocation11 + $0x98] sm:$0xff]
        %v2886 = vld [vmem:[#allocation11 + $0xb8] sm:$0xff]
        %v2887 = vld [vmem:[#allocation11 + $0xd8] sm:$0xff]
        %v2888 = vld [vmem:[#allocation11 + $0xf8] sm:$0xff]
        %v2889 = vld [vmem:[#allocation11 + $0x118] sm:$0xff]
        %v2890 = vld [vmem:[#allocation11 + $0x138] sm:$0xff]
        %v2891 = vld [vmem:[#allocation11 + $0x158] sm:$0xff]
        %v2892 = vld [vmem:[#allocation11 + $0x178] sm:$0xff]
        %v2893 = vld [vmem:[#allocation11 + $0x198] sm:$0xff]
        %v2894 = vld [vmem:[#allocation11 + $0x1b8] sm:$0xff]
        %v2895 = vld [vmem:[#allocation11 + $0x1d8] sm:$0xff]
        %v2896 = vld [vmem:[#allocation11 + $0x1f8] sm:$0xff]
        %v2897 = vlaneseq
        %v2898 = vshrl.u32 %v2897, 7
        %v2899 = vsub.s32 3, %v2898
        %v2900 = vrot.slane %v2599, %v2899
        %2902 = vmatprep.subr.mxu0 0.0
        %2903 = vmatpush1.msra.mxu0 %v2881
        %2904 = vmatprep.subr.mxu0 0.0
        %2905 = vmatpush1.msra.mxu0 %v2882
        %2906 = vmatprep.subr.mxu0 0.0
        %2907 = vmatpush1.msra.mxu0 %v2883
        %2908 = vmatprep.subr.mxu0 0.0
        %2909 = vmatpush1.msra.mxu0 %v2884
        %2910 = vmatprep.subr.mxu0 0.0
        %2911 = vmatpush1.msra.mxu0 %v2885
        %2912 = vmatprep.subr.mxu0 0.0
        %2913 = vmatpush1.msra.mxu0 %v2886
        %2914 = vmatprep.subr.mxu0 0.0
        %2915 = vmatpush1.msra.mxu0 %v2887
        %2916 = vmatprep.subr.mxu0 0.0
        %2917 = vmatpush1.msra.mxu0 %v2888
        %2918 = vmatprep.subr.mxu0 0.0
        %2919 = vmatpush1.msra.mxu0 %v2889
        %2920 = vmatprep.subr.mxu0 0.0
        %2921 = vmatpush1.msra.mxu0 %v2890
        %2922 = vmatprep.subr.mxu0 0.0
        %2923 = vmatpush1.msra.mxu0 %v2891
        %2924 = vmatprep.subr.mxu0 0.0
        %2925 = vmatpush1.msra.mxu0 %v2892
        %2926 = vmatprep.subr.mxu0 0.0
        %2927 = vmatpush1.msra.mxu0 %v2893
        %2928 = vmatprep.subr.mxu0 0.0
        %2929 = vmatpush1.msra.mxu0 %v2894
        %2930 = vmatprep.subr.mxu0 0.0
        %2931 = vmatpush1.msra.mxu0 %v2895
        %2932 = vmatprep.subr.mxu0 0.0
        %2933 = vmatpush1.msra.mxu0 %v2896
        %2934 = vmatprep.subr.mxu0 0.0
        %2935 = vmatpush1.msra.mxu0 0.0
        %2936 = vmatprep.subr.mxu0 0.0
        %2937 = vmatpush1.msra.mxu0 0.0
        %2938 = vmatprep.subr.mxu0 0.0
        %2939 = vmatpush1.msra.mxu0 0.0
        %2940 = vmatprep.subr.mxu0 0.0
        %2941 = vmatpush1.msra.mxu0 0.0
        %2942 = vmatprep.subr.mxu0 0.0
        %2943 = vmatpush1.msra.mxu0 0.0
        %2944 = vmatprep.subr.mxu0 0.0
        %2945 = vmatpush1.msra.mxu0 0.0
        %2946 = vmatprep.subr.mxu0 0.0
        %2947 = vmatpush1.msra.mxu0 0.0
        %2948 = vmatprep.subr.mxu0 0.0
        %2949 = vmatpush1.msra.mxu0 0.0
        %2950 = vmatprep.subr.mxu0 0.0
        %2951 = vmatpush1.msra.mxu0 0.0
        %2952 = vmatprep.subr.mxu0 0.0
        %2953 = vmatpush1.msra.mxu0 0.0
        %2954 = vmatprep.subr.mxu0 0.0
        %2955 = vmatpush1.msra.mxu0 0.0
        %2956 = vmatprep.subr.mxu0 0.0
        %2957 = vmatpush1.msra.mxu0 0.0
        %2958 = vmatprep.subr.mxu0 0.0
        %2959 = vmatpush1.msra.mxu0 0.0
        %2960 = vmatprep.subr.mxu0 0.0
        %2961 = vmatpush1.msra.mxu0 0.0
        %2962 = vmatprep.subr.mxu0 0.0
        %2963 = vmatpush1.msra.mxu0 0.0
        %2964 = vmatprep.subr.mxu0 0.0
        %2965 = vmatpush1.msra.mxu0 0.0
        %2966 = vmatprep.mubr.f32.mxu0 0.0
        %2967 = vmatmul.mubr.f32.gmra.mrb[0].mxu0 %v2595
        %v2968 = vpop.f32.mrb[0].mxu0
        %v2969 = vadd.f32 %v2900, %v2968
        %v2970 = vpop.f32.mrb[0].mxu0
        %2971 = vdwg.mxu0
        %v2972 = vmul.f32 %v2969, 0.5
        %v2973 = vtanh.pop %v2972
        %v2974 = vadd.f32 %v2973, 1.0
        %v2975 = vmul.f32 %v2974, 0.5
        %v2976 = vtanh.pop %v2880
        %v2977 = vmul.f32 %v2975, %v2976
        %s2978 = scalar_lea.vmem [#allocation3], 4
        %2979 = vst [vmem:[%s2978] sm:$0x1] %v2977
        %s2980 = scalar_lea.vmem [#allocation2], 20
        %v2981 = vld [vmem:[%s2980] sm:$0xf]
        %v2982 = vld [vmem:[#allocation11 + $0x10] sm:$0xff]
        %v2983 = vld [vmem:[#allocation11 + $0x30] sm:$0xff]
        %v2984 = vld [vmem:[#allocation11 + $0x50] sm:$0xff]
        %v2985 = vld [vmem:[#allocation11 + $0x70] sm:$0xff]
        %v2986 = vld [vmem:[#allocation11 + $0x90] sm:$0xff]
        %v2987 = vld [vmem:[#allocation11 + $0xb0] sm:$0xff]
        %v2988 = vld [vmem:[#allocation11 + $0xd0] sm:$0xff]
        %v2989 = vld [vmem:[#allocation11 + $0xf0] sm:$0xff]
        %v2990 = vld [vmem:[#allocation11 + $0x110] sm:$0xff]
        %v2991 = vld [vmem:[#allocation11 + $0x130] sm:$0xff]
        %v2992 = vld [vmem:[#allocation11 + $0x150] sm:$0xff]
        %v2993 = vld [vmem:[#allocation11 + $0x170] sm:$0xff]
        %v2994 = vld [vmem:[#allocation11 + $0x190] sm:$0xff]
        %v2995 = vld [vmem:[#allocation11 + $0x1b0] sm:$0xff]
        %v2996 = vld [vmem:[#allocation11 + $0x1d0] sm:$0xff]
        %v2997 = vld [vmem:[#allocation11 + $0x1f0] sm:$0xff]
        %v2999 = vlaneseq
        %v3000 = vshrl.u32 %v2999, 7
        %v3001 = vsub.s32 2, %v3000
        %v3002 = vrot.slane %v2981, %v3001
        %3004 = vmatprep.subr.mxu0 0.0
        %3005 = vmatpush1.msra.mxu0 %v2982
        %3006 = vmatprep.subr.mxu0 0.0
        %3007 = vmatpush1.msra.mxu0 %v2983
        %3008 = vmatprep.subr.mxu0 0.0
        %3009 = vmatpush1.msra.mxu0 %v2984
        %3010 = vmatprep.subr.mxu0 0.0
        %3011 = vmatpush1.msra.mxu0 %v2985
        %3012 = vmatprep.subr.mxu0 0.0
        %3013 = vmatpush1.msra.mxu0 %v2986
        %3014 = vmatprep.subr.mxu0 0.0
        %3015 = vmatpush1.msra.mxu0 %v2987
        %3016 = vmatprep.subr.mxu0 0.0
        %3017 = vmatpush1.msra.mxu0 %v2988
        %3018 = vmatprep.subr.mxu0 0.0
        %3019 = vmatpush1.msra.mxu0 %v2989
        %3020 = vmatprep.subr.mxu0 0.0
        %3021 = vmatpush1.msra.mxu0 %v2990
        %3022 = vmatprep.subr.mxu0 0.0
        %3023 = vmatpush1.msra.mxu0 %v2991
        %3024 = vmatprep.subr.mxu0 0.0
        %3025 = vmatpush1.msra.mxu0 %v2992
        %3026 = vmatprep.subr.mxu0 0.0
        %3027 = vmatpush1.msra.mxu0 %v2993
        %3028 = vmatprep.subr.mxu0 0.0
        %3029 = vmatpush1.msra.mxu0 %v2994
        %3030 = vmatprep.subr.mxu0 0.0
        %3031 = vmatpush1.msra.mxu0 %v2995
        %3032 = vmatprep.subr.mxu0 0.0
        %3033 = vmatpush1.msra.mxu0 %v2996
        %3034 = vmatprep.subr.mxu0 0.0
        %3035 = vmatpush1.msra.mxu0 %v2997
        %3036 = vmatprep.subr.mxu0 0.0
        %3037 = vmatpush1.msra.mxu0 0.0
        %3038 = vmatprep.subr.mxu0 0.0
        %3039 = vmatpush1.msra.mxu0 0.0
        %3040 = vmatprep.subr.mxu0 0.0
        %3041 = vmatpush1.msra.mxu0 0.0
        %3042 = vmatprep.subr.mxu0 0.0
        %3043 = vmatpush1.msra.mxu0 0.0
        %3044 = vmatprep.subr.mxu0 0.0
        %3045 = vmatpush1.msra.mxu0 0.0
        %3046 = vmatprep.subr.mxu0 0.0
        %3047 = vmatpush1.msra.mxu0 0.0
        %3048 = vmatprep.subr.mxu0 0.0
        %3049 = vmatpush1.msra.mxu0 0.0
        %3050 = vmatprep.subr.mxu0 0.0
        %3051 = vmatpush1.msra.mxu0 0.0
        %3052 = vmatprep.subr.mxu0 0.0
        %3053 = vmatpush1.msra.mxu0 0.0
        %3054 = vmatprep.subr.mxu0 0.0
        %3055 = vmatpush1.msra.mxu0 0.0
        %3056 = vmatprep.subr.mxu0 0.0
        %3057 = vmatpush1.msra.mxu0 0.0
        %3058 = vmatprep.subr.mxu0 0.0
        %3059 = vmatpush1.msra.mxu0 0.0
        %3060 = vmatprep.subr.mxu0 0.0
        %3061 = vmatpush1.msra.mxu0 0.0
        %3062 = vmatprep.subr.mxu0 0.0
        %3063 = vmatpush1.msra.mxu0 0.0
        %3064 = vmatprep.subr.mxu0 0.0
        %3065 = vmatpush1.msra.mxu0 0.0
        %3066 = vmatprep.subr.mxu0 0.0
        %3067 = vmatpush1.msra.mxu0 0.0
        %3068 = vmatprep.mubr.f32.mxu0 0.0
        %3069 = vmatmul.mubr.f32.gmra.mrb[0].mxu0 %v2977
        %v3070 = vpop.f32.mrb[0].mxu0
        %v3071 = vadd.f32 %v3002, %v3070
        %v3072 = vpop.f32.mrb[0].mxu0
        %3073 = vdwg.mxu0
        %v3074 = vtanh.pop %v3071
        %v3075 = vld [vmem:[#allocation11] sm:$0xff]
        %v3076 = vld [vmem:[#allocation11 + $0x20] sm:$0xff]
        %v3077 = vld [vmem:[#allocation11 + $0x40] sm:$0xff]
        %v3078 = vld [vmem:[#allocation11 + $0x60] sm:$0xff]
        %v3079 = vld [vmem:[#allocation11 + $0x80] sm:$0xff]
        %v3080 = vld [vmem:[#allocation11 + $0xa0] sm:$0xff]
        %v3081 = vld [vmem:[#allocation11 + $0xc0] sm:$0xff]
        %v3082 = vld [vmem:[#allocation11 + $0xe0] sm:$0xff]
        %v3083 = vld [vmem:[#allocation11 + $0x100] sm:$0xff]
        %v3084 = vld [vmem:[#allocation11 + $0x120] sm:$0xff]
        %v3085 = vld [vmem:[#allocation11 + $0x140] sm:$0xff]
        %v3086 = vld [vmem:[#allocation11 + $0x160] sm:$0xff]
        %v3087 = vld [vmem:[#allocation11 + $0x180] sm:$0xff]
        %v3088 = vld [vmem:[#allocation11 + $0x1a0] sm:$0xff]
        %v3089 = vld [vmem:[#allocation11 + $0x1c0] sm:$0xff]
        %v3090 = vld [vmem:[#allocation11 + $0x1e0] sm:$0xff]
        %3091 = vmatprep.subr.mxu0 0.0
        %3092 = vmatpush1.msra.mxu0 %v3075
        %3093 = vmatprep.subr.mxu0 0.0
        %3094 = vmatpush1.msra.mxu0 %v3076
        %3095 = vmatprep.subr.mxu0 0.0
        %3096 = vmatpush1.msra.mxu0 %v3077
        %3097 = vmatprep.subr.mxu0 0.0
        %3098 = vmatpush1.msra.mxu0 %v3078
        %3099 = vmatprep.subr.mxu0 0.0
        %3100 = vmatpush1.msra.mxu0 %v3079
        %3101 = vmatprep.subr.mxu0 0.0
        %3102 = vmatpush1.msra.mxu0 %v3080
        %3103 = vmatprep.subr.mxu0 0.0
        %3104 = vmatpush1.msra.mxu0 %v3081
        %3105 = vmatprep.subr.mxu0 0.0
        %3106 = vmatpush1.msra.mxu0 %v3082
        %3107 = vmatprep.subr.mxu0 0.0
        %3108 = vmatpush1.msra.mxu0 %v3083
        %3109 = vmatprep.subr.mxu0 0.0
        %3110 = vmatpush1.msra.mxu0 %v3084
        %3111 = vmatprep.subr.mxu0 0.0
        %3112 = vmatpush1.msra.mxu0 %v3085
        %3113 = vmatprep.subr.mxu0 0.0
        %3114 = vmatpush1.msra.mxu0 %v3086
        %3115 = vmatprep.subr.mxu0 0.0
        %3116 = vmatpush1.msra.mxu0 %v3087
        %3117 = vmatprep.subr.mxu0 0.0
        %3118 = vmatpush1.msra.mxu0 %v3088
        %3119 = vmatprep.subr.mxu0 0.0
        %3120 = vmatpush1.msra.mxu0 %v3089
        %3121 = vmatprep.subr.mxu0 0.0
        %3122 = vmatpush1.msra.mxu0 %v3090
        %3123 = vmatprep.subr.mxu0 0.0
        %3124 = vmatpush1.msra.mxu0 0.0
        %3125 = vmatprep.subr.mxu0 0.0
        %3126 = vmatpush1.msra.mxu0 0.0
        %3127 = vmatprep.subr.mxu0 0.0
        %3128 = vmatpush1.msra.mxu0 0.0
        %3129 = vmatprep.subr.mxu0 0.0
        %3130 = vmatpush1.msra.mxu0 0.0
        %3131 = vmatprep.subr.mxu0 0.0
        %3132 = vmatpush1.msra.mxu0 0.0
        %3133 = vmatprep.subr.mxu0 0.0
        %3134 = vmatpush1.msra.mxu0 0.0
        %3135 = vmatprep.subr.mxu0 0.0
        %3136 = vmatpush1.msra.mxu0 0.0
        %3137 = vmatprep.subr.mxu0 0.0
        %3138 = vmatpush1.msra.mxu0 0.0
        %3139 = vmatprep.subr.mxu0 0.0
        %3140 = vmatpush1.msra.mxu0 0.0
        %3141 = vmatprep.subr.mxu0 0.0
        %3142 = vmatpush1.msra.mxu0 0.0
        %3143 = vmatprep.subr.mxu0 0.0
        %3144 = vmatpush1.msra.mxu0 0.0
        %3145 = vmatprep.subr.mxu0 0.0
        %3146 = vmatpush1.msra.mxu0 0.0
        %3147 = vmatprep.subr.mxu0 0.0
        %3148 = vmatpush1.msra.mxu0 0.0
        %3149 = vmatprep.subr.mxu0 0.0
        %3150 = vmatpush1.msra.mxu0 0.0
        %3151 = vmatprep.subr.mxu0 0.0
        %3152 = vmatpush1.msra.mxu0 0.0
        %3153 = vmatprep.subr.mxu0 0.0
        %3154 = vmatpush1.msra.mxu0 0.0
        %3155 = vmatprep.mubr.f32.mxu0 0.0
        %3156 = vmatmul.mubr.f32.gmra.mrb[0].mxu0 %v2977
        %v3157 = vpop.f32.mrb[0].mxu0
        %v3158 = vadd.f32 %v2981, %v3157
        %v3159 = vpop.f32.mrb[0].mxu0
        %3160 = vdwg.mxu0
        %v3161 = vmul.f32 %v3158, 0.5
        %v3162 = vtanh.pop %v3161
        %v3163 = vadd.f32 %v3162, 1.0
        %v3164 = vmul.f32 %v3163, 0.5
        %v3165 = vmul.f32 %v3164, %v3074
        %v3166 = vld [vmem:[#allocation11 + $0x8] sm:$0xff]
        %v3167 = vld [vmem:[#allocation11 + $0x28] sm:$0xff]
        %v3168 = vld [vmem:[#allocation11 + $0x48] sm:$0xff]
        %v3169 = vld [vmem:[#allocation11 + $0x68] sm:$0xff]
        %v3170 = vld [vmem:[#allocation11 + $0x88] sm:$0xff]
        %v3171 = vld [vmem:[#allocation11 + $0xa8] sm:$0xff]
        %v3172 = vld [vmem:[#allocation11 + $0xc8] sm:$0xff]
        %v3173 = vld [vmem:[#allocation11 + $0xe8] sm:$0xff]
        %v3174 = vld [vmem:[#allocation11 + $0x108] sm:$0xff]
        %v3175 = vld [vmem:[#allocation11 + $0x128] sm:$0xff]
        %v3176 = vld [vmem:[#allocation11 + $0x148] sm:$0xff]
        %v3177 = vld [vmem:[#allocation11 + $0x168] sm:$0xff]
        %v3178 = vld [vmem:[#allocation11 + $0x188] sm:$0xff]
        %v3179 = vld [vmem:[#allocation11 + $0x1a8] sm:$0xff]
        %v3180 = vld [vmem:[#allocation11 + $0x1c8] sm:$0xff]
        %v3181 = vld [vmem:[#allocation11 + $0x1e8] sm:$0xff]
        %v3182 = vlaneseq
        %v3183 = vshrl.u32 %v3182, 7
        %v3184 = vsub.s32 1, %v3183
        %v3185 = vrot.slane %v2981, %v3184
        %3187 = vmatprep.subr.mxu0 0.0
        %3188 = vmatpush1.msra.mxu0 %v3166
        %3189 = vmatprep.subr.mxu0 0.0
        %3190 = vmatpush1.msra.mxu0 %v3167
        %3191 = vmatprep.subr.mxu0 0.0
        %3192 = vmatpush1.msra.mxu0 %v3168
        %3193 = vmatprep.subr.mxu0 0.0
        %3194 = vmatpush1.msra.mxu0 %v3169
        %3195 = vmatprep.subr.mxu0 0.0
        %3196 = vmatpush1.msra.mxu0 %v3170
        %3197 = vmatprep.subr.mxu0 0.0
        %3198 = vmatpush1.msra.mxu0 %v3171
        %3199 = vmatprep.subr.mxu0 0.0
        %3200 = vmatpush1.msra.mxu0 %v3172
        %3201 = vmatprep.subr.mxu0 0.0
        %3202 = vmatpush1.msra.mxu0 %v3173
        %3203 = vmatprep.subr.mxu0 0.0
        %3204 = vmatpush1.msra.mxu0 %v3174
        %3205 = vmatprep.subr.mxu0 0.0
        %3206 = vmatpush1.msra.mxu0 %v3175
        %3207 = vmatprep.subr.mxu0 0.0
        %3208 = vmatpush1.msra.mxu0 %v3176
        %3209 = vmatprep.subr.mxu0 0.0
        %3210 = vmatpush1.msra.mxu0 %v3177
        %3211 = vmatprep.subr.mxu0 0.0
        %3212 = vmatpush1.msra.mxu0 %v3178
        %3213 = vmatprep.subr.mxu0 0.0
        %3214 = vmatpush1.msra.mxu0 %v3179
        %3215 = vmatprep.subr.mxu0 0.0
        %3216 = vmatpush1.msra.mxu0 %v3180
        %3217 = vmatprep.subr.mxu0 0.0
        %3218 = vmatpush1.msra.mxu0 %v3181
        %3219 = vmatprep.subr.mxu0 0.0
        %3220 = vmatpush1.msra.mxu0 0.0
        %3221 = vmatprep.subr.mxu0 0.0
        %3222 = vmatpush1.msra.mxu0 0.0
        %3223 = vmatprep.subr.mxu0 0.0
        %3224 = vmatpush1.msra.mxu0 0.0
        %3225 = vmatprep.subr.mxu0 0.0
        %3226 = vmatpush1.msra.mxu0 0.0
        %3227 = vmatprep.subr.mxu0 0.0
        %3228 = vmatpush1.msra.mxu0 0.0
        %3229 = vmatprep.subr.mxu0 0.0
        %3230 = vmatpush1.msra.mxu0 0.0
        %3231 = vmatprep.subr.mxu0 0.0
        %3232 = vmatpush1.msra.mxu0 0.0
        %3233 = vmatprep.subr.mxu0 0.0
        %3234 = vmatpush1.msra.mxu0 0.0
        %3235 = vmatprep.subr.mxu0 0.0
        %3236 = vmatpush1.msra.mxu0 0.0
        %3237 = vmatprep.subr.mxu0 0.0
        %3238 = vmatpush1.msra.mxu0 0.0
        %3239 = vmatprep.subr.mxu0 0.0
        %3240 = vmatpush1.msra.mxu0 0.0
        %3241 = vmatprep.subr.mxu0 0.0
        %3242 = vmatpush1.msra.mxu0 0.0
        %3243 = vmatprep.subr.mxu0 0.0
        %3244 = vmatpush1.msra.mxu0 0.0
        %3245 = vmatprep.subr.mxu0 0.0
        %3246 = vmatpush1.msra.mxu0 0.0
        %3247 = vmatprep.subr.mxu0 0.0
        %3248 = vmatpush1.msra.mxu0 0.0
        %3249 = vmatprep.subr.mxu0 0.0
        %3250 = vmatpush1.msra.mxu0 0.0
        %3251 = vmatprep.mubr.f32.mxu0 0.0
        %3252 = vmatmul.mubr.f32.gmra.mrb[0].mxu0 %v2977
        %v3253 = vpop.f32.mrb[0].mxu0
        %v3254 = vadd.f32 %v3185, %v3253
        %v3255 = vpop.f32.mrb[0].mxu0
        %3256 = vdwg.mxu0
        %v3257 = vmul.f32 %v3254, 0.5
        %v3258 = vtanh.pop %v3257
        %v3259 = vadd.f32 %v3258, 1.0
        %v3260 = vmul.f32 %v3259, 0.5
        %v3261 = vmul.f32 %v3260, %v2880
        %v3262 = vadd.f32 %v3261, %v3165
        %v3263 = vld [vmem:[#allocation11 + $0x18] sm:$0xff]
        %v3264 = vld [vmem:[#allocation11 + $0x38] sm:$0xff]
        %v3265 = vld [vmem:[#allocation11 + $0x58] sm:$0xff]
        %v3266 = vld [vmem:[#allocation11 + $0x78] sm:$0xff]
        %v3267 = vld [vmem:[#allocation11 + $0x98] sm:$0xff]
        %v3268 = vld [vmem:[#allocation11 + $0xb8] sm:$0xff]
        %v3269 = vld [vmem:[#allocation11 + $0xd8] sm:$0xff]
        %v3270 = vld [vmem:[#allocation11 + $0xf8] sm:$0xff]
        %v3271 = vld [vmem:[#allocation11 + $0x118] sm:$0xff]
        %v3272 = vld [vmem:[#allocation11 + $0x138] sm:$0xff]
        %v3273 = vld [vmem:[#allocation11 + $0x158] sm:$0xff]
        %v3274 = vld [vmem:[#allocation11 + $0x178] sm:$0xff]
        %v3275 = vld [vmem:[#allocation11 + $0x198] sm:$0xff]
        %v3276 = vld [vmem:[#allocation11 + $0x1b8] sm:$0xff]
        %v3277 = vld [vmem:[#allocation11 + $0x1d8] sm:$0xff]
        %v3278 = vld [vmem:[#allocation11 + $0x1f8] sm:$0xff]
        %v3279 = vlaneseq
        %v3280 = vshrl.u32 %v3279, 7
        %v3281 = vsub.s32 3, %v3280
        %v3282 = vrot.slane %v2981, %v3281
        %3284 = vmatprep.subr.mxu0 0.0
        %3285 = vmatpush1.msra.mxu0 %v3263
        %3286 = vmatprep.subr.mxu0 0.0
        %3287 = vmatpush1.msra.mxu0 %v3264
        %3288 = vmatprep.subr.mxu0 0.0
        %3289 = vmatpush1.msra.mxu0 %v3265
        %3290 = vmatprep.subr.mxu0 0.0
        %3291 = vmatpush1.msra.mxu0 %v3266
        %3292 = vmatprep.subr.mxu0 0.0
        %3293 = vmatpush1.msra.mxu0 %v3267
        %3294 = vmatprep.subr.mxu0 0.0
        %3295 = vmatpush1.msra.mxu0 %v3268
        %3296 = vmatprep.subr.mxu0 0.0
        %3297 = vmatpush1.msra.mxu0 %v3269
        %3298 = vmatprep.subr.mxu0 0.0
        %3299 = vmatpush1.msra.mxu0 %v3270
        %3300 = vmatprep.subr.mxu0 0.0
        %3301 = vmatpush1.msra.mxu0 %v3271
        %3302 = vmatprep.subr.mxu0 0.0
        %3303 = vmatpush1.msra.mxu0 %v3272
        %3304 = vmatprep.subr.mxu0 0.0
        %3305 = vmatpush1.msra.mxu0 %v3273
        %3306 = vmatprep.subr.mxu0 0.0
        %3307 = vmatpush1.msra.mxu0 %v3274
        %3308 = vmatprep.subr.mxu0 0.0
        %3309 = vmatpush1.msra.mxu0 %v3275
        %3310 = vmatprep.subr.mxu0 0.0
        %3311 = vmatpush1.msra.mxu0 %v3276
        %3312 = vmatprep.subr.mxu0 0.0
        %3313 = vmatpush1.msra.mxu0 %v3277
        %3314 = vmatprep.subr.mxu0 0.0
        %3315 = vmatpush1.msra.mxu0 %v3278
        %3316 = vmatprep.subr.mxu0 0.0
        %3317 = vmatpush1.msra.mxu0 0.0
        %3318 = vmatprep.subr.mxu0 0.0
        %3319 = vmatpush1.msra.mxu0 0.0
        %3320 = vmatprep.subr.mxu0 0.0
        %3321 = vmatpush1.msra.mxu0 0.0
        %3322 = vmatprep.subr.mxu0 0.0
        %3323 = vmatpush1.msra.mxu0 0.0
        %3324 = vmatprep.subr.mxu0 0.0
        %3325 = vmatpush1.msra.mxu0 0.0
        %3326 = vmatprep.subr.mxu0 0.0
        %3327 = vmatpush1.msra.mxu0 0.0
        %3328 = vmatprep.subr.mxu0 0.0
        %3329 = vmatpush1.msra.mxu0 0.0
        %3330 = vmatprep.subr.mxu0 0.0
        %3331 = vmatpush1.msra.mxu0 0.0
        %3332 = vmatprep.subr.mxu0 0.0
        %3333 = vmatpush1.msra.mxu0 0.0
        %3334 = vmatprep.subr.mxu0 0.0
        %3335 = vmatpush1.msra.mxu0 0.0
        %3336 = vmatprep.subr.mxu0 0.0
        %3337 = vmatpush1.msra.mxu0 0.0
        %3338 = vmatprep.subr.mxu0 0.0
        %3339 = vmatpush1.msra.mxu0 0.0
        %3340 = vmatprep.subr.mxu0 0.0
        %3341 = vmatpush1.msra.mxu0 0.0
        %3342 = vmatprep.subr.mxu0 0.0
        %3343 = vmatpush1.msra.mxu0 0.0
        %3344 = vmatprep.subr.mxu0 0.0
        %3345 = vmatpush1.msra.mxu0 0.0
        %3346 = vmatprep.subr.mxu0 0.0
        %3347 = vmatpush1.msra.mxu0 0.0
        %3348 = vmatprep.mubr.f32.mxu0 0.0
        %3349 = vmatmul.mubr.f32.gmra.mrb[0].mxu0 %v2977
        %v3350 = vpop.f32.mrb[0].mxu0
        %v3351 = vadd.f32 %v3282, %v3350
        %v3352 = vpop.f32.mrb[0].mxu0
        %3353 = vdwg.mxu0
        %v3354 = vmul.f32 %v3351, 0.5
        %v3355 = vtanh.pop %v3354
        %v3356 = vadd.f32 %v3355, 1.0
        %v3357 = vmul.f32 %v3356, 0.5
        %v3358 = vtanh.pop %v3262
        %v3359 = vmul.f32 %v3357, %v3358
        %s3360 = scalar_lea.vmem [#allocation3], 5
        %3361 = vst [vmem:[%s3360] sm:$0x1] %v3359
        %s3362 = scalar_lea.vmem [#allocation2], 24
        %v3363 = vld [vmem:[%s3362] sm:$0xf]
        %v3364 = vld [vmem:[#allocation11 + $0x10] sm:$0xff]
        %v3365 = vld [vmem:[#allocation11 + $0x30] sm:$0xff]
        %v3366 = vld [vmem:[#allocation11 + $0x50] sm:$0xff]
        %v3367 = vld [vmem:[#allocation11 + $0x70] sm:$0xff]
        %v3368 = vld [vmem:[#allocation11 + $0x90] sm:$0xff]
        %v3369 = vld [vmem:[#allocation11 + $0xb0] sm:$0xff]
        %v3370 = vld [vmem:[#allocation11 + $0xd0] sm:$0xff]
        %v3371 = vld [vmem:[#allocation11 + $0xf0] sm:$0xff]
        %v3372 = vld [vmem:[#allocation11 + $0x110] sm:$0xff]
        %v3373 = vld [vmem:[#allocation11 + $0x130] sm:$0xff]
        %v3374 = vld [vmem:[#allocation11 + $0x150] sm:$0xff]
        %v3375 = vld [vmem:[#allocation11 + $0x170] sm:$0xff]
        %v3376 = vld [vmem:[#allocation11 + $0x190] sm:$0xff]
        %v3377 = vld [vmem:[#allocation11 + $0x1b0] sm:$0xff]
        %v3378 = vld [vmem:[#allocation11 + $0x1d0] sm:$0xff]
        %v3379 = vld [vmem:[#allocation11 + $0x1f0] sm:$0xff]
        %v3381 = vlaneseq
        %v3382 = vshrl.u32 %v3381, 7
        %v3383 = vsub.s32 2, %v3382
        %v3384 = vrot.slane %v3363, %v3383
        %3386 = vmatprep.subr.mxu0 0.0
        %3387 = vmatpush1.msra.mxu0 %v3364
        %3388 = vmatprep.subr.mxu0 0.0
        %3389 = vmatpush1.msra.mxu0 %v3365
        %3390 = vmatprep.subr.mxu0 0.0
        %3391 = vmatpush1.msra.mxu0 %v3366
        %3392 = vmatprep.subr.mxu0 0.0
        %3393 = vmatpush1.msra.mxu0 %v3367
        %3394 = vmatprep.subr.mxu0 0.0
        %3395 = vmatpush1.msra.mxu0 %v3368
        %3396 = vmatprep.subr.mxu0 0.0
        %3397 = vmatpush1.msra.mxu0 %v3369
        %3398 = vmatprep.subr.mxu0 0.0
        %3399 = vmatpush1.msra.mxu0 %v3370
        %3400 = vmatprep.subr.mxu0 0.0
        %3401 = vmatpush1.msra.mxu0 %v3371
        %3402 = vmatprep.subr.mxu0 0.0
        %3403 = vmatpush1.msra.mxu0 %v3372
        %3404 = vmatprep.subr.mxu0 0.0
        %3405 = vmatpush1.msra.mxu0 %v3373
        %3406 = vmatprep.subr.mxu0 0.0
        %3407 = vmatpush1.msra.mxu0 %v3374
        %3408 = vmatprep.subr.mxu0 0.0
        %3409 = vmatpush1.msra.mxu0 %v3375
        %3410 = vmatprep.subr.mxu0 0.0
        %3411 = vmatpush1.msra.mxu0 %v3376
        %3412 = vmatprep.subr.mxu0 0.0
        %3413 = vmatpush1.msra.mxu0 %v3377
        %3414 = vmatprep.subr.mxu0 0.0
        %3415 = vmatpush1.msra.mxu0 %v3378
        %3416 = vmatprep.subr.mxu0 0.0
        %3417 = vmatpush1.msra.mxu0 %v3379
        %3418 = vmatprep.subr.mxu0 0.0
        %3419 = vmatpush1.msra.mxu0 0.0
        %3420 = vmatprep.subr.mxu0 0.0
        %3421 = vmatpush1.msra.mxu0 0.0
        %3422 = vmatprep.subr.mxu0 0.0
        %3423 = vmatpush1.msra.mxu0 0.0
        %3424 = vmatprep.subr.mxu0 0.0
        %3425 = vmatpush1.msra.mxu0 0.0
        %3426 = vmatprep.subr.mxu0 0.0
        %3427 = vmatpush1.msra.mxu0 0.0
        %3428 = vmatprep.subr.mxu0 0.0
        %3429 = vmatpush1.msra.mxu0 0.0
        %3430 = vmatprep.subr.mxu0 0.0
        %3431 = vmatpush1.msra.mxu0 0.0
        %3432 = vmatprep.subr.mxu0 0.0
        %3433 = vmatpush1.msra.mxu0 0.0
        %3434 = vmatprep.subr.mxu0 0.0
        %3435 = vmatpush1.msra.mxu0 0.0
        %3436 = vmatprep.subr.mxu0 0.0
        %3437 = vmatpush1.msra.mxu0 0.0
        %3438 = vmatprep.subr.mxu0 0.0
        %3439 = vmatpush1.msra.mxu0 0.0
        %3440 = vmatprep.subr.mxu0 0.0
        %3441 = vmatpush1.msra.mxu0 0.0
        %3442 = vmatprep.subr.mxu0 0.0
        %3443 = vmatpush1.msra.mxu0 0.0
        %3444 = vmatprep.subr.mxu0 0.0
        %3445 = vmatpush1.msra.mxu0 0.0
        %3446 = vmatprep.subr.mxu0 0.0
        %3447 = vmatpush1.msra.mxu0 0.0
        %3448 = vmatprep.subr.mxu0 0.0
        %3449 = vmatpush1.msra.mxu0 0.0
        %3450 = vmatprep.mubr.f32.mxu0 0.0
        %3451 = vmatmul.mubr.f32.gmra.mrb[0].mxu0 %v3359
        %v3452 = vpop.f32.mrb[0].mxu0
        %v3453 = vadd.f32 %v3384, %v3452
        %v3454 = vpop.f32.mrb[0].mxu0
        %3455 = vdwg.mxu0
        %v3456 = vtanh.pop %v3453
        %v3457 = vld [vmem:[#allocation11] sm:$0xff]
        %v3458 = vld [vmem:[#allocation11 + $0x20] sm:$0xff]
        %v3459 = vld [vmem:[#allocation11 + $0x40] sm:$0xff]
        %v3460 = vld [vmem:[#allocation11 + $0x60] sm:$0xff]
        %v3461 = vld [vmem:[#allocation11 + $0x80] sm:$0xff]
        %v3462 = vld [vmem:[#allocation11 + $0xa0] sm:$0xff]
        %v3463 = vld [vmem:[#allocation11 + $0xc0] sm:$0xff]
        %v3464 = vld [vmem:[#allocation11 + $0xe0] sm:$0xff]
        %v3465 = vld [vmem:[#allocation11 + $0x100] sm:$0xff]
        %v3466 = vld [vmem:[#allocation11 + $0x120] sm:$0xff]
        %v3467 = vld [vmem:[#allocation11 + $0x140] sm:$0xff]
        %v3468 = vld [vmem:[#allocation11 + $0x160] sm:$0xff]
        %v3469 = vld [vmem:[#allocation11 + $0x180] sm:$0xff]
        %v3470 = vld [vmem:[#allocation11 + $0x1a0] sm:$0xff]
        %v3471 = vld [vmem:[#allocation11 + $0x1c0] sm:$0xff]
        %v3472 = vld [vmem:[#allocation11 + $0x1e0] sm:$0xff]
        %3473 = vmatprep.subr.mxu0 0.0
        %3474 = vmatpush1.msra.mxu0 %v3457
        %3475 = vmatprep.subr.mxu0 0.0
        %3476 = vmatpush1.msra.mxu0 %v3458
        %3477 = vmatprep.subr.mxu0 0.0
        %3478 = vmatpush1.msra.mxu0 %v3459
        %3479 = vmatprep.subr.mxu0 0.0
        %3480 = vmatpush1.msra.mxu0 %v3460
        %3481 = vmatprep.subr.mxu0 0.0
        %3482 = vmatpush1.msra.mxu0 %v3461
        %3483 = vmatprep.subr.mxu0 0.0
        %3484 = vmatpush1.msra.mxu0 %v3462
        %3485 = vmatprep.subr.mxu0 0.0
        %3486 = vmatpush1.msra.mxu0 %v3463
        %3487 = vmatprep.subr.mxu0 0.0
        %3488 = vmatpush1.msra.mxu0 %v3464
        %3489 = vmatprep.subr.mxu0 0.0
        %3490 = vmatpush1.msra.mxu0 %v3465
        %3491 = vmatprep.subr.mxu0 0.0
        %3492 = vmatpush1.msra.mxu0 %v3466
        %3493 = vmatprep.subr.mxu0 0.0
        %3494 = vmatpush1.msra.mxu0 %v3467
        %3495 = vmatprep.subr.mxu0 0.0
        %3496 = vmatpush1.msra.mxu0 %v3468
        %3497 = vmatprep.subr.mxu0 0.0
        %3498 = vmatpush1.msra.mxu0 %v3469
        %3499 = vmatprep.subr.mxu0 0.0
        %3500 = vmatpush1.msra.mxu0 %v3470
        %3501 = vmatprep.subr.mxu0 0.0
        %3502 = vmatpush1.msra.mxu0 %v3471
        %3503 = vmatprep.subr.mxu0 0.0
        %3504 = vmatpush1.msra.mxu0 %v3472
        %3505 = vmatprep.subr.mxu0 0.0
        %3506 = vmatpush1.msra.mxu0 0.0
        %3507 = vmatprep.subr.mxu0 0.0
        %3508 = vmatpush1.msra.mxu0 0.0
        %3509 = vmatprep.subr.mxu0 0.0
        %3510 = vmatpush1.msra.mxu0 0.0
        %3511 = vmatprep.subr.mxu0 0.0
        %3512 = vmatpush1.msra.mxu0 0.0
        %3513 = vmatprep.subr.mxu0 0.0
        %3514 = vmatpush1.msra.mxu0 0.0
        %3515 = vmatprep.subr.mxu0 0.0
        %3516 = vmatpush1.msra.mxu0 0.0
        %3517 = vmatprep.subr.mxu0 0.0
        %3518 = vmatpush1.msra.mxu0 0.0
        %3519 = vmatprep.subr.mxu0 0.0
        %3520 = vmatpush1.msra.mxu0 0.0
        %3521 = vmatprep.subr.mxu0 0.0
        %3522 = vmatpush1.msra.mxu0 0.0
        %3523 = vmatprep.subr.mxu0 0.0
        %3524 = vmatpush1.msra.mxu0 0.0
        %3525 = vmatprep.subr.mxu0 0.0
        %3526 = vmatpush1.msra.mxu0 0.0
        %3527 = vmatprep.subr.mxu0 0.0
        %3528 = vmatpush1.msra.mxu0 0.0
        %3529 = vmatprep.subr.mxu0 0.0
        %3530 = vmatpush1.msra.mxu0 0.0
        %3531 = vmatprep.subr.mxu0 0.0
        %3532 = vmatpush1.msra.mxu0 0.0
        %3533 = vmatprep.subr.mxu0 0.0
        %3534 = vmatpush1.msra.mxu0 0.0
        %3535 = vmatprep.subr.mxu0 0.0
        %3536 = vmatpush1.msra.mxu0 0.0
        %3537 = vmatprep.mubr.f32.mxu0 0.0
        %3538 = vmatmul.mubr.f32.gmra.mrb[0].mxu0 %v3359
        %v3539 = vpop.f32.mrb[0].mxu0
        %v3540 = vadd.f32 %v3363, %v3539
        %v3541 = vpop.f32.mrb[0].mxu0
        %3542 = vdwg.mxu0
        %v3543 = vmul.f32 %v3540, 0.5
        %v3544 = vtanh.pop %v3543
        %v3545 = vadd.f32 %v3544, 1.0
        %v3546 = vmul.f32 %v3545, 0.5
        %v3547 = vmul.f32 %v3546, %v3456
        %v3548 = vld [vmem:[#allocation11 + $0x8] sm:$0xff]
        %v3549 = vld [vmem:[#allocation11 + $0x28] sm:$0xff]
        %v3550 = vld [vmem:[#allocation11 + $0x48] sm:$0xff]
        %v3551 = vld [vmem:[#allocation11 + $0x68] sm:$0xff]
        %v3552 = vld [vmem:[#allocation11 + $0x88] sm:$0xff]
        %v3553 = vld [vmem:[#allocation11 + $0xa8] sm:$0xff]
        %v3554 = vld [vmem:[#allocation11 + $0xc8] sm:$0xff]
        %v3555 = vld [vmem:[#allocation11 + $0xe8] sm:$0xff]
        %v3556 = vld [vmem:[#allocation11 + $0x108] sm:$0xff]
        %v3557 = vld [vmem:[#allocation11 + $0x128] sm:$0xff]
        %v3558 = vld [vmem:[#allocation11 + $0x148] sm:$0xff]
        %v3559 = vld [vmem:[#allocation11 + $0x168] sm:$0xff]
        %v3560 = vld [vmem:[#allocation11 + $0x188] sm:$0xff]
        %v3561 = vld [vmem:[#allocation11 + $0x1a8] sm:$0xff]
        %v3562 = vld [vmem:[#allocation11 + $0x1c8] sm:$0xff]
        %v3563 = vld [vmem:[#allocation11 + $0x1e8] sm:$0xff]
        %v3564 = vlaneseq
        %v3565 = vshrl.u32 %v3564, 7
        %v3566 = vsub.s32 1, %v3565
        %v3567 = vrot.slane %v3363, %v3566
        %3569 = vmatprep.subr.mxu0 0.0
        %3570 = vmatpush1.msra.mxu0 %v3548
        %3571 = vmatprep.subr.mxu0 0.0
        %3572 = vmatpush1.msra.mxu0 %v3549
        %3573 = vmatprep.subr.mxu0 0.0
        %3574 = vmatpush1.msra.mxu0 %v3550
        %3575 = vmatprep.subr.mxu0 0.0
        %3576 = vmatpush1.msra.mxu0 %v3551
        %3577 = vmatprep.subr.mxu0 0.0
        %3578 = vmatpush1.msra.mxu0 %v3552
        %3579 = vmatprep.subr.mxu0 0.0
        %3580 = vmatpush1.msra.mxu0 %v3553
        %3581 = vmatprep.subr.mxu0 0.0
        %3582 = vmatpush1.msra.mxu0 %v3554
        %3583 = vmatprep.subr.mxu0 0.0
        %3584 = vmatpush1.msra.mxu0 %v3555
        %3585 = vmatprep.subr.mxu0 0.0
        %3586 = vmatpush1.msra.mxu0 %v3556
        %3587 = vmatprep.subr.mxu0 0.0
        %3588 = vmatpush1.msra.mxu0 %v3557
        %3589 = vmatprep.subr.mxu0 0.0
        %3590 = vmatpush1.msra.mxu0 %v3558
        %3591 = vmatprep.subr.mxu0 0.0
        %3592 = vmatpush1.msra.mxu0 %v3559
        %3593 = vmatprep.subr.mxu0 0.0
        %3594 = vmatpush1.msra.mxu0 %v3560
        %3595 = vmatprep.subr.mxu0 0.0
        %3596 = vmatpush1.msra.mxu0 %v3561
        %3597 = vmatprep.subr.mxu0 0.0
        %3598 = vmatpush1.msra.mxu0 %v3562
        %3599 = vmatprep.subr.mxu0 0.0
        %3600 = vmatpush1.msra.mxu0 %v3563
        %3601 = vmatprep.subr.mxu0 0.0
        %3602 = vmatpush1.msra.mxu0 0.0
        %3603 = vmatprep.subr.mxu0 0.0
        %3604 = vmatpush1.msra.mxu0 0.0
        %3605 = vmatprep.subr.mxu0 0.0
        %3606 = vmatpush1.msra.mxu0 0.0
        %3607 = vmatprep.subr.mxu0 0.0
        %3608 = vmatpush1.msra.mxu0 0.0
        %3609 = vmatprep.subr.mxu0 0.0
        %3610 = vmatpush1.msra.mxu0 0.0
        %3611 = vmatprep.subr.mxu0 0.0
        %3612 = vmatpush1.msra.mxu0 0.0
        %3613 = vmatprep.subr.mxu0 0.0
        %3614 = vmatpush1.msra.mxu0 0.0
        %3615 = vmatprep.subr.mxu0 0.0
        %3616 = vmatpush1.msra.mxu0 0.0
        %3617 = vmatprep.subr.mxu0 0.0
        %3618 = vmatpush1.msra.mxu0 0.0
        %3619 = vmatprep.subr.mxu0 0.0
        %3620 = vmatpush1.msra.mxu0 0.0
        %3621 = vmatprep.subr.mxu0 0.0
        %3622 = vmatpush1.msra.mxu0 0.0
        %3623 = vmatprep.subr.mxu0 0.0
        %3624 = vmatpush1.msra.mxu0 0.0
        %3625 = vmatprep.subr.mxu0 0.0
        %3626 = vmatpush1.msra.mxu0 0.0
        %3627 = vmatprep.subr.mxu0 0.0
        %3628 = vmatpush1.msra.mxu0 0.0
        %3629 = vmatprep.subr.mxu0 0.0
        %3630 = vmatpush1.msra.mxu0 0.0
        %3631 = vmatprep.subr.mxu0 0.0
        %3632 = vmatpush1.msra.mxu0 0.0
        %3633 = vmatprep.mubr.f32.mxu0 0.0
        %3634 = vmatmul.mubr.f32.gmra.mrb[0].mxu0 %v3359
        %v3635 = vpop.f32.mrb[0].mxu0
        %v3636 = vadd.f32 %v3567, %v3635
        %v3637 = vpop.f32.mrb[0].mxu0
        %3638 = vdwg.mxu0
        %v3639 = vmul.f32 %v3636, 0.5
        %v3640 = vtanh.pop %v3639
        %v3641 = vadd.f32 %v3640, 1.0
        %v3642 = vmul.f32 %v3641, 0.5
        %v3643 = vmul.f32 %v3642, %v3262
        %v3644 = vadd.f32 %v3643, %v3547
        %v3645 = vld [vmem:[#allocation11 + $0x18] sm:$0xff]
        %v3646 = vld [vmem:[#allocation11 + $0x38] sm:$0xff]
        %v3647 = vld [vmem:[#allocation11 + $0x58] sm:$0xff]
        %v3648 = vld [vmem:[#allocation11 + $0x78] sm:$0xff]
        %v3649 = vld [vmem:[#allocation11 + $0x98] sm:$0xff]
        %v3650 = vld [vmem:[#allocation11 + $0xb8] sm:$0xff]
        %v3651 = vld [vmem:[#allocation11 + $0xd8] sm:$0xff]
        %v3652 = vld [vmem:[#allocation11 + $0xf8] sm:$0xff]
        %v3653 = vld [vmem:[#allocation11 + $0x118] sm:$0xff]
        %v3654 = vld [vmem:[#allocation11 + $0x138] sm:$0xff]
        %v3655 = vld [vmem:[#allocation11 + $0x158] sm:$0xff]
        %v3656 = vld [vmem:[#allocation11 + $0x178] sm:$0xff]
        %v3657 = vld [vmem:[#allocation11 + $0x198] sm:$0xff]
        %v3658 = vld [vmem:[#allocation11 + $0x1b8] sm:$0xff]
        %v3659 = vld [vmem:[#allocation11 + $0x1d8] sm:$0xff]
        %v3660 = vld [vmem:[#allocation11 + $0x1f8] sm:$0xff]
        %v3661 = vlaneseq
        %v3662 = vshrl.u32 %v3661, 7
        %v3663 = vsub.s32 3, %v3662
        %v3664 = vrot.slane %v3363, %v3663
        %3666 = vmatprep.subr.mxu0 0.0
        %3667 = vmatpush1.msra.mxu0 %v3645
        %3668 = vmatprep.subr.mxu0 0.0
        %3669 = vmatpush1.msra.mxu0 %v3646
        %3670 = vmatprep.subr.mxu0 0.0
        %3671 = vmatpush1.msra.mxu0 %v3647
        %3672 = vmatprep.subr.mxu0 0.0
        %3673 = vmatpush1.msra.mxu0 %v3648
        %3674 = vmatprep.subr.mxu0 0.0
        %3675 = vmatpush1.msra.mxu0 %v3649
        %3676 = vmatprep.subr.mxu0 0.0
        %3677 = vmatpush1.msra.mxu0 %v3650
        %3678 = vmatprep.subr.mxu0 0.0
        %3679 = vmatpush1.msra.mxu0 %v3651
        %3680 = vmatprep.subr.mxu0 0.0
        %3681 = vmatpush1.msra.mxu0 %v3652
        %3682 = vmatprep.subr.mxu0 0.0
        %3683 = vmatpush1.msra.mxu0 %v3653
        %3684 = vmatprep.subr.mxu0 0.0
        %3685 = vmatpush1.msra.mxu0 %v3654
        %3686 = vmatprep.subr.mxu0 0.0
        %3687 = vmatpush1.msra.mxu0 %v3655
        %3688 = vmatprep.subr.mxu0 0.0
        %3689 = vmatpush1.msra.mxu0 %v3656
        %3690 = vmatprep.subr.mxu0 0.0
        %3691 = vmatpush1.msra.mxu0 %v3657
        %3692 = vmatprep.subr.mxu0 0.0
        %3693 = vmatpush1.msra.mxu0 %v3658
        %3694 = vmatprep.subr.mxu0 0.0
        %3695 = vmatpush1.msra.mxu0 %v3659
        %3696 = vmatprep.subr.mxu0 0.0
        %3697 = vmatpush1.msra.mxu0 %v3660
        %3698 = vmatprep.subr.mxu0 0.0
        %3699 = vmatpush1.msra.mxu0 0.0
        %3700 = vmatprep.subr.mxu0 0.0
        %3701 = vmatpush1.msra.mxu0 0.0
        %3702 = vmatprep.subr.mxu0 0.0
        %3703 = vmatpush1.msra.mxu0 0.0
        %3704 = vmatprep.subr.mxu0 0.0
        %3705 = vmatpush1.msra.mxu0 0.0
        %3706 = vmatprep.subr.mxu0 0.0
        %3707 = vmatpush1.msra.mxu0 0.0
        %3708 = vmatprep.subr.mxu0 0.0
        %3709 = vmatpush1.msra.mxu0 0.0
        %3710 = vmatprep.subr.mxu0 0.0
        %3711 = vmatpush1.msra.mxu0 0.0
        %3712 = vmatprep.subr.mxu0 0.0
        %3713 = vmatpush1.msra.mxu0 0.0
        %3714 = vmatprep.subr.mxu0 0.0
        %3715 = vmatpush1.msra.mxu0 0.0
        %3716 = vmatprep.subr.mxu0 0.0
        %3717 = vmatpush1.msra.mxu0 0.0
        %3718 = vmatprep.subr.mxu0 0.0
        %3719 = vmatpush1.msra.mxu0 0.0
        %3720 = vmatprep.subr.mxu0 0.0
        %3721 = vmatpush1.msra.mxu0 0.0
        %3722 = vmatprep.subr.mxu0 0.0
        %3723 = vmatpush1.msra.mxu0 0.0
        %3724 = vmatprep.subr.mxu0 0.0
        %3725 = vmatpush1.msra.mxu0 0.0
        %3726 = vmatprep.subr.mxu0 0.0
        %3727 = vmatpush1.msra.mxu0 0.0
        %3728 = vmatprep.subr.mxu0 0.0
        %3729 = vmatpush1.msra.mxu0 0.0
        %3730 = vmatprep.mubr.f32.mxu0 0.0
        %3731 = vmatmul.mubr.f32.gmra.mrb[0].mxu0 %v3359
        %v3732 = vpop.f32.mrb[0].mxu0
        %v3733 = vadd.f32 %v3664, %v3732
        %v3734 = vpop.f32.mrb[0].mxu0
        %3735 = vdwg.mxu0
        %v3736 = vmul.f32 %v3733, 0.5
        %v3737 = vtanh.pop %v3736
        %v3738 = vadd.f32 %v3737, 1.0
        %v3739 = vmul.f32 %v3738, 0.5
        %v3740 = vtanh.pop %v3644
        %v3741 = vmul.f32 %v3739, %v3740
        %s3742 = scalar_lea.vmem [#allocation3], 6
        %3743 = vst [vmem:[%s3742] sm:$0x1] %v3741
        %s3744 = scalar_lea.vmem [#allocation2], 28
        %v3745 = vld [vmem:[%s3744] sm:$0xf]
        %v3746 = vld [vmem:[#allocation11 + $0x10] sm:$0xff]
        %v3747 = vld [vmem:[#allocation11 + $0x30] sm:$0xff]
        %v3748 = vld [vmem:[#allocation11 + $0x50] sm:$0xff]
        %v3749 = vld [vmem:[#allocation11 + $0x70] sm:$0xff]
        %v3750 = vld [vmem:[#allocation11 + $0x90] sm:$0xff]
        %v3751 = vld [vmem:[#allocation11 + $0xb0] sm:$0xff]
        %v3752 = vld [vmem:[#allocation11 + $0xd0] sm:$0xff]
        %v3753 = vld [vmem:[#allocation11 + $0xf0] sm:$0xff]
        %v3754 = vld [vmem:[#allocation11 + $0x110] sm:$0xff]
        %v3755 = vld [vmem:[#allocation11 + $0x130] sm:$0xff]
        %v3756 = vld [vmem:[#allocation11 + $0x150] sm:$0xff]
        %v3757 = vld [vmem:[#allocation11 + $0x170] sm:$0xff]
        %v3758 = vld [vmem:[#allocation11 + $0x190] sm:$0xff]
        %v3759 = vld [vmem:[#allocation11 + $0x1b0] sm:$0xff]
        %v3760 = vld [vmem:[#allocation11 + $0x1d0] sm:$0xff]
        %v3761 = vld [vmem:[#allocation11 + $0x1f0] sm:$0xff]
        %v3763 = vlaneseq
        %v3764 = vshrl.u32 %v3763, 7
        %v3765 = vsub.s32 2, %v3764
        %v3766 = vrot.slane %v3745, %v3765
        %3768 = vmatprep.subr.mxu0 0.0
        %3769 = vmatpush1.msra.mxu0 %v3746
        %3770 = vmatprep.subr.mxu0 0.0
        %3771 = vmatpush1.msra.mxu0 %v3747
        %3772 = vmatprep.subr.mxu0 0.0
        %3773 = vmatpush1.msra.mxu0 %v3748
        %3774 = vmatprep.subr.mxu0 0.0
        %3775 = vmatpush1.msra.mxu0 %v3749
        %3776 = vmatprep.subr.mxu0 0.0
        %3777 = vmatpush1.msra.mxu0 %v3750
        %3778 = vmatprep.subr.mxu0 0.0
        %3779 = vmatpush1.msra.mxu0 %v3751
        %3780 = vmatprep.subr.mxu0 0.0
        %3781 = vmatpush1.msra.mxu0 %v3752
        %3782 = vmatprep.subr.mxu0 0.0
        %3783 = vmatpush1.msra.mxu0 %v3753
        %3784 = vmatprep.subr.mxu0 0.0
        %3785 = vmatpush1.msra.mxu0 %v3754
        %3786 = vmatprep.subr.mxu0 0.0
        %3787 = vmatpush1.msra.mxu0 %v3755
        %3788 = vmatprep.subr.mxu0 0.0
        %3789 = vmatpush1.msra.mxu0 %v3756
        %3790 = vmatprep.subr.mxu0 0.0
        %3791 = vmatpush1.msra.mxu0 %v3757
        %3792 = vmatprep.subr.mxu0 0.0
        %3793 = vmatpush1.msra.mxu0 %v3758
        %3794 = vmatprep.subr.mxu0 0.0
        %3795 = vmatpush1.msra.mxu0 %v3759
        %3796 = vmatprep.subr.mxu0 0.0
        %3797 = vmatpush1.msra.mxu0 %v3760
        %3798 = vmatprep.subr.mxu0 0.0
        %3799 = vmatpush1.msra.mxu0 %v3761
        %3800 = vmatprep.subr.mxu0 0.0
        %3801 = vmatpush1.msra.mxu0 0.0
        %3802 = vmatprep.subr.mxu0 0.0
        %3803 = vmatpush1.msra.mxu0 0.0
        %3804 = vmatprep.subr.mxu0 0.0
        %3805 = vmatpush1.msra.mxu0 0.0
        %3806 = vmatprep.subr.mxu0 0.0
        %3807 = vmatpush1.msra.mxu0 0.0
        %3808 = vmatprep.subr.mxu0 0.0
        %3809 = vmatpush1.msra.mxu0 0.0
        %3810 = vmatprep.subr.mxu0 0.0
        %3811 = vmatpush1.msra.mxu0 0.0
        %3812 = vmatprep.subr.mxu0 0.0
        %3813 = vmatpush1.msra.mxu0 0.0
        %3814 = vmatprep.subr.mxu0 0.0
        %3815 = vmatpush1.msra.mxu0 0.0
        %3816 = vmatprep.subr.mxu0 0.0
        %3817 = vmatpush1.msra.mxu0 0.0
        %3818 = vmatprep.subr.mxu0 0.0
        %3819 = vmatpush1.msra.mxu0 0.0
        %3820 = vmatprep.subr.mxu0 0.0
        %3821 = vmatpush1.msra.mxu0 0.0
        %3822 = vmatprep.subr.mxu0 0.0
        %3823 = vmatpush1.msra.mxu0 0.0
        %3824 = vmatprep.subr.mxu0 0.0
        %3825 = vmatpush1.msra.mxu0 0.0
        %3826 = vmatprep.subr.mxu0 0.0
        %3827 = vmatpush1.msra.mxu0 0.0
        %3828 = vmatprep.subr.mxu0 0.0
        %3829 = vmatpush1.msra.mxu0 0.0
        %3830 = vmatprep.subr.mxu0 0.0
        %3831 = vmatpush1.msra.mxu0 0.0
        %3832 = vmatprep.mubr.f32.mxu0 0.0
        %3833 = vmatmul.mubr.f32.gmra.mrb[0].mxu0 %v3741
        %v3834 = vpop.f32.mrb[0].mxu0
        %v3835 = vadd.f32 %v3766, %v3834
        %v3836 = vpop.f32.mrb[0].mxu0
        %3837 = vdwg.mxu0
        %v3838 = vtanh.pop %v3835
        %v3839 = vld [vmem:[#allocation11] sm:$0xff]
        %v3840 = vld [vmem:[#allocation11 + $0x20] sm:$0xff]
        %v3841 = vld [vmem:[#allocation11 + $0x40] sm:$0xff]
        %v3842 = vld [vmem:[#allocation11 + $0x60] sm:$0xff]
        %v3843 = vld [vmem:[#allocation11 + $0x80] sm:$0xff]
        %v3844 = vld [vmem:[#allocation11 + $0xa0] sm:$0xff]
        %v3845 = vld [vmem:[#allocation11 + $0xc0] sm:$0xff]
        %v3846 = vld [vmem:[#allocation11 + $0xe0] sm:$0xff]
        %v3847 = vld [vmem:[#allocation11 + $0x100] sm:$0xff]
        %v3848 = vld [vmem:[#allocation11 + $0x120] sm:$0xff]
        %v3849 = vld [vmem:[#allocation11 + $0x140] sm:$0xff]
        %v3850 = vld [vmem:[#allocation11 + $0x160] sm:$0xff]
        %v3851 = vld [vmem:[#allocation11 + $0x180] sm:$0xff]
        %v3852 = vld [vmem:[#allocation11 + $0x1a0] sm:$0xff]
        %v3853 = vld [vmem:[#allocation11 + $0x1c0] sm:$0xff]
        %v3854 = vld [vmem:[#allocation11 + $0x1e0] sm:$0xff]
        %3855 = vmatprep.subr.mxu0 0.0
        %3856 = vmatpush1.msra.mxu0 %v3839
        %3857 = vmatprep.subr.mxu0 0.0
        %3858 = vmatpush1.msra.mxu0 %v3840
        %3859 = vmatprep.subr.mxu0 0.0
        %3860 = vmatpush1.msra.mxu0 %v3841
        %3861 = vmatprep.subr.mxu0 0.0
        %3862 = vmatpush1.msra.mxu0 %v3842
        %3863 = vmatprep.subr.mxu0 0.0
        %3864 = vmatpush1.msra.mxu0 %v3843
        %3865 = vmatprep.subr.mxu0 0.0
        %3866 = vmatpush1.msra.mxu0 %v3844
        %3867 = vmatprep.subr.mxu0 0.0
        %3868 = vmatpush1.msra.mxu0 %v3845
        %3869 = vmatprep.subr.mxu0 0.0
        %3870 = vmatpush1.msra.mxu0 %v3846
        %3871 = vmatprep.subr.mxu0 0.0
        %3872 = vmatpush1.msra.mxu0 %v3847
        %3873 = vmatprep.subr.mxu0 0.0
        %3874 = vmatpush1.msra.mxu0 %v3848
        %3875 = vmatprep.subr.mxu0 0.0
        %3876 = vmatpush1.msra.mxu0 %v3849
        %3877 = vmatprep.subr.mxu0 0.0
        %3878 = vmatpush1.msra.mxu0 %v3850
        %3879 = vmatprep.subr.mxu0 0.0
        %3880 = vmatpush1.msra.mxu0 %v3851
        %3881 = vmatprep.subr.mxu0 0.0
        %3882 = vmatpush1.msra.mxu0 %v3852
        %3883 = vmatprep.subr.mxu0 0.0
        %3884 = vmatpush1.msra.mxu0 %v3853
        %3885 = vmatprep.subr.mxu0 0.0
        %3886 = vmatpush1.msra.mxu0 %v3854
        %3887 = vmatprep.subr.mxu0 0.0
        %3888 = vmatpush1.msra.mxu0 0.0
        %3889 = vmatprep.subr.mxu0 0.0
        %3890 = vmatpush1.msra.mxu0 0.0
        %3891 = vmatprep.subr.mxu0 0.0
        %3892 = vmatpush1.msra.mxu0 0.0
        %3893 = vmatprep.subr.mxu0 0.0
        %3894 = vmatpush1.msra.mxu0 0.0
        %3895 = vmatprep.subr.mxu0 0.0
        %3896 = vmatpush1.msra.mxu0 0.0
        %3897 = vmatprep.subr.mxu0 0.0
        %3898 = vmatpush1.msra.mxu0 0.0
        %3899 = vmatprep.subr.mxu0 0.0
        %3900 = vmatpush1.msra.mxu0 0.0
        %3901 = vmatprep.subr.mxu0 0.0
        %3902 = vmatpush1.msra.mxu0 0.0
        %3903 = vmatprep.subr.mxu0 0.0
        %3904 = vmatpush1.msra.mxu0 0.0
        %3905 = vmatprep.subr.mxu0 0.0
        %3906 = vmatpush1.msra.mxu0 0.0
        %3907 = vmatprep.subr.mxu0 0.0
        %3908 = vmatpush1.msra.mxu0 0.0
        %3909 = vmatprep.subr.mxu0 0.0
        %3910 = vmatpush1.msra.mxu0 0.0
        %3911 = vmatprep.subr.mxu0 0.0
        %3912 = vmatpush1.msra.mxu0 0.0
        %3913 = vmatprep.subr.mxu0 0.0
        %3914 = vmatpush1.msra.mxu0 0.0
        %3915 = vmatprep.subr.mxu0 0.0
        %3916 = vmatpush1.msra.mxu0 0.0
        %3917 = vmatprep.subr.mxu0 0.0
        %3918 = vmatpush1.msra.mxu0 0.0
        %3919 = vmatprep.mubr.f32.mxu0 0.0
        %3920 = vmatmul.mubr.f32.gmra.mrb[0].mxu0 %v3741
        %v3921 = vpop.f32.mrb[0].mxu0
        %v3922 = vadd.f32 %v3745, %v3921
        %v3923 = vpop.f32.mrb[0].mxu0
        %3924 = vdwg.mxu0
        %v3925 = vmul.f32 %v3922, 0.5
        %v3926 = vtanh.pop %v3925
        %v3927 = vadd.f32 %v3926, 1.0
        %v3928 = vmul.f32 %v3927, 0.5
        %v3929 = vmul.f32 %v3928, %v3838
        %v3930 = vld [vmem:[#allocation11 + $0x8] sm:$0xff]
        %v3931 = vld [vmem:[#allocation11 + $0x28] sm:$0xff]
        %v3932 = vld [vmem:[#allocation11 + $0x48] sm:$0xff]
        %v3933 = vld [vmem:[#allocation11 + $0x68] sm:$0xff]
        %v3934 = vld [vmem:[#allocation11 + $0x88] sm:$0xff]
        %v3935 = vld [vmem:[#allocation11 + $0xa8] sm:$0xff]
        %v3936 = vld [vmem:[#allocation11 + $0xc8] sm:$0xff]
        %v3937 = vld [vmem:[#allocation11 + $0xe8] sm:$0xff]
        %v3938 = vld [vmem:[#allocation11 + $0x108] sm:$0xff]
        %v3939 = vld [vmem:[#allocation11 + $0x128] sm:$0xff]
        %v3940 = vld [vmem:[#allocation11 + $0x148] sm:$0xff]
        %v3941 = vld [vmem:[#allocation11 + $0x168] sm:$0xff]
        %v3942 = vld [vmem:[#allocation11 + $0x188] sm:$0xff]
        %v3943 = vld [vmem:[#allocation11 + $0x1a8] sm:$0xff]
        %v3944 = vld [vmem:[#allocation11 + $0x1c8] sm:$0xff]
        %v3945 = vld [vmem:[#allocation11 + $0x1e8] sm:$0xff]
        %v3946 = vlaneseq
        %v3947 = vshrl.u32 %v3946, 7
        %v3948 = vsub.s32 1, %v3947
        %v3949 = vrot.slane %v3745, %v3948
        %3951 = vmatprep.subr.mxu0 0.0
        %3952 = vmatpush1.msra.mxu0 %v3930
        %3953 = vmatprep.subr.mxu0 0.0
        %3954 = vmatpush1.msra.mxu0 %v3931
        %3955 = vmatprep.subr.mxu0 0.0
        %3956 = vmatpush1.msra.mxu0 %v3932
        %3957 = vmatprep.subr.mxu0 0.0
        %3958 = vmatpush1.msra.mxu0 %v3933
        %3959 = vmatprep.subr.mxu0 0.0
        %3960 = vmatpush1.msra.mxu0 %v3934
        %3961 = vmatprep.subr.mxu0 0.0
        %3962 = vmatpush1.msra.mxu0 %v3935
        %3963 = vmatprep.subr.mxu0 0.0
        %3964 = vmatpush1.msra.mxu0 %v3936
        %3965 = vmatprep.subr.mxu0 0.0
        %3966 = vmatpush1.msra.mxu0 %v3937
        %3967 = vmatprep.subr.mxu0 0.0
        %3968 = vmatpush1.msra.mxu0 %v3938
        %3969 = vmatprep.subr.mxu0 0.0
        %3970 = vmatpush1.msra.mxu0 %v3939
        %3971 = vmatprep.subr.mxu0 0.0
        %3972 = vmatpush1.msra.mxu0 %v3940
        %3973 = vmatprep.subr.mxu0 0.0
        %3974 = vmatpush1.msra.mxu0 %v3941
        %3975 = vmatprep.subr.mxu0 0.0
        %3976 = vmatpush1.msra.mxu0 %v3942
        %3977 = vmatprep.subr.mxu0 0.0
        %3978 = vmatpush1.msra.mxu0 %v3943
        %3979 = vmatprep.subr.mxu0 0.0
        %3980 = vmatpush1.msra.mxu0 %v3944
        %3981 = vmatprep.subr.mxu0 0.0
        %3982 = vmatpush1.msra.mxu0 %v3945
        %3983 = vmatprep.subr.mxu0 0.0
        %3984 = vmatpush1.msra.mxu0 0.0
        %3985 = vmatprep.subr.mxu0 0.0
        %3986 = vmatpush1.msra.mxu0 0.0
        %3987 = vmatprep.subr.mxu0 0.0
        %3988 = vmatpush1.msra.mxu0 0.0
        %3989 = vmatprep.subr.mxu0 0.0
        %3990 = vmatpush1.msra.mxu0 0.0
        %3991 = vmatprep.subr.mxu0 0.0
        %3992 = vmatpush1.msra.mxu0 0.0
        %3993 = vmatprep.subr.mxu0 0.0
        %3994 = vmatpush1.msra.mxu0 0.0
        %3995 = vmatprep.subr.mxu0 0.0
        %3996 = vmatpush1.msra.mxu0 0.0
        %3997 = vmatprep.subr.mxu0 0.0
        %3998 = vmatpush1.msra.mxu0 0.0
        %3999 = vmatprep.subr.mxu0 0.0
        %4000 = vmatpush1.msra.mxu0 0.0
        %4001 = vmatprep.subr.mxu0 0.0
        %4002 = vmatpush1.msra.mxu0 0.0
        %4003 = vmatprep.subr.mxu0 0.0
        %4004 = vmatpush1.msra.mxu0 0.0
        %4005 = vmatprep.subr.mxu0 0.0
        %4006 = vmatpush1.msra.mxu0 0.0
        %4007 = vmatprep.subr.mxu0 0.0
        %4008 = vmatpush1.msra.mxu0 0.0
        %4009 = vmatprep.subr.mxu0 0.0
        %4010 = vmatpush1.msra.mxu0 0.0
        %4011 = vmatprep.subr.mxu0 0.0
        %4012 = vmatpush1.msra.mxu0 0.0
        %4013 = vmatprep.subr.mxu0 0.0
        %4014 = vmatpush1.msra.mxu0 0.0
        %4015 = vmatprep.mubr.f32.mxu0 0.0
        %4016 = vmatmul.mubr.f32.gmra.mrb[0].mxu0 %v3741
        %v4017 = vpop.f32.mrb[0].mxu0
        %v4018 = vadd.f32 %v3949, %v4017
        %v4019 = vpop.f32.mrb[0].mxu0
        %4020 = vdwg.mxu0
        %v4021 = vmul.f32 %v4018, 0.5
        %v4022 = vtanh.pop %v4021
        %v4023 = vadd.f32 %v4022, 1.0
        %v4024 = vmul.f32 %v4023, 0.5
        %v4025 = vmul.f32 %v4024, %v3644
        %v4026 = vadd.f32 %v4025, %v3929
        %v4027 = vld [vmem:[#allocation11 + $0x18] sm:$0xff]
        %v4028 = vld [vmem:[#allocation11 + $0x38] sm:$0xff]
        %v4029 = vld [vmem:[#allocation11 + $0x58] sm:$0xff]
        %v4030 = vld [vmem:[#allocation11 + $0x78] sm:$0xff]
        %v4031 = vld [vmem:[#allocation11 + $0x98] sm:$0xff]
        %v4032 = vld [vmem:[#allocation11 + $0xb8] sm:$0xff]
        %v4033 = vld [vmem:[#allocation11 + $0xd8] sm:$0xff]
        %v4034 = vld [vmem:[#allocation11 + $0xf8] sm:$0xff]
        %v4035 = vld [vmem:[#allocation11 + $0x118] sm:$0xff]
        %v4036 = vld [vmem:[#allocation11 + $0x138] sm:$0xff]
        %v4037 = vld [vmem:[#allocation11 + $0x158] sm:$0xff]
        %v4038 = vld [vmem:[#allocation11 + $0x178] sm:$0xff]
        %v4039 = vld [vmem:[#allocation11 + $0x198] sm:$0xff]
        %v4040 = vld [vmem:[#allocation11 + $0x1b8] sm:$0xff]
        %v4041 = vld [vmem:[#allocation11 + $0x1d8] sm:$0xff]
        %v4042 = vld [vmem:[#allocation11 + $0x1f8] sm:$0xff]
        %v4043 = vlaneseq
        %v4044 = vshrl.u32 %v4043, 7
        %v4045 = vsub.s32 3, %v4044
        %v4046 = vrot.slane %v3745, %v4045
        %4048 = vmatprep.subr.mxu0 0.0
        %4049 = vmatpush1.msra.mxu0 %v4027
        %4050 = vmatprep.subr.mxu0 0.0
        %4051 = vmatpush1.msra.mxu0 %v4028
        %4052 = vmatprep.subr.mxu0 0.0
        %4053 = vmatpush1.msra.mxu0 %v4029
        %4054 = vmatprep.subr.mxu0 0.0
        %4055 = vmatpush1.msra.mxu0 %v4030
        %4056 = vmatprep.subr.mxu0 0.0
        %4057 = vmatpush1.msra.mxu0 %v4031
        %4058 = vmatprep.subr.mxu0 0.0
        %4059 = vmatpush1.msra.mxu0 %v4032
        %4060 = vmatprep.subr.mxu0 0.0
        %4061 = vmatpush1.msra.mxu0 %v4033
        %4062 = vmatprep.subr.mxu0 0.0
        %4063 = vmatpush1.msra.mxu0 %v4034
        %4064 = vmatprep.subr.mxu0 0.0
        %4065 = vmatpush1.msra.mxu0 %v4035
        %4066 = vmatprep.subr.mxu0 0.0
        %4067 = vmatpush1.msra.mxu0 %v4036
        %4068 = vmatprep.subr.mxu0 0.0
        %4069 = vmatpush1.msra.mxu0 %v4037
        %4070 = vmatprep.subr.mxu0 0.0
        %4071 = vmatpush1.msra.mxu0 %v4038
        %4072 = vmatprep.subr.mxu0 0.0
        %4073 = vmatpush1.msra.mxu0 %v4039
        %4074 = vmatprep.subr.mxu0 0.0
        %4075 = vmatpush1.msra.mxu0 %v4040
        %4076 = vmatprep.subr.mxu0 0.0
        %4077 = vmatpush1.msra.mxu0 %v4041
        %4078 = vmatprep.subr.mxu0 0.0
        %4079 = vmatpush1.msra.mxu0 %v4042
        %4080 = vmatprep.subr.mxu0 0.0
        %4081 = vmatpush1.msra.mxu0 0.0
        %4082 = vmatprep.subr.mxu0 0.0
        %4083 = vmatpush1.msra.mxu0 0.0
        %4084 = vmatprep.subr.mxu0 0.0
        %4085 = vmatpush1.msra.mxu0 0.0
        %4086 = vmatprep.subr.mxu0 0.0
        %4087 = vmatpush1.msra.mxu0 0.0
        %4088 = vmatprep.subr.mxu0 0.0
        %4089 = vmatpush1.msra.mxu0 0.0
        %4090 = vmatprep.subr.mxu0 0.0
        %4091 = vmatpush1.msra.mxu0 0.0
        %4092 = vmatprep.subr.mxu0 0.0
        %4093 = vmatpush1.msra.mxu0 0.0
        %4094 = vmatprep.subr.mxu0 0.0
        %4095 = vmatpush1.msra.mxu0 0.0
        %4096 = vmatprep.subr.mxu0 0.0
        %4097 = vmatpush1.msra.mxu0 0.0
        %4098 = vmatprep.subr.mxu0 0.0
        %4099 = vmatpush1.msra.mxu0 0.0
        %4100 = vmatprep.subr.mxu0 0.0
        %4101 = vmatpush1.msra.mxu0 0.0
        %4102 = vmatprep.subr.mxu0 0.0
        %4103 = vmatpush1.msra.mxu0 0.0
        %4104 = vmatprep.subr.mxu0 0.0
        %4105 = vmatpush1.msra.mxu0 0.0
        %4106 = vmatprep.subr.mxu0 0.0
        %4107 = vmatpush1.msra.mxu0 0.0
        %4108 = vmatprep.subr.mxu0 0.0
        %4109 = vmatpush1.msra.mxu0 0.0
        %4110 = vmatprep.subr.mxu0 0.0
        %4111 = vmatpush1.msra.mxu0 0.0
        %4112 = vmatprep.mubr.f32.mxu0 0.0
        %4113 = vmatmul.mubr.f32.gmra.mrb[0].mxu0 %v3741
        %v4114 = vpop.f32.mrb[0].mxu0
        %v4115 = vadd.f32 %v4046, %v4114
        %v4116 = vpop.f32.mrb[0].mxu0
        %4117 = vdwg.mxu0
        %v4118 = vmul.f32 %v4115, 0.5
        %v4119 = vtanh.pop %v4118
        %v4120 = vadd.f32 %v4119, 1.0
        %v4121 = vmul.f32 %v4120, 0.5
        %v4122 = vtanh.pop %v4026
        %v4123 = vmul.f32 %v4121, %v4122
        %s4124 = scalar_lea.vmem [#allocation3], 7
        %4125 = vst [vmem:[%s4124] sm:$0x1] %v4123
        %4126 = vst [vmem:[#allocation4] sm:$0x1] %v4123
        %4127 = vst [vmem:[#allocation5] sm:$0x1] %v4026
        %v4128 = vld [vmem:[#allocation3] sm:$0x1]
        %v4129 = vld [vmem:[#allocation3 + $0x1] sm:$0x1]
        %v4130 = vld [vmem:[#allocation3 + $0x2] sm:$0x1]
        %v4131 = vld [vmem:[#allocation3 + $0x3] sm:$0x1]
        %v4132 = vld [vmem:[#allocation3 + $0x4] sm:$0x1]
        %v4133 = vld [vmem:[#allocation3 + $0x5] sm:$0x1]
        %v4134 = vld [vmem:[#allocation3 + $0x6] sm:$0x1]
        %v4135 = vld [vmem:[#allocation3 + $0x7] sm:$0x1]
        %v4136 = vld [vmem:[#allocation12] sm:$0xff]
        %v4137 = vld [vmem:[#allocation12 + $0x8] sm:$0xff]
        %v4138 = vld [vmem:[#allocation12 + $0x10] sm:$0xff]
        %v4139 = vld [vmem:[#allocation12 + $0x18] sm:$0xff]
        %v4140 = vld [vmem:[#allocation12 + $0x20] sm:$0xff]
        %v4141 = vld [vmem:[#allocation12 + $0x28] sm:$0xff]
        %v4142 = vld [vmem:[#allocation12 + $0x30] sm:$0xff]
        %v4143 = vld [vmem:[#allocation12 + $0x38] sm:$0xff]
        %v4144 = vld [vmem:[#allocation12 + $0x40] sm:$0xff]
        %v4145 = vld [vmem:[#allocation12 + $0x48] sm:$0xff]
        %v4146 = vld [vmem:[#allocation12 + $0x50] sm:$0xff]
        %v4147 = vld [vmem:[#allocation12 + $0x58] sm:$0xff]
        %v4148 = vld [vmem:[#allocation12 + $0x60] sm:$0xff]
        %v4149 = vld [vmem:[#allocation12 + $0x68] sm:$0xff]
        %v4150 = vld [vmem:[#allocation12 + $0x70] sm:$0xff]
        %v4151 = vld [vmem:[#allocation12 + $0x78] sm:$0xff]
        %v4152 = vld [vmem:[#allocation12 + $0x80] sm:$0xff]
        %v4153 = vld [vmem:[#allocation12 + $0x88] sm:$0xff]
        %v4154 = vld [vmem:[#allocation12 + $0x90] sm:$0xff]
        %v4155 = vld [vmem:[#allocation12 + $0x98] sm:$0xff]
        %v4156 = vld [vmem:[#allocation12 + $0xa0] sm:$0xff]
        %v4157 = vld [vmem:[#allocation12 + $0xa8] sm:$0xff]
        %v4158 = vld [vmem:[#allocation12 + $0xb0] sm:$0xff]
        %v4159 = vld [vmem:[#allocation12 + $0xb8] sm:$0xff]
        %v4160 = vld [vmem:[#allocation12 + $0xc0] sm:$0xff]
        %v4161 = vld [vmem:[#allocation12 + $0xc8] sm:$0xff]
        %v4162 = vld [vmem:[#allocation12 + $0xd0] sm:$0xff]
        %v4163 = vld [vmem:[#allocation12 + $0xd8] sm:$0xff]
        %v4164 = vld [vmem:[#allocation12 + $0xe0] sm:$0xff]
        %v4165 = vld [vmem:[#allocation12 + $0xe8] sm:$0xff]
        %v4166 = vld [vmem:[#allocation12 + $0xf0] sm:$0xff]
        %v4167 = vld [vmem:[#allocation12 + $0xf8] sm:$0xff]
        %v4168 = vld [vmem:[%s5] sm:$0x3]
        %v4170 = vlaneseq
        %v4171 = vshrl.u32 %v4170, 7
        %v4172 = vsub.s32 0, %v4171
        %v4173 = vrot.slane %v4168, %v4172
        %v4174 = vlaneseq
        %v4175 = vshrl.u32 %v4174, 7
        %v4176 = vsub.s32 1, %v4175
        %v4177 = vrot.slane %v4168, %v4176
        %v4188 = vcombine.low %v4128, %v4129
        %v4189 = vcombine.low %v4130, %v4131
        %v4190 = vcombine.low %v4132, %v4133
        %v4191 = vcombine.low %v4134, %v4135
        %v4193 = vunpack.c.l.s4 1966171168
        %v4194 = vunpack.c.0.s8 %v4193
        %v4195 = vlaneseq
        %v4196 = vshrl.u32 %v4195, 7
        %v4197 = vsub.s32 %v4194, %v4196
        %v4198 = vrot.slane %v4188, %v4197
        %v4200 = vunpack.c.l.s4 1966171168
        %v4201 = vunpack.c.0.s8 %v4200
        %v4202 = vlaneseq
        %v4203 = vshrl.u32 %v4202, 7
        %v4204 = vsub.s32 %v4201, %v4203
        %v4205 = vrot.slane %v4189, %v4204
        %v4207 = vunpack.c.l.s4 1966171168
        %v4208 = vunpack.c.0.s8 %v4207
        %v4209 = vlaneseq
        %v4210 = vshrl.u32 %v4209, 7
        %v4211 = vsub.s32 %v4208, %v4210
        %v4212 = vrot.slane %v4190, %v4211
        %v4214 = vunpack.c.l.s4 1966171168
        %v4215 = vunpack.c.0.s8 %v4214
        %v4216 = vlaneseq
        %v4217 = vshrl.u32 %v4216, 7
        %v4218 = vsub.s32 %v4215, %v4217
        %v4219 = vrot.slane %v4191, %v4218
        %v4220 = vcombine.low %v4198, %v4205
        %v4221 = vcombine.low %v4212, %v4219
        %v4223 = vunpack.c.l.s4 1966171168
        %v4224 = vunpack.c.0.s8 %v4223
        %v4225 = vlaneseq
        %v4226 = vshrl.u32 %v4225, 7
        %v4227 = vsub.s32 %v4224, %v4226
        %v4228 = vrot.slane %v4220, %v4227
        %v4230 = vunpack.c.l.s4 1966171168
        %v4231 = vunpack.c.0.s8 %v4230
        %v4232 = vlaneseq
        %v4233 = vshrl.u32 %v4232, 7
        %v4234 = vsub.s32 %v4231, %v4233
        %v4235 = vrot.slane %v4221, %v4234
        %v4236 = vcombine.low %v4228, %v4235
        %4238 = vmatprep.subr.mxu0 %v4137
        %4239 = vmatpush1.msra.mxu0 %v4136
        %4240 = vmatprep.subr.mxu0 %v4139
        %4241 = vmatpush1.msra.mxu0 %v4138
        %4242 = vmatprep.subr.mxu0 %v4141
        %4243 = vmatpush1.msra.mxu0 %v4140
        %4244 = vmatprep.subr.mxu0 %v4143
        %4245 = vmatpush1.msra.mxu0 %v4142
        %4246 = vmatprep.subr.mxu0 %v4145
        %4247 = vmatpush1.msra.mxu0 %v4144
        %4248 = vmatprep.subr.mxu0 %v4147
        %4249 = vmatpush1.msra.mxu0 %v4146
        %4250 = vmatprep.subr.mxu0 %v4149
        %4251 = vmatpush1.msra.mxu0 %v4148
        %4252 = vmatprep.subr.mxu0 %v4151
        %4253 = vmatpush1.msra.mxu0 %v4150
        %4254 = vmatprep.subr.mxu0 %v4153
        %4255 = vmatpush1.msra.mxu0 %v4152
        %4256 = vmatprep.subr.mxu0 %v4155
        %4257 = vmatpush1.msra.mxu0 %v4154
        %4258 = vmatprep.subr.mxu0 %v4157
        %4259 = vmatpush1.msra.mxu0 %v4156
        %4260 = vmatprep.subr.mxu0 %v4159
        %4261 = vmatpush1.msra.mxu0 %v4158
        %4262 = vmatprep.subr.mxu0 %v4161
        %4263 = vmatpush1.msra.mxu0 %v4160
        %4264 = vmatprep.subr.mxu0 %v4163
        %4265 = vmatpush1.msra.mxu0 %v4162
        %4266 = vmatprep.subr.mxu0 %v4165
        %4267 = vmatpush1.msra.mxu0 %v4164
        %4268 = vmatprep.subr.mxu0 %v4167
        %4269 = vmatpush1.msra.mxu0 %v4166
        %4270 = vmatprep.subr.mxu0 0.0
        %4271 = vmatpush1.msra.mxu0 0.0
        %4272 = vmatprep.subr.mxu0 0.0
        %4273 = vmatpush1.msra.mxu0 0.0
        %4274 = vmatprep.subr.mxu0 0.0
        %4275 = vmatpush1.msra.mxu0 0.0
        %4276 = vmatprep.subr.mxu0 0.0
        %4277 = vmatpush1.msra.mxu0 0.0
        %4278 = vmatprep.subr.mxu0 0.0
        %4279 = vmatpush1.msra.mxu0 0.0
        %4280 = vmatprep.subr.mxu0 0.0
        %4281 = vmatpush1.msra.mxu0 0.0
        %4282 = vmatprep.subr.mxu0 0.0
        %4283 = vmatpush1.msra.mxu0 0.0
        %4284 = vmatprep.subr.mxu0 0.0
        %4285 = vmatpush1.msra.mxu0 0.0
        %4286 = vmatprep.subr.mxu0 0.0
        %4287 = vmatpush1.msra.mxu0 0.0
        %4288 = vmatprep.subr.mxu0 0.0
        %4289 = vmatpush1.msra.mxu0 0.0
        %4290 = vmatprep.subr.mxu0 0.0
        %4291 = vmatpush1.msra.mxu0 0.0
        %4292 = vmatprep.subr.mxu0 0.0
        %4293 = vmatpush1.msra.mxu0 0.0
        %4294 = vmatprep.subr.mxu0 0.0
        %4295 = vmatpush1.msra.mxu0 0.0
        %4296 = vmatprep.subr.mxu0 0.0
        %4297 = vmatpush1.msra.mxu0 0.0
        %4298 = vmatprep.subr.mxu0 0.0
        %4299 = vmatpush1.msra.mxu0 0.0
        %4300 = vmatprep.subr.mxu0 0.0
        %4301 = vmatpush1.msra.mxu0 0.0
        %4302 = vmatprep.mubr.f32.mxu0 0.0
        %4303 = vmatmul.mubr.f32.gmra.mrb[0].mxu0 %v4236
        %v4304 = vpop.f32.mrb[0].mxu0
        %v4305 = vadd.f32 %v4173, %v4304
        %v4306 = vpop.f32.mrb[0].mxu0
        %v4307 = vadd.f32 %v4177, %v4306
        %4308 = vdwg.mxu0
        %v4311 = vcombine.low %v4305, %v4307
        %v4312 = vcombine.high %v4305, %v4307
        %v4314 = vunpack.c.l.s4 1966171168
        %v4315 = vunpack.c.0.s8 %v4314
        %v4316 = vlaneseq
        %v4317 = vshrl.u32 %v4316, 7
        %v4318 = vsub.s32 %v4315, %v4317
        %v4319 = vrot.slane %v4311, %v4318
        %v4321 = vunpack.c.l.s4 1966171168
        %v4322 = vunpack.c.0.s8 %v4321
        %v4323 = vlaneseq
        %v4324 = vshrl.u32 %v4323, 7
        %v4325 = vsub.s32 %v4322, %v4324
        %v4326 = vrot.slane %v4312, %v4325
        %v4327 = vcombine.high %v4319, %v4319
        %v4328 = vcombine.high %v4326, %v4326
        %v4330 = vunpack.c.l.s4 1966171168
        %v4331 = vunpack.c.0.s8 %v4330
        %v4332 = vlaneseq
        %v4333 = vshrl.u32 %v4332, 7
        %v4334 = vsub.s32 %v4331, %v4333
        %v4335 = vrot.slane %v4319, %v4334
        %v4337 = vunpack.c.l.s4 1966171168
        %v4338 = vunpack.c.0.s8 %v4337
        %v4339 = vlaneseq
        %v4340 = vshrl.u32 %v4339, 7
        %v4341 = vsub.s32 %v4338, %v4340
        %v4342 = vrot.slane %v4326, %v4341
        %v4344 = vunpack.c.l.s4 1966171168
        %v4345 = vunpack.c.0.s8 %v4344
        %v4346 = vlaneseq
        %v4347 = vshrl.u32 %v4346, 7
        %v4348 = vsub.s32 %v4345, %v4347
        %v4349 = vrot.slane %v4327, %v4348
        %v4351 = vunpack.c.l.s4 1966171168
        %v4352 = vunpack.c.0.s8 %v4351
        %v4353 = vlaneseq
        %v4354 = vshrl.u32 %v4353, 7
        %v4355 = vsub.s32 %v4352, %v4354
        %v4356 = vrot.slane %v4328, %v4355
        %v4357 = vcombine.high %v4335, %v4335
        %v4358 = vcombine.high %v4342, %v4342
        %v4359 = vcombine.high %v4349, %v4349
        %v4360 = vcombine.high %v4356, %v4356
        %v4361 = vcombine.low %v4335, %v4349
        %v4362 = vcombine.low %v4357, %v4359
        %v4363 = vcombine.low %v4342, %v4356
        %v4364 = vcombine.low %v4358, %v4360
        %v4366 = vunpack.c.l.s4 1966171168
        %v4367 = vunpack.c.0.s8 %v4366
        %v4368 = vlaneseq
        %v4369 = vshrl.u32 %v4368, 7
        %v4370 = vsub.s32 %v4367, %v4369
        %v4371 = vrot.slane %v4361, %v4370
        %v4373 = vunpack.c.l.s4 1966171168
        %v4374 = vunpack.c.0.s8 %v4373
        %v4375 = vlaneseq
        %v4376 = vshrl.u32 %v4375, 7
        %v4377 = vsub.s32 %v4374, %v4376
        %v4378 = vrot.slane %v4362, %v4377
        %v4380 = vunpack.c.l.s4 1966171168
        %v4381 = vunpack.c.0.s8 %v4380
        %v4382 = vlaneseq
        %v4383 = vshrl.u32 %v4382, 7
        %v4384 = vsub.s32 %v4381, %v4383
        %v4385 = vrot.slane %v4363, %v4384
        %v4387 = vunpack.c.l.s4 1966171168
        %v4388 = vunpack.c.0.s8 %v4387
        %v4389 = vlaneseq
        %v4390 = vshrl.u32 %v4389, 7
        %v4391 = vsub.s32 %v4388, %v4390
        %v4392 = vrot.slane %v4364, %v4391
        %v4393 = vcombine.low %v4371, %v4378
        %v4394 = vcombine.high %v4371, %v4378
        %v4395 = vcombine.low %v4385, %v4392
        %v4396 = vcombine.high %v4385, %v4392
        %v4398 = vunpack.c.l.s4 1966171168
        %v4399 = vunpack.c.0.s8 %v4398
        %v4400 = vlaneseq
        %v4401 = vshrl.u32 %v4400, 7
        %v4402 = vsub.s32 %v4399, %v4401
        %v4403 = vrot.slane %v4393, %v4402
        %v4405 = vunpack.c.l.s4 1966171168
        %v4406 = vunpack.c.0.s8 %v4405
        %v4407 = vlaneseq
        %v4408 = vshrl.u32 %v4407, 7
        %v4409 = vsub.s32 %v4406, %v4408
        %v4410 = vrot.slane %v4394, %v4409
        %v4412 = vunpack.c.l.s4 1966171168
        %v4413 = vunpack.c.0.s8 %v4412
        %v4414 = vlaneseq
        %v4415 = vshrl.u32 %v4414, 7
        %v4416 = vsub.s32 %v4413, %v4415
        %v4417 = vrot.slane %v4395, %v4416
        %v4419 = vunpack.c.l.s4 1966171168
        %v4420 = vunpack.c.0.s8 %v4419
        %v4421 = vlaneseq
        %v4422 = vshrl.u32 %v4421, 7
        %v4423 = vsub.s32 %v4420, %v4422
        %v4424 = vrot.slane %v4396, %v4423
        %v4425 = vcombine.low %v4403, %v4417
        %v4426 = vcombine.low %v4410, %v4424
        %4429 = vst [vmem:[%s329] sm:$0xff] %v4425
        %4430 = vst [vmem:[%s329 + $0x8] sm:$0xff] %v4426
        %s4431 = sand.u32 %s180, 1
        %s4432 = scalar_lea.sflag [#allocation8], %s4431
        %s4433 = sand.u32 %s180, 1
        %s4434 = smul.addr %s4433, 16
        %s4435 = scalar_lea.vmem [#allocation14], %s4434
        // Predicated region
        $region65: #{tpu_custom_call.1} parent=43 // pred_check
          %p4436 = pneg %p190
        $region66: #{tpu_custom_call.1} parent=43 // pred_check_branch
          %4438 = sbr.rel (%p4436) target = $region68
        $region67: #{tpu_custom_call.1} parent=43 // pred_region
          %s4440 = ssub.s32 256, 256
          %4441 = vsyncadd %s4432, %s4440
          %s4442 = smul.addr %s30, 2
          %s4443 = smul.addr %s29, 2
          %s4444 = sadd.s32 %s4442, %s4443
          %s4445 = smul.addr %s4444, 128
          %s4446 = scalar_lea.hbm %s6, %s4445
          %s4448 = sshll.u32 %s4435, 4
          %s4449 = int_to_ptr.vmem [resolvable:$true] %s4448
          %4451 = dma.vmem_to_hbm [thread:$0]  %s4449, 256, %s4446, %s4432
        $region68: #{tpu_custom_call.1} parent=43 // pred_fallthru
          _
      $region44: #{tpu_custom_call.1} parent=5 // pred_fallthru
        _
      %p4452 = scmp.le.s32.totalorder 2, %s20
      // Predicated region
      $region69: #{tpu_custom_call.1} parent=5 // pred_check
        %p4453 = pneg %p4452
      $region70: #{tpu_custom_call.1} parent=5 // pred_check_branch
        %4455 = sbr.rel (%p4453) target = $region72
      $region71: #{tpu_custom_call.1} parent=5 // pred_region
        %s4456 = ssub.s32 %s20, 2
        // Predicated region
        $region73: #{tpu_custom_call.1} parent=71 // pred_check
          %p4457 = pneg %p196
        $region74: #{tpu_custom_call.1} parent=71 // pred_check_branch
          %4459 = sbr.rel (%p4457) target = $region76
        $region75: #{tpu_custom_call.1} parent=71 // pred_region
          %s4460 = sand.u32 %s181, 1
          %s4461 = scalar_lea.sflag [#allocation8], %s4460
          %s4462 = sand.u32 %s181, 1
          %s4463 = smul.addr %s4462, 16
          %s4464 = scalar_lea.vmem [#allocation14], %s4463
          %4465 = dma.done %s4461, 256
        $region76: #{tpu_custom_call.1} parent=71 // pred_fallthru
          _
      $region72: #{tpu_custom_call.1} parent=5 // pred_fallthru
        _
    $region6: #{tpu_custom_call.1} parent=1 // loop_footer
      %s24 = sadd.s32 1, %s20
    $region7: #{tpu_custom_call.1} parent=1 // loop_footer_branch
      %19 = sbr.rel target = $region3
    $region8: #{tpu_custom_call.1} parent=1 // loop_exit
      _
    %4466 = vsyncpa [#allocation7], 1
    %s4467 = scalar_lea.sflag [#allocation7], 1
    %4468 = vsyncpa %s4467, 1
    %4469 = vsyncpa [#allocation10], 1
    %4470 = vsyncpa [#allocation13], 1
    %4471 = vsyncpa [#allocation8], 1
    %s4472 = scalar_lea.sflag [#allocation8], 1
    %4473 = vsyncpa %s4472, 1

</llo_original>
